<compile_context>
chip_gen: v7x
topology: tpu7x:2x2x1
jax: 0.10.0
libtpu: 0.0.40
codegen_flags: <defaults>
</compile_context>

<pallas_src>
import jax
import jax.numpy as jnp
from jax.experimental import pallas as pl
from jax.experimental.pallas import tpu as pltpu

FEATURE_DIM = 768
NUM_CLASSES = 4
# wav2vec2 feature-extractor conv stack (used by get_feat_extract_output_lengths)
CONV_KERNELS = (10, 3, 3, 3, 3, 2, 2)
CONV_STRIDES = (5, 2, 2, 2, 2, 2, 2)
FRAME_WIN = 400                      # effective receptive field of the conv stack
FRAME_HOP = 320                      # effective stride of the conv stack
FRAME_TAIL = FRAME_WIN - FRAME_HOP   # 80 samples borrowed from the next chunk
C_PAD = 128                          # classifier output padded for lane-dense stores


def get_feat_extract_output_lengths(input_lengths):
    out = input_lengths
    for k, s in zip(CONV_KERNELS, CONV_STRIDES):
        out = (out - k) // s + 1
    return out


def _round_up(x, m):
    return ((x + m - 1) // m) * m


def _tiles(B, T):
    B_pad = _round_up(max(B, 8), 8)   # pad batch to a multiple of 8
    BB = 8                            # batch tile: grid dim 0 >= 2 whenever B >= 16
    T8 = _round_up(max(T, 8), 8)
    TT = min(256, T8)                 # time tile (multiple of 8)
    # shrink the tile if it would waste more than half a tile of padded frames
    while TT > 64 and _round_up(T8, TT) - T8 >= TT // 2:
        TT //= 2
    T_pad = _round_up(T8, TT)
    return B_pad, BB, TT, T_pad


# ---------------------------- fused Pallas kernel ----------------------------

def _fused_kernel(main_ref, tail_ref, lfp_ref, wf1_ref, wf2_ref, bf_ref,
                  wh_ref, bh_ref, out_ref, acc_ref):
    # main: (BB, TT, 320) bf16   tail: (BB, TT, 80) bf16   lfp: (BB, 1) f32
    # wf1: (320, D) bf16  wf2: (80, D) bf16  bf: (1, D) f32
    # wh: (D, C_PAD) f32  bh: (1, C_PAD) f32
    # out: (BB, C_PAD) f32       acc: (BB, D) f32 pooled-sum accumulator
    j = pl.program_id(1)                       # time-tile index (reduction axis)

    @pl.when(j == 0)
    def _init():
        acc_ref[...] = jnp.zeros_like(acc_ref)

    main = main_ref[...]
    tail = tail_ref[...]
    bb, tt, _ = main.shape
    d = wf1_ref.shape[1]

    # frame_t = [chunk_t | first 80 samples of chunk_{t+1}], so the 400-tap
    # projection is two MXU matmuls (bf16 operands, f32 accumulate) on pure
    # reshapes — no overlapping-frame gather anywhere.
    y = jnp.dot(main.reshape(bb * tt, FRAME_HOP), wf1_ref[...],
                preferred_element_type=jnp.float32)
    y = y + jnp.dot(tail.reshape(bb * tt, FRAME_TAIL), wf2_ref[...],
                    preferred_element_type=jnp.float32)
    reps = jnp.tanh(y + bf_ref[...]).reshape(bb, tt, d)       # (BB, TT, D) f32

    # validity mask built in-kernel (no (B, T, 1) HBM mask stream); strict
    # `< last_feat_pos` and the divide-by-(out_len-1) mirror the PyTorch code.
    t_idx = jax.lax.broadcasted_iota(jnp.int32, (tt, 1), 0) + j * tt   # (TT, 1)
    mask = (t_idx[None].astype(jnp.float32)
            < lfp_ref[...][:, None]).astype(jnp.float32)      # (BB, TT, 1)
    acc_ref[...] += jnp.sum(reps * mask, axis=1)              # (BB, D)

    @pl.when(j == pl.num_programs(1) - 1)
    def _finalize():
        pooled = acc_ref[...] / lfp_ref[...]                  # masked temporal mean
        act = jnp.maximum(pooled, 0.0)                        # nn.ReLU()
        out_ref[...] = (jnp.dot(act, wh_ref[...],
                                preferred_element_type=jnp.float32)
                        + bh_ref[...])                        # nn.Linear -> (BB, C_PAD)


# ------------------------------- forward pass -------------------------------

def wav2vec2_emonet_forward(x, length, params):
    """x: (B, L) float32 waveform, length: (B,) int32 valid sample counts."""
    # TODO(synk): the pretrained Wav2vec2Wrapper (CNN + Transformer) backbone has
    # no clean Pallas equivalent as a synthetic kernel; it is replaced by a
    # deterministic 400-tap frame projection tanh(frame @ Wf + bf) producing the
    # same (B, T, 768) feature shape.  The self.rnn_head LSTM is defined in
    # __init__ but never used in forward, so it is omitted.
    B, L = x.shape
    T = int(get_feat_extract_output_lengths(L))      # padded output length
    B_pad, BB, TT, T_pad = _tiles(B, T)
    n_chunks = T_pad + 1                             # +1 chunk feeds the last tail
    Lp = n_chunks * FRAME_HOP

    # Gather-free framing: one contiguous pad + bf16 cast of the waveform, then
    # free reshapes into non-overlapping 320-sample chunks plus a small 80-sample
    # tail slab (25% of the chunk bytes, simple slice fusion — no gather).
    # TODO(synk): this pre-pass could be removed entirely with memory_space=pl.ANY
    # on the waveform + manual per-tile make_async_copy windows; kept in XLA for
    # robustness.
    if Lp >= L:
        xw = jnp.pad(x, ((0, B_pad - B), (0, Lp - L)))
    else:
        xw = jnp.pad(x[:, :Lp], ((0, B_pad - B), (0, 0)))
    xb = xw.astype(jnp.bfloat16)                                 # (B_pad, Lp) bf16
    chunks = xb.reshape(B_pad, n_chunks, FRAME_HOP)              # free reshape
    tails = xb[:, FRAME_HOP:].reshape(B_pad, T_pad,
                                      FRAME_HOP)[:, :, :FRAME_TAIL]  # (B_pad, T_pad, 80)

    # per-utterance last_feat_pos (guarded >= 1 against divide-by-zero); the time
    # mask and the mean divide happen inside the kernel from this (B, 1) column.
    lfp = jnp.maximum(get_feat_extract_output_lengths(length) - 1, 1)
    lfp = jnp.pad(lfp.astype(jnp.float32), (0, B_pad - B), constant_values=1.0)
    lfp = lfp[:, None]                                           # (B_pad, 1) f32

    # parameters: Wf split 320/80 rows (bf16 MXU operands, no K zero-pad);
    # classifier padded 4 -> 128 lanes for lane-dense stores, sliced back below.
    wf = params["wf"].astype(jnp.bfloat16)                       # (400, 768)
    wf1, wf2 = wf[:FRAME_HOP], wf[FRAME_HOP:]                    # (320, D), (80, D)
    bf = params["bf"].astype(jnp.float32).reshape(1, FEATURE_DIM)
    C = params["w_head"].shape[1]
    wh = jnp.pad(params["w_head"].astype(jnp.float32), ((0, 0), (0, C_PAD - C)))
    bh = jnp.pad(params["b_head"].astype(jnp.float32).reshape(1, C),
                 ((0, 0), (0, C_PAD - C)))

    grid = (B_pad // BB, T_pad // TT)
    cost = pl.CostEstimate(
        flops=2 * B_pad * T_pad * FRAME_WIN * FEATURE_DIM
              + 2 * B_pad * FEATURE_DIM * C_PAD,
        transcendentals=B_pad * T_pad * FEATURE_DIM,
        bytes_accessed=2 * (chunks.size + tails.size) + 4 * B_pad * C_PAD,
    )

    out = pl.pallas_call(
        _fused_kernel,
        out_shape=jax.ShapeDtypeStruct((B_pad, C_PAD), jnp.float32),
        grid=grid,
        in_specs=[
            pl.BlockSpec((BB, TT, FRAME_HOP), lambda bi, j: (bi, j, 0)),
            pl.BlockSpec((BB, TT, FRAME_TAIL), lambda bi, j: (bi, j, 0)),
            pl.BlockSpec((BB, 1), lambda bi, j: (bi, 0)),
            pl.BlockSpec((FRAME_HOP, FEATURE_DIM), lambda bi, j: (0, 0)),
            pl.BlockSpec((FRAME_TAIL, FEATURE_DIM), lambda bi, j: (0, 0)),
            pl.BlockSpec((1, FEATURE_DIM), lambda bi, j: (0, 0)),
            pl.BlockSpec((FEATURE_DIM, C_PAD), lambda bi, j: (0, 0)),
            pl.BlockSpec((1, C_PAD), lambda bi, j: (0, 0)),
        ],
        out_specs=pl.BlockSpec((BB, C_PAD), lambda bi, j: (bi, 0)),
        scratch_shapes=[pltpu.VMEM((BB, FEATURE_DIM), jnp.float32)],
        compiler_params=pltpu.CompilerParams(
            dimension_semantics=("parallel", "arbitrary")),
        cost_estimate=cost,
    )(chunks, tails, lfp, wf1, wf2, bf, wh, bh)
    # TODO(synk): on v7x the constant-index weight specs could use
    # pipeline_mode=pl.Buffered(1); skipped here since VMEM headroom is ample
    # at BB=8 / TT<=256 (~10 MiB peak, < 32 MiB scoped on every generation).
    return out[:B, :C]                                           # (B, num_classes)


# ---------------------------- pure-JAX reference ----------------------------

def _reference_forward(x, length, params):
    B, L = x.shape
    T = int(get_feat_extract_output_lengths(L))
    need = (T - 1) * FRAME_HOP + FRAME_WIN
    xp = jnp.pad(x, ((0, 0), (0, max(need - L, 0))))
    starts = jnp.arange(T) * FRAME_HOP
    idx = starts[:, None] + jnp.arange(FRAME_WIN)[None, :]
    frames = xp[:, idx].astype(jnp.bfloat16).astype(jnp.float32)   # match bf16 cast
    wf = params["wf"].astype(jnp.bfloat16).astype(jnp.float32)
    reps = jnp.tanh(jnp.einsum("btk,kd->btd", frames, wf) + params["bf"])
    lfp = jnp.maximum(get_feat_extract_output_lengths(length) - 1, 1).astype(jnp.float32)
    mask = (jnp.arange(T, dtype=jnp.float32)[None, :] < lfp[:, None]).astype(jnp.float32)
    pooled = jnp.sum(reps * mask[:, :, None], axis=1) / lfp[:, None]
    act = jnp.maximum(pooled, 0.0)
    return act @ params["w_head"] + params["b_head"]


if __name__ == "__main__":
    B, L = 2, 4000
    key = jax.random.PRNGKey(0)
    kx, k1, k2, k3, k4 = jax.random.split(key, 5)

    x = jax.random.normal(kx, (B, L), dtype=jnp.float32)
    length = jnp.array([4000, 3200], dtype=jnp.int32)

    params = {
        "wf": jax.random.normal(k1, (FRAME_WIN, FEATURE_DIM), jnp.float32) * 0.02,
        "bf": jax.random.normal(k2, (1, FEATURE_DIM), jnp.float32) * 0.02,
        "w_head": jax.random.normal(k3, (FEATURE_DIM, NUM_CLASSES), jnp.float32) * 0.02,
        "b_head": jax.random.normal(k4, (1, NUM_CLASSES), jnp.float32) * 0.02,
    }

    out = jax.jit(wav2vec2_emonet_forward)(x, length, params)
    out = jax.block_until_ready(out)
    assert out.shape == (B, NUM_CLASSES) and out.dtype == jnp.float32

    ref = _reference_forward(x, length, params)
    err = float(jnp.max(jnp.abs(out - ref)))
    assert err < 5e-3, f"max abs error vs reference: {err}"
    print("KERNEL_OK")
</pallas_src>

<mosaic_0001>
module attributes {stable_mosaic.version = 11 : i64} {
  func.func @_fused_kernel(%arg0: i32, %arg1: i32, %arg2: memref<8x16x320xbf16, #tpu.memory_space<vmem>>, %arg3: memref<8x16x80xbf16, #tpu.memory_space<vmem>>, %arg4: memref<8x1xf32, #tpu.memory_space<vmem>>, %arg5: memref<320x768xbf16, #tpu.memory_space<vmem>>, %arg6: memref<80x768xbf16, #tpu.memory_space<vmem>>, %arg7: memref<1x768xf32, #tpu.memory_space<vmem>>, %arg8: memref<768x128xf32, #tpu.memory_space<vmem>>, %arg9: memref<1x128xf32, #tpu.memory_space<vmem>>, %arg10: memref<8x128xf32, #tpu.memory_space<vmem>>, %arg11: memref<8x768xf32, #tpu.memory_space<vmem>>) attributes {dimension_semantics = [#tpu.dimension_semantics<parallel>, #tpu.dimension_semantics<arbitrary>], iteration_bounds = array<i64: 1, 1>, scalar_prefetch = 0 : i64, scratch_operands = 1 : i64, tpu.core_type = #tpu.core_type<tc>, window_params = [{transform_indices = @transform_0, window_bounds = array<i64: 8, 16, 320>}, {transform_indices = @transform_1, window_bounds = array<i64: 8, 16, 80>}, {transform_indices = @transform_2, window_bounds = array<i64: 8, 1>}, {pipeline_mode = #tpu.pipeline_mode<synchronous>, transform_indices = @transform_3, window_bounds = array<i64: 320, 768>}, {pipeline_mode = #tpu.pipeline_mode<synchronous>, transform_indices = @transform_4, window_bounds = array<i64: 80, 768>}, {pipeline_mode = #tpu.pipeline_mode<synchronous>, transform_indices = @transform_5, window_bounds = array<i64: 1, 768>}, {pipeline_mode = #tpu.pipeline_mode<synchronous>, transform_indices = @transform_6, window_bounds = array<i64: 768, 128>}, {pipeline_mode = #tpu.pipeline_mode<synchronous>, transform_indices = @transform_7, window_bounds = array<i64: 1, 128>}, {transform_indices = @transform_8, window_bounds = array<i64: 8, 128>}]} {
    %c0_i32 = arith.constant 0 : i32
    %0 = arith.cmpi eq, %arg1, %c0_i32 : i32
    %1 = arith.extui %0 : i1 to i32
    %c0_i32_0 = arith.constant 0 : i32
    %2 = arith.cmpi ne, %1, %c0_i32_0 : i32
    scf.if %2 {
      %cst_22 = arith.constant 0.000000e+00 : f32
      %39 = vector.broadcast %cst_22 : f32 to vector<8x768xf32>
      %c0_23 = arith.constant 0 : index
      %c0_24 = arith.constant 0 : index
      %40 = vector.load %arg11[%c0_23, %c0_24] : memref<8x768xf32, #tpu.memory_space<vmem>>, vector<8x768xf32>
      tpu.vector_store %arg11[%c0_23, %c0_24], %39 {strides = array<i32>} : memref<8x768xf32, #tpu.memory_space<vmem>>, vector<8x768xf32>,
    } else {
    }
    %c0 = arith.constant 0 : index
    %c0_1 = arith.constant 0 : index
    %c0_2 = arith.constant 0 : index
    %3 = vector.load %arg2[%c0, %c0_1, %c0_2] : memref<8x16x320xbf16, #tpu.memory_space<vmem>>, vector<8x16x320xbf16>
    %c0_3 = arith.constant 0 : index
    %c0_4 = arith.constant 0 : index
    %c0_5 = arith.constant 0 : index
    %4 = vector.load %arg3[%c0_3, %c0_4, %c0_5] : memref<8x16x80xbf16, #tpu.memory_space<vmem>>, vector<8x16x80xbf16>
    %5 = vector.shape_cast %3 : vector<8x16x320xbf16> to vector<128x320xbf16>
    %c0_6 = arith.constant 0 : index
    %c0_7 = arith.constant 0 : index
    %6 = vector.load %arg5[%c0_6, %c0_7] : memref<320x768xbf16, #tpu.memory_space<vmem>>, vector<320x768xbf16>
    %cst = arith.constant dense<0.000000e+00> : vector<128x768xf32>
    %7 = tpu.matmul %5, %6, %cst {dimension_numbers = #tpu.dot_dimension_numbers<[1], [0], [0], [1], [0, 0, 1, 1], [], []>} : vector<128x320xbf16>, vector<320x768xbf16>, vector<128x768xf32> -> vector<128x768xf32>
    %8 = vector.shape_cast %4 : vector<8x16x80xbf16> to vector<128x80xbf16>
    %c0_8 = arith.constant 0 : index
    %c0_9 = arith.constant 0 : index
    %9 = vector.load %arg6[%c0_8, %c0_9] : memref<80x768xbf16, #tpu.memory_space<vmem>>, vector<80x768xbf16>
    %cst_10 = arith.constant dense<0.000000e+00> : vector<128x768xf32>
    %10 = tpu.matmul %8, %9, %cst_10 {dimension_numbers = #tpu.dot_dimension_numbers<[1], [0], [0], [1], [0, 0, 1, 1], [], []>} : vector<128x80xbf16>, vector<80x768xbf16>, vector<128x768xf32> -> vector<128x768xf32>
    %11 = arith.addf %7, %10 : vector<128x768xf32>
    %c0_11 = arith.constant 0 : index
    %c0_12 = arith.constant 0 : index
    %12 = vector.load %arg7[%c0_11, %c0_12] : memref<1x768xf32, #tpu.memory_space<vmem>>, vector<1x768xf32>
    %13 = vector.broadcast %12 : vector<1x768xf32> to vector<128x768xf32>
    %14 = arith.addf %11, %13 : vector<128x768xf32>
    %15 = math.tanh %14 : vector<128x768xf32>
    %16 = vector.shape_cast %15 : vector<128x768xf32> to vector<8x16x768xf32>
    %17 = tpu.iota {dimensions = array<i32: 0>} : vector<16x1xi32>
    %c16_i32 = arith.constant 16 : i32
    %18 = arith.muli %arg1, %c16_i32 : i32
    %19 = vector.broadcast %18 : i32 to vector<16x1xi32>
    %20 = arith.addi %17, %19 : vector<16x1xi32>
    %21 = vector.shape_cast %20 : vector<16x1xi32> to vector<1x16x1xi32>
    %22 = arith.sitofp %21 : vector<1x16x1xi32> to vector<1x16x1xf32>
    %c0_13 = arith.constant 0 : index
    %c0_14 = arith.constant 0 : index
    %23 = vector.load %arg4[%c0_13, %c0_14] : memref<8x1xf32, #tpu.memory_space<vmem>>, vector<8x1xf32>
    %24 = vector.shape_cast %23 : vector<8x1xf32> to vector<8x1x1xf32>
    %25 = vector.broadcast %22 : vector<1x16x1xf32> to vector<8x16x1xf32>
    %26 = vector.broadcast %24 : vector<8x1x1xf32> to vector<8x16x1xf32>
    %27 = arith.cmpf olt, %25, %26 : vector<8x16x1xf32>
    %28 = arith.extui %27 : vector<8x16x1xi1> to vector<8x16x1xi32>
    %29 = arith.sitofp %28 : vector<8x16x1xi32> to vector<8x16x1xf32>
    %c0_15 = arith.constant 0 : index
    %c0_16 = arith.constant 0 : index
    %30 = vector.load %arg11[%c0_15, %c0_16] : memref<8x768xf32, #tpu.memory_space<vmem>>, vector<8x768xf32>
    %31 = vector.broadcast %29 : vector<8x16x1xf32> to vector<8x16x768xf32>
    %32 = arith.mulf %16, %31 : vector<8x16x768xf32>
    %cst_17 = arith.constant dense<0.000000e+00> : vector<8x768xf32>
    %33 = vector.multi_reduction <add>, %32, %cst_17 [1] : vector<8x16x768xf32> to vector<8x768xf32>
    %34 = arith.addf %30, %33 : vector<8x768xf32>
    %c0_18 = arith.constant 0 : index
    %c0_19 = arith.constant 0 : index
    %35 = vector.load %arg11[%c0_18, %c0_19] : memref<8x768xf32, #tpu.memory_space<vmem>>, vector<8x768xf32>
    tpu.vector_store %arg11[%c0_18, %c0_19], %34 {strides = array<i32>} : memref<8x768xf32, #tpu.memory_space<vmem>>, vector<8x768xf32>,
    %c0_i32_20 = arith.constant 0 : i32
    %36 = arith.cmpi eq, %arg1, %c0_i32_20 : i32
    %37 = arith.extui %36 : i1 to i32
    %c0_i32_21 = arith.constant 0 : i32
    %38 = arith.cmpi ne, %37, %c0_i32_21 : i32
    scf.if %38 {
      %c0_22 = arith.constant 0 : index
      %c0_23 = arith.constant 0 : index
      %39 = vector.load %arg11[%c0_22, %c0_23] : memref<8x768xf32, #tpu.memory_space<vmem>>, vector<8x768xf32>
      %c0_24 = arith.constant 0 : index
      %c0_25 = arith.constant 0 : index
      %40 = vector.load %arg4[%c0_24, %c0_25] : memref<8x1xf32, #tpu.memory_space<vmem>>, vector<8x1xf32>
      %41 = vector.broadcast %40 : vector<8x1xf32> to vector<8x768xf32>
      %42 = arith.divf %39, %41 : vector<8x768xf32>
      %cst_26 = arith.constant 0.000000e+00 : f32
      %43 = vector.broadcast %cst_26 : f32 to vector<8x768xf32>
      %44 = arith.maximumf %42, %43 : vector<8x768xf32>
      %c0_27 = arith.constant 0 : index
      %c0_28 = arith.constant 0 : index
      %45 = vector.load %arg8[%c0_27, %c0_28] : memref<768x128xf32, #tpu.memory_space<vmem>>, vector<768x128xf32>
      %cst_29 = arith.constant dense<0.000000e+00> : vector<8x128xf32>
      %46 = tpu.matmul %44, %45, %cst_29 {dimension_numbers = #tpu.dot_dimension_numbers<[1], [0], [0], [1], [0, 0, 1, 1], [], []>} : vector<8x768xf32>, vector<768x128xf32>, vector<8x128xf32> -> vector<8x128xf32>
      %c0_30 = arith.constant 0 : index
      %c0_31 = arith.constant 0 : index
      %47 = vector.load %arg9[%c0_30, %c0_31] : memref<1x128xf32, #tpu.memory_space<vmem>>, vector<1x128xf32>
      %48 = vector.broadcast %47 : vector<1x128xf32> to vector<8x128xf32>
      %49 = arith.addf %46, %48 : vector<8x128xf32>
      %c0_32 = arith.constant 0 : index
      %c0_33 = arith.constant 0 : index
      %50 = vector.load %arg10[%c0_32, %c0_33] : memref<8x128xf32, #tpu.memory_space<vmem>>, vector<8x128xf32>
      tpu.vector_store %arg10[%c0_32, %c0_33], %49 {strides = array<i32>} : memref<8x128xf32, #tpu.memory_space<vmem>>, vector<8x128xf32>,
    } else {
    }
    return
  }
  func.func @transform_0(%arg0: i32, %arg1: i32) -> (i32, i32, i32) {
    %c0_i32 = arith.constant 0 : i32
    %c0_i32_0 = arith.constant 0 : i32
    return %arg0, %arg1, %c0_i32 : i32, i32, i32
  }
  func.func @transform_1(%arg0: i32, %arg1: i32) -> (i32, i32, i32) {
    %c0_i32 = arith.constant 0 : i32
    %c0_i32_0 = arith.constant 0 : i32
    return %arg0, %arg1, %c0_i32 : i32, i32, i32
  }
  func.func @transform_2(%arg0: i32, %arg1: i32) -> (i32, i32) {
    %c0_i32 = arith.constant 0 : i32
    %c0_i32_0 = arith.constant 0 : i32
    return %arg0, %c0_i32 : i32, i32
  }
  func.func @transform_3(%arg0: i32, %arg1: i32) -> (i32, i32) {
    %c0_i32 = arith.constant 0 : i32
    %c0_i32_0 = arith.constant 0 : i32
    %c0_i32_1 = arith.constant 0 : i32
    return %c0_i32, %c0_i32_0 : i32, i32
  }
  func.func @transform_4(%arg0: i32, %arg1: i32) -> (i32, i32) {
    %c0_i32 = arith.constant 0 : i32
    %c0_i32_0 = arith.constant 0 : i32
    %c0_i32_1 = arith.constant 0 : i32
    return %c0_i32, %c0_i32_0 : i32, i32
  }
  func.func @transform_5(%arg0: i32, %arg1: i32) -> (i32, i32) {
    %c0_i32 = arith.constant 0 : i32
    %c0_i32_0 = arith.constant 0 : i32
    %c0_i32_1 = arith.constant 0 : i32
    return %c0_i32, %c0_i32_0 : i32, i32
  }
  func.func @transform_6(%arg0: i32, %arg1: i32) -> (i32, i32) {
    %c0_i32 = arith.constant 0 : i32
    %c0_i32_0 = arith.constant 0 : i32
    %c0_i32_1 = arith.constant 0 : i32
    return %c0_i32, %c0_i32_0 : i32, i32
  }
  func.func @transform_7(%arg0: i32, %arg1: i32) -> (i32, i32) {
    %c0_i32 = arith.constant 0 : i32
    %c0_i32_0 = arith.constant 0 : i32
    %c0_i32_1 = arith.constant 0 : i32
    return %c0_i32, %c0_i32_0 : i32, i32
  }
  func.func @transform_8(%arg0: i32, %arg1: i32) -> (i32, i32) {
    %c0_i32 = arith.constant 0 : i32
    %c0_i32_0 = arith.constant 0 : i32
    return %arg0, %c0_i32 : i32, i32
  }
}

</mosaic_0001>

<llo_original>
// kernel: wav2vec2_emonet_forward.1
$region0: #{wav2vec2_emonet_forward.1}
  #allocation0 [shape = 'u32[]', space=smem, size = 0x4, offset = 0x4, fixed_abs, tag = 'smem constant byte address 0x4 - core index']
  #allocation1 [shape = 'u32[144,128]{1,0:T(1,128)}', space=vmem, size = 0x12000, scoped, tag = 'internal scratch']
  #allocation2 [shape = 'f32[8,768]{1,0:T(8,128)}', space=vmem, size = 0x6000, scoped, tag = 'scratch operand']
  %s0 = inlined_call_operand.vmem [shape: bf16[8,17,320], index: 0, kind: input, shape index: {}]
  %s1 = inlined_call_operand.vmem [shape: bf16[8,16,80], index: 1, kind: input, shape index: {}]
  %s2 = inlined_call_operand.vmem [shape: f32[8,1], index: 2, kind: input, shape index: {}]
  %s3 = inlined_call_operand.vmem [shape: bf16[320,768], index: 3, kind: input, shape index: {}]
  %s4 = inlined_call_operand.vmem [shape: bf16[80,768], index: 4, kind: input, shape index: {}]
  %s5 = inlined_call_operand.vmem [shape: f32[1,768], index: 5, kind: input, shape index: {}]
  %s6 = inlined_call_operand.vmem [shape: f32[768,128], index: 6, kind: input, shape index: {}]
  %s7 = inlined_call_operand.vmem [shape: f32[1,128], index: 7, kind: input, shape index: {}]
  %s8 = inlined_call_operand.vmem [shape: f32[8,128], index: 8, kind: output, shape index: {}]
  %s9 = sld [smem:[#allocation0]]
  $region76: #{wav2vec2_emonet_forward.1} parent=0
    _
  %s11 = ssub.s32 1, %s9
  %s12 = scalar_select 0, %s11, %s9
  $region1: #{wav2vec2_emonet_forward.1} parent=0
    #allocation3 [shape = 'u8[98304]{0}', space=vmem, size = 0x18000, scoped, tag = 'input window, operand 0, single buffered']
    // Predicated region
    $region2: #{wav2vec2_emonet_forward.1} parent=1 // pred_check
      _
    $region3: #{wav2vec2_emonet_forward.1} parent=1 // pred_check_branch
      %14 = sbr.rel (0) target = $region5
    $region4: #{wav2vec2_emonet_forward.1} parent=1 // pred_region
      // Predicated region
      $region6: #{wav2vec2_emonet_forward.1} parent=4 // pred_check
        _
      $region7: #{wav2vec2_emonet_forward.1} parent=4 // pred_check_branch
        %16 = sbr.rel (0) target = $region9
      $region8: #{wav2vec2_emonet_forward.1} parent=4 // pred_region
        // Predicated region
        $region10: #{wav2vec2_emonet_forward.1} parent=8 // pred_check
          _
        $region11: #{wav2vec2_emonet_forward.1} parent=8 // pred_check_branch
          %18 = sbr.rel (0) target = $region13
        $region12: #{wav2vec2_emonet_forward.1} parent=8 // pred_region
          %s19 = scalar_lea.vmem %s0, 8
          %s20 = scalar_lea.vmem [#allocation3], 8
          loop: start=0, step=1, limit=1
          $region14: #{wav2vec2_emonet_forward.1} parent=12 // loop_pre_header
            _
          $region15: #{wav2vec2_emonet_forward.1} parent=12 // loop_header
            %s22 = sphi 0, %s26
            %p23 = scmp.ge.s32.totalorder %s22, 1
            %s27 = sphi %s0, %s0
            %s28 = sphi [#allocation3], [#allocation3]
          $region16: #{wav2vec2_emonet_forward.1} parent=12 // loop_header_branch
            %25 = sbr.rel (%p23) target = $region20
          $region17: #{wav2vec2_emonet_forward.1} parent=12 // loop_body
            %v29 = vld [vmem:[%s27] sm:$0xff]
            %30 = vst [vmem:[%s28] sm:$0xff] %v29
            %v31 = vld [vmem:[%s27 + $0xc] sm:$0xff]
            %32 = vst [vmem:[%s28 + $0xc] sm:$0xff] %v31
            %v33 = vld [vmem:[%s27 + $0x24] sm:$0xff]
            %34 = vst [vmem:[%s28 + $0x18] sm:$0xff] %v33
            %v35 = vld [vmem:[%s27 + $0x30] sm:$0xff]
            %36 = vst [vmem:[%s28 + $0x24] sm:$0xff] %v35
            %v37 = vld [vmem:[%s27 + $0x48] sm:$0xff]
            %38 = vst [vmem:[%s28 + $0x30] sm:$0xff] %v37
            %v39 = vld [vmem:[%s27 + $0x54] sm:$0xff]
            %40 = vst [vmem:[%s28 + $0x3c] sm:$0xff] %v39
            %v41 = vld [vmem:[%s27 + $0x6c] sm:$0xff]
            %42 = vst [vmem:[%s28 + $0x48] sm:$0xff] %v41
            %v43 = vld [vmem:[%s27 + $0x78] sm:$0xff]
            %44 = vst [vmem:[%s28 + $0x54] sm:$0xff] %v43
            %v45 = vld [vmem:[%s27 + $0x90] sm:$0xff]
            %46 = vst [vmem:[%s28 + $0x60] sm:$0xff] %v45
            %v47 = vld [vmem:[%s27 + $0x9c] sm:$0xff]
            %48 = vst [vmem:[%s28 + $0x6c] sm:$0xff] %v47
            %v49 = vld [vmem:[%s27 + $0xb4] sm:$0xff]
            %50 = vst [vmem:[%s28 + $0x78] sm:$0xff] %v49
            %v51 = vld [vmem:[%s27 + $0xc0] sm:$0xff]
            %52 = vst [vmem:[%s28 + $0x84] sm:$0xff] %v51
            %v53 = vld [vmem:[%s27 + $0xd8] sm:$0xff]
            %54 = vst [vmem:[%s28 + $0x90] sm:$0xff] %v53
            %v55 = vld [vmem:[%s27 + $0xe4] sm:$0xff]
            %56 = vst [vmem:[%s28 + $0x9c] sm:$0xff] %v55
            %v57 = vld [vmem:[%s27 + $0xfc] sm:$0xff]
            %58 = vst [vmem:[%s28 + $0xa8] sm:$0xff] %v57
            %v59 = vld [vmem:[%s27 + $0x108] sm:$0xff]
            %60 = vst [vmem:[%s28 + $0xb4] sm:$0xff] %v59
          $region18: #{wav2vec2_emonet_forward.1} parent=12 // loop_footer
            %s26 = sadd.s32 1, %s22
          $region19: #{wav2vec2_emonet_forward.1} parent=12 // loop_footer_branch
            %21 = sbr.rel target = $region15
          $region20: #{wav2vec2_emonet_forward.1} parent=12 // loop_exit
            _
          loop: start=0, step=1, limit=1
          $region21: #{wav2vec2_emonet_forward.1} parent=12 // loop_pre_header
            _
          $region22: #{wav2vec2_emonet_forward.1} parent=12 // loop_header
            %s63 = sphi 0, %s67
            %p64 = scmp.ge.s32.totalorder %s63, 1
            %s68 = sphi %s19, %s19
            %s69 = sphi %s20, %s20
          $region23: #{wav2vec2_emonet_forward.1} parent=12 // loop_header_branch
            %66 = sbr.rel (%p64) target = $region27
          $region24: #{wav2vec2_emonet_forward.1} parent=12 // loop_body
            %v70 = vld [vmem:[%s68] sm:$0xf]
            %71 = vst [vmem:[%s69] sm:$0xf] %v70
            %v72 = vld [vmem:[%s68 + $0xc] sm:$0xf]
            %73 = vst [vmem:[%s69 + $0xc] sm:$0xf] %v72
            %v74 = vld [vmem:[%s68 + $0x24] sm:$0xf]
            %75 = vst [vmem:[%s69 + $0x18] sm:$0xf] %v74
            %v76 = vld [vmem:[%s68 + $0x30] sm:$0xf]
            %77 = vst [vmem:[%s69 + $0x24] sm:$0xf] %v76
            %v78 = vld [vmem:[%s68 + $0x48] sm:$0xf]
            %79 = vst [vmem:[%s69 + $0x30] sm:$0xf] %v78
            %v80 = vld [vmem:[%s68 + $0x54] sm:$0xf]
            %81 = vst [vmem:[%s69 + $0x3c] sm:$0xf] %v80
            %v82 = vld [vmem:[%s68 + $0x6c] sm:$0xf]
            %83 = vst [vmem:[%s69 + $0x48] sm:$0xf] %v82
            %v84 = vld [vmem:[%s68 + $0x78] sm:$0xf]
            %85 = vst [vmem:[%s69 + $0x54] sm:$0xf] %v84
            %v86 = vld [vmem:[%s68 + $0x90] sm:$0xf]
            %87 = vst [vmem:[%s69 + $0x60] sm:$0xf] %v86
            %v88 = vld [vmem:[%s68 + $0x9c] sm:$0xf]
            %89 = vst [vmem:[%s69 + $0x6c] sm:$0xf] %v88
            %v90 = vld [vmem:[%s68 + $0xb4] sm:$0xf]
            %91 = vst [vmem:[%s69 + $0x78] sm:$0xf] %v90
            %v92 = vld [vmem:[%s68 + $0xc0] sm:$0xf]
            %93 = vst [vmem:[%s69 + $0x84] sm:$0xf] %v92
            %v94 = vld [vmem:[%s68 + $0xd8] sm:$0xf]
            %95 = vst [vmem:[%s69 + $0x90] sm:$0xf] %v94
            %v96 = vld [vmem:[%s68 + $0xe4] sm:$0xf]
            %97 = vst [vmem:[%s69 + $0x9c] sm:$0xf] %v96
            %v98 = vld [vmem:[%s68 + $0xfc] sm:$0xf]
            %99 = vst [vmem:[%s69 + $0xa8] sm:$0xf] %v98
            %v100 = vld [vmem:[%s68 + $0x108] sm:$0xf]
            %101 = vst [vmem:[%s69 + $0xb4] sm:$0xf] %v100
          $region25: #{wav2vec2_emonet_forward.1} parent=12 // loop_footer
            %s67 = sadd.s32 1, %s63
          $region26: #{wav2vec2_emonet_forward.1} parent=12 // loop_footer_branch
            %62 = sbr.rel target = $region22
          $region27: #{wav2vec2_emonet_forward.1} parent=12 // loop_exit
            _
        $region13: #{wav2vec2_emonet_forward.1} parent=8 // pred_fallthru
          _
      $region9: #{wav2vec2_emonet_forward.1} parent=4 // pred_fallthru
        _
      %102 = vnop
    $region5: #{wav2vec2_emonet_forward.1} parent=1 // pred_fallthru
      _
    // Predicated region
    $region28: #{wav2vec2_emonet_forward.1} parent=1 // pred_check
      _
    $region29: #{wav2vec2_emonet_forward.1} parent=1 // pred_check_branch
      %104 = sbr.rel (0) target = $region31
    $region30: #{wav2vec2_emonet_forward.1} parent=1 // pred_region
      _
    $region31: #{wav2vec2_emonet_forward.1} parent=1 // pred_fallthru
      _
    // Predicated region
    $region32: #{wav2vec2_emonet_forward.1} parent=1 // pred_check
      _
    $region33: #{wav2vec2_emonet_forward.1} parent=1 // pred_check_branch
      %106 = sbr.rel (0) target = $region35
    $region34: #{wav2vec2_emonet_forward.1} parent=1 // pred_region
      _
    $region35: #{wav2vec2_emonet_forward.1} parent=1 // pred_fallthru
      _
    // Predicated region
    $region36: #{wav2vec2_emonet_forward.1} parent=1 // pred_check
      _
    $region37: #{wav2vec2_emonet_forward.1} parent=1 // pred_check_branch
      %108 = sbr.rel (0) target = $region39
    $region38: #{wav2vec2_emonet_forward.1} parent=1 // pred_region
      _
    $region39: #{wav2vec2_emonet_forward.1} parent=1 // pred_fallthru
      _
    // Predicated region
    $region40: #{wav2vec2_emonet_forward.1} parent=1 // pred_check
      _
    $region41: #{wav2vec2_emonet_forward.1} parent=1 // pred_check_branch
      %110 = sbr.rel (0) target = $region43
    $region42: #{wav2vec2_emonet_forward.1} parent=1 // pred_region
      _
    $region43: #{wav2vec2_emonet_forward.1} parent=1 // pred_fallthru
      _
    // Predicated region
    $region44: #{wav2vec2_emonet_forward.1} parent=1 // pred_check
      _
    $region45: #{wav2vec2_emonet_forward.1} parent=1 // pred_check_branch
      %112 = sbr.rel (0) target = $region47
    $region46: #{wav2vec2_emonet_forward.1} parent=1 // pred_region
      _
    $region47: #{wav2vec2_emonet_forward.1} parent=1 // pred_fallthru
      _
    // Predicated region
    $region48: #{wav2vec2_emonet_forward.1} parent=1 // pred_check
      _
    $region49: #{wav2vec2_emonet_forward.1} parent=1 // pred_check_branch
      %114 = sbr.rel (0) target = $region51
    $region50: #{wav2vec2_emonet_forward.1} parent=1 // pred_region
      _
    $region51: #{wav2vec2_emonet_forward.1} parent=1 // pred_fallthru
      _
    // Predicated region
    $region52: #{wav2vec2_emonet_forward.1} parent=1 // pred_check
      _
    $region53: #{wav2vec2_emonet_forward.1} parent=1 // pred_check_branch
      %116 = sbr.rel (0) target = $region55
    $region54: #{wav2vec2_emonet_forward.1} parent=1 // pred_region
      _
    $region55: #{wav2vec2_emonet_forward.1} parent=1 // pred_fallthru
      _
    // Predicated region
    $region56: #{wav2vec2_emonet_forward.1} parent=1 // pred_check
      _
    $region57: #{wav2vec2_emonet_forward.1} parent=1 // pred_check_branch
      %118 = sbr.rel (0) target = $region59
    $region58: #{wav2vec2_emonet_forward.1} parent=1 // pred_region
      _
    $region59: #{wav2vec2_emonet_forward.1} parent=1 // pred_fallthru
      _
    %p120 = scmp.eq.s32.totalorder 0, 0
    // Predicated region
    $region60: #{wav2vec2_emonet_forward.1} parent=1 // pred_check
      %p121 = pneg %p120
    $region61: #{wav2vec2_emonet_forward.1} parent=1 // pred_check_branch
      %123 = sbr.rel (%p121) target = $region63
    $region62: #{wav2vec2_emonet_forward.1} parent=1 // pred_region
      %124 = vst [vmem:[#allocation2] sm:$0xff] 0.0
      %125 = vst [vmem:[#allocation2 + $0x8] sm:$0xff] 0.0
      %126 = vst [vmem:[#allocation2 + $0x10] sm:$0xff] 0.0
      %127 = vst [vmem:[#allocation2 + $0x18] sm:$0xff] 0.0
      %128 = vst [vmem:[#allocation2 + $0x20] sm:$0xff] 0.0
      %129 = vst [vmem:[#allocation2 + $0x28] sm:$0xff] 0.0
    $region63: #{wav2vec2_emonet_forward.1} parent=1 // pred_fallthru
      _
    %v130 = vld [vmem:[#allocation3] sm:$0xff]
    %v131 = vld [vmem:[#allocation3 + $0x8] sm:$0xf]
    %v132 = vld [vmem:[#allocation3 + $0xc] sm:$0xff]
    %v133 = vld [vmem:[#allocation3 + $0x14] sm:$0xf]
    %v134 = vld [vmem:[#allocation3 + $0x18] sm:$0xff]
    %v135 = vld [vmem:[#allocation3 + $0x20] sm:$0xf]
    %v136 = vld [vmem:[#allocation3 + $0x24] sm:$0xff]
    %v137 = vld [vmem:[#allocation3 + $0x2c] sm:$0xf]
    %v138 = vld [vmem:[#allocation3 + $0x30] sm:$0xff]
    %v139 = vld [vmem:[#allocation3 + $0x38] sm:$0xf]
    %v140 = vld [vmem:[#allocation3 + $0x3c] sm:$0xff]
    %v141 = vld [vmem:[#allocation3 + $0x44] sm:$0xf]
    %v142 = vld [vmem:[#allocation3 + $0x48] sm:$0xff]
    %v143 = vld [vmem:[#allocation3 + $0x50] sm:$0xf]
    %v144 = vld [vmem:[#allocation3 + $0x54] sm:$0xff]
    %v145 = vld [vmem:[#allocation3 + $0x5c] sm:$0xf]
    %v146 = vld [vmem:[#allocation3 + $0x60] sm:$0xff]
    %v147 = vld [vmem:[#allocation3 + $0x68] sm:$0xf]
    %v148 = vld [vmem:[#allocation3 + $0x6c] sm:$0xff]
    %v149 = vld [vmem:[#allocation3 + $0x74] sm:$0xf]
    %v150 = vld [vmem:[#allocation3 + $0x78] sm:$0xff]
    %v151 = vld [vmem:[#allocation3 + $0x80] sm:$0xf]
    %v152 = vld [vmem:[#allocation3 + $0x84] sm:$0xff]
    %v153 = vld [vmem:[#allocation3 + $0x8c] sm:$0xf]
    %v154 = vld [vmem:[#allocation3 + $0x90] sm:$0xff]
    %v155 = vld [vmem:[#allocation3 + $0x98] sm:$0xf]
    %v156 = vld [vmem:[#allocation3 + $0x9c] sm:$0xff]
    %v157 = vld [vmem:[#allocation3 + $0xa4] sm:$0xf]
    %v158 = vld [vmem:[#allocation3 + $0xa8] sm:$0xff]
    %v159 = vld [vmem:[#allocation3 + $0xb0] sm:$0xf]
    %v160 = vld [vmem:[#allocation3 + $0xb4] sm:$0xff]
    %v161 = vld [vmem:[#allocation3 + $0xbc] sm:$0xf]
    %v162 = vld [vmem:[%s1] sm:$0xf]
    %v163 = vld [vmem:[%s1 + $0x4] sm:$0xf]
    %v164 = vld [vmem:[%s1 + $0x8] sm:$0xf]
    %v165 = vld [vmem:[%s1 + $0xc] sm:$0xf]
    %v166 = vld [vmem:[%s1 + $0x10] sm:$0xf]
    %v167 = vld [vmem:[%s1 + $0x14] sm:$0xf]
    %v168 = vld [vmem:[%s1 + $0x18] sm:$0xf]
    %v169 = vld [vmem:[%s1 + $0x1c] sm:$0xf]
    %v170 = vld [vmem:[%s1 + $0x20] sm:$0xf]
    %v171 = vld [vmem:[%s1 + $0x24] sm:$0xf]
    %v172 = vld [vmem:[%s1 + $0x28] sm:$0xf]
    %v173 = vld [vmem:[%s1 + $0x2c] sm:$0xf]
    %v174 = vld [vmem:[%s1 + $0x30] sm:$0xf]
    %v175 = vld [vmem:[%s1 + $0x34] sm:$0xf]
    %v176 = vld [vmem:[%s1 + $0x38] sm:$0xf]
    %v177 = vld [vmem:[%s1 + $0x3c] sm:$0xf]
    %v178 = vld [vmem:[%s3] sm:$0xff]
    %v179 = vld [vmem:[%s3 + $0x8] sm:$0xff]
    %v180 = vld [vmem:[%s3 + $0x10] sm:$0xff]
    %v181 = vld [vmem:[%s3 + $0x18] sm:$0xff]
    %v182 = vld [vmem:[%s3 + $0x20] sm:$0xff]
    %v183 = vld [vmem:[%s3 + $0x28] sm:$0xff]
    %v184 = vld [vmem:[%s3 + $0x30] sm:$0xff]
    %v185 = vld [vmem:[%s3 + $0x38] sm:$0xff]
    %v186 = vld [vmem:[%s3 + $0x40] sm:$0xff]
    %v187 = vld [vmem:[%s3 + $0x48] sm:$0xff]
    %v188 = vld [vmem:[%s3 + $0x50] sm:$0xff]
    %v189 = vld [vmem:[%s3 + $0x58] sm:$0xff]
    %v190 = vld [vmem:[%s3 + $0x60] sm:$0xff]
    %v191 = vld [vmem:[%s3 + $0x68] sm:$0xff]
    %v192 = vld [vmem:[%s3 + $0x70] sm:$0xff]
    %v193 = vld [vmem:[%s3 + $0x78] sm:$0xff]
    %v194 = vld [vmem:[%s3 + $0x80] sm:$0xff]
    %v195 = vld [vmem:[%s3 + $0x88] sm:$0xff]
    %v196 = vld [vmem:[%s3 + $0x90] sm:$0xff]
    %v197 = vld [vmem:[%s3 + $0x98] sm:$0xff]
    %v198 = vld [vmem:[%s3 + $0xa0] sm:$0xff]
    %v199 = vld [vmem:[%s3 + $0xa8] sm:$0xff]
    %v200 = vld [vmem:[%s3 + $0xb0] sm:$0xff]
    %v201 = vld [vmem:[%s3 + $0xb8] sm:$0xff]
    %v202 = vld [vmem:[%s3 + $0xc0] sm:$0xff]
    %v203 = vld [vmem:[%s3 + $0xc8] sm:$0xff]
    %v204 = vld [vmem:[%s3 + $0xd0] sm:$0xff]
    %v205 = vld [vmem:[%s3 + $0xd8] sm:$0xff]
    %v206 = vld [vmem:[%s3 + $0xe0] sm:$0xff]
    %v207 = vld [vmem:[%s3 + $0xe8] sm:$0xff]
    %v208 = vld [vmem:[%s3 + $0xf0] sm:$0xff]
    %v209 = vld [vmem:[%s3 + $0xf8] sm:$0xff]
    %v210 = vld [vmem:[%s3 + $0x100] sm:$0xff]
    %v211 = vld [vmem:[%s3 + $0x108] sm:$0xff]
    %v212 = vld [vmem:[%s3 + $0x110] sm:$0xff]
    %v213 = vld [vmem:[%s3 + $0x118] sm:$0xff]
    %v214 = vld [vmem:[%s3 + $0x120] sm:$0xff]
    %v215 = vld [vmem:[%s3 + $0x128] sm:$0xff]
    %v216 = vld [vmem:[%s3 + $0x130] sm:$0xff]
    %v217 = vld [vmem:[%s3 + $0x138] sm:$0xff]
    %v218 = vld [vmem:[%s3 + $0x140] sm:$0xff]
    %v219 = vld [vmem:[%s3 + $0x148] sm:$0xff]
    %v220 = vld [vmem:[%s3 + $0x150] sm:$0xff]
    %v221 = vld [vmem:[%s3 + $0x158] sm:$0xff]
    %v222 = vld [vmem:[%s3 + $0x160] sm:$0xff]
    %v223 = vld [vmem:[%s3 + $0x168] sm:$0xff]
    %v224 = vld [vmem:[%s3 + $0x170] sm:$0xff]
    %v225 = vld [vmem:[%s3 + $0x178] sm:$0xff]
    %v226 = vld [vmem:[%s3 + $0x180] sm:$0xff]
    %v227 = vld [vmem:[%s3 + $0x188] sm:$0xff]
    %v228 = vld [vmem:[%s3 + $0x190] sm:$0xff]
    %v229 = vld [vmem:[%s3 + $0x198] sm:$0xff]
    %v230 = vld [vmem:[%s3 + $0x1a0] sm:$0xff]
    %v231 = vld [vmem:[%s3 + $0x1a8] sm:$0xff]
    %v232 = vld [vmem:[%s3 + $0x1b0] sm:$0xff]
    %v233 = vld [vmem:[%s3 + $0x1b8] sm:$0xff]
    %v234 = vld [vmem:[%s3 + $0x1c0] sm:$0xff]
    %v235 = vld [vmem:[%s3 + $0x1c8] sm:$0xff]
    %v236 = vld [vmem:[%s3 + $0x1d0] sm:$0xff]
    %v237 = vld [vmem:[%s3 + $0x1d8] sm:$0xff]
    %v238 = vld [vmem:[%s3 + $0x1e0] sm:$0xff]
    %v239 = vld [vmem:[%s3 + $0x1e8] sm:$0xff]
    %v240 = vld [vmem:[%s3 + $0x1f0] sm:$0xff]
    %v241 = vld [vmem:[%s3 + $0x1f8] sm:$0xff]
    %v242 = vld [vmem:[%s3 + $0x200] sm:$0xff]
    %v243 = vld [vmem:[%s3 + $0x208] sm:$0xff]
    %v244 = vld [vmem:[%s3 + $0x210] sm:$0xff]
    %v245 = vld [vmem:[%s3 + $0x218] sm:$0xff]
    %v246 = vld [vmem:[%s3 + $0x220] sm:$0xff]
    %v247 = vld [vmem:[%s3 + $0x228] sm:$0xff]
    %v248 = vld [vmem:[%s3 + $0x230] sm:$0xff]
    %v249 = vld [vmem:[%s3 + $0x238] sm:$0xff]
    %v250 = vld [vmem:[%s3 + $0x240] sm:$0xff]
    %v251 = vld [vmem:[%s3 + $0x248] sm:$0xff]
    %v252 = vld [vmem:[%s3 + $0x250] sm:$0xff]
    %v253 = vld [vmem:[%s3 + $0x258] sm:$0xff]
    %v254 = vld [vmem:[%s3 + $0x260] sm:$0xff]
    %v255 = vld [vmem:[%s3 + $0x268] sm:$0xff]
    %v256 = vld [vmem:[%s3 + $0x270] sm:$0xff]
    %v257 = vld [vmem:[%s3 + $0x278] sm:$0xff]
    %v258 = vld [vmem:[%s3 + $0x280] sm:$0xff]
    %v259 = vld [vmem:[%s3 + $0x288] sm:$0xff]
    %v260 = vld [vmem:[%s3 + $0x290] sm:$0xff]
    %v261 = vld [vmem:[%s3 + $0x298] sm:$0xff]
    %v262 = vld [vmem:[%s3 + $0x2a0] sm:$0xff]
    %v263 = vld [vmem:[%s3 + $0x2a8] sm:$0xff]
    %v264 = vld [vmem:[%s3 + $0x2b0] sm:$0xff]
    %v265 = vld [vmem:[%s3 + $0x2b8] sm:$0xff]
    %v266 = vld [vmem:[%s3 + $0x2c0] sm:$0xff]
    %v267 = vld [vmem:[%s3 + $0x2c8] sm:$0xff]
    %v268 = vld [vmem:[%s3 + $0x2d0] sm:$0xff]
    %v269 = vld [vmem:[%s3 + $0x2d8] sm:$0xff]
    %v270 = vld [vmem:[%s3 + $0x2e0] sm:$0xff]
    %v271 = vld [vmem:[%s3 + $0x2e8] sm:$0xff]
    %v272 = vld [vmem:[%s3 + $0x2f0] sm:$0xff]
    %v273 = vld [vmem:[%s3 + $0x2f8] sm:$0xff]
    %v274 = vld [vmem:[%s3 + $0x300] sm:$0xff]
    %v275 = vld [vmem:[%s3 + $0x308] sm:$0xff]
    %v276 = vld [vmem:[%s3 + $0x310] sm:$0xff]
    %v277 = vld [vmem:[%s3 + $0x318] sm:$0xff]
    %v278 = vld [vmem:[%s3 + $0x320] sm:$0xff]
    %v279 = vld [vmem:[%s3 + $0x328] sm:$0xff]
    %v280 = vld [vmem:[%s3 + $0x330] sm:$0xff]
    %v281 = vld [vmem:[%s3 + $0x338] sm:$0xff]
    %v282 = vld [vmem:[%s3 + $0x340] sm:$0xff]
    %v283 = vld [vmem:[%s3 + $0x348] sm:$0xff]
    %v284 = vld [vmem:[%s3 + $0x350] sm:$0xff]
    %v285 = vld [vmem:[%s3 + $0x358] sm:$0xff]
    %v286 = vld [vmem:[%s3 + $0x360] sm:$0xff]
    %v287 = vld [vmem:[%s3 + $0x368] sm:$0xff]
    %v288 = vld [vmem:[%s3 + $0x370] sm:$0xff]
    %v289 = vld [vmem:[%s3 + $0x378] sm:$0xff]
    %v290 = vld [vmem:[%s3 + $0x380] sm:$0xff]
    %v291 = vld [vmem:[%s3 + $0x388] sm:$0xff]
    %v292 = vld [vmem:[%s3 + $0x390] sm:$0xff]
    %v293 = vld [vmem:[%s3 + $0x398] sm:$0xff]
    %v294 = vld [vmem:[%s3 + $0x3a0] sm:$0xff]
    %v295 = vld [vmem:[%s3 + $0x3a8] sm:$0xff]
    %v296 = vld [vmem:[%s3 + $0x3b0] sm:$0xff]
    %v297 = vld [vmem:[%s3 + $0x3b8] sm:$0xff]
    %v298 = vld [vmem:[%s4] sm:$0xff]
    %v299 = vld [vmem:[%s4 + $0x8] sm:$0xff]
    %v300 = vld [vmem:[%s4 + $0x10] sm:$0xff]
    %v301 = vld [vmem:[%s4 + $0x18] sm:$0xff]
    %v302 = vld [vmem:[%s4 + $0x20] sm:$0xff]
    %v303 = vld [vmem:[%s4 + $0x28] sm:$0xff]
    %v304 = vld [vmem:[%s4 + $0x30] sm:$0xff]
    %v305 = vld [vmem:[%s4 + $0x38] sm:$0xff]
    %v306 = vld [vmem:[%s4 + $0x40] sm:$0xff]
    %v307 = vld [vmem:[%s4 + $0x48] sm:$0xff]
    %v308 = vld [vmem:[%s4 + $0x50] sm:$0xff]
    %v309 = vld [vmem:[%s4 + $0x58] sm:$0xff]
    %v310 = vld [vmem:[%s4 + $0x60] sm:$0xff]
    %v311 = vld [vmem:[%s4 + $0x68] sm:$0xff]
    %v312 = vld [vmem:[%s4 + $0x70] sm:$0xff]
    %v313 = vld [vmem:[%s4 + $0x78] sm:$0xff]
    %v314 = vld [vmem:[%s4 + $0x80] sm:$0xff]
    %v315 = vld [vmem:[%s4 + $0x88] sm:$0xff]
    %v316 = vld [vmem:[%s4 + $0x90] sm:$0xff]
    %v317 = vld [vmem:[%s4 + $0x98] sm:$0xff]
    %v318 = vld [vmem:[%s4 + $0xa0] sm:$0xff]
    %v319 = vld [vmem:[%s4 + $0xa8] sm:$0xff]
    %v320 = vld [vmem:[%s4 + $0xb0] sm:$0xff]
    %v321 = vld [vmem:[%s4 + $0xb8] sm:$0xff]
    %v322 = vld [vmem:[%s4 + $0xc0] sm:$0xff]
    %v323 = vld [vmem:[%s4 + $0xc8] sm:$0xff]
    %v324 = vld [vmem:[%s4 + $0xd0] sm:$0xff]
    %v325 = vld [vmem:[%s4 + $0xd8] sm:$0xff]
    %v326 = vld [vmem:[%s4 + $0xe0] sm:$0xff]
    %v327 = vld [vmem:[%s4 + $0xe8] sm:$0xff]
    %v344 = vunpack.c.l.b16 %v162
    %v345 = vunpack.c.l.b16 %v163
    %v346 = vunpack.c.l.b16 %v164
    %v347 = vunpack.c.l.b16 %v165
    %v348 = vunpack.c.l.b16 %v166
    %v349 = vunpack.c.l.b16 %v167
    %v350 = vunpack.c.l.b16 %v168
    %v351 = vunpack.c.l.b16 %v169
    %v352 = vunpack.c.l.b16 %v170
    %v353 = vunpack.c.l.b16 %v171
    %v354 = vunpack.c.l.b16 %v172
    %v355 = vunpack.c.l.b16 %v173
    %v356 = vunpack.c.l.b16 %v174
    %v357 = vunpack.c.l.b16 %v175
    %v358 = vunpack.c.l.b16 %v176
    %v359 = vunpack.c.l.b16 %v177
    %v360 = vpack.c.b16 %v345, %v344
    %v361 = vpack.c.b16 %v347, %v346
    %v362 = vpack.c.b16 %v349, %v348
    %v363 = vpack.c.b16 %v351, %v350
    %v364 = vpack.c.b16 %v353, %v352
    %v365 = vpack.c.b16 %v355, %v354
    %v366 = vpack.c.b16 %v357, %v356
    %v367 = vpack.c.b16 %v359, %v358
    %v398 = vunpack.c.l.b16 %v298
    %v399 = vunpack.c.h.b16 %v298
    %v400 = vunpack.c.l.b16 %v299
    %v401 = vunpack.c.h.b16 %v299
    %v402 = vunpack.c.l.b16 %v300
    %v403 = vunpack.c.h.b16 %v300
    %v404 = vunpack.c.l.b16 %v301
    %v405 = vunpack.c.h.b16 %v301
    %v406 = vunpack.c.l.b16 %v302
    %v407 = vunpack.c.h.b16 %v302
    %v408 = vunpack.c.l.b16 %v303
    %v409 = vunpack.c.h.b16 %v303
    %v410 = vunpack.c.l.b16 %v304
    %v411 = vunpack.c.h.b16 %v304
    %v412 = vunpack.c.l.b16 %v305
    %v413 = vunpack.c.h.b16 %v305
    %v414 = vunpack.c.l.b16 %v306
    %v415 = vunpack.c.h.b16 %v306
    %v416 = vunpack.c.l.b16 %v307
    %v417 = vunpack.c.h.b16 %v307
    %v418 = vunpack.c.l.b16 %v308
    %v419 = vunpack.c.h.b16 %v308
    %v420 = vunpack.c.l.b16 %v309
    %v421 = vunpack.c.h.b16 %v309
    %v422 = vunpack.c.l.b16 %v310
    %v423 = vunpack.c.h.b16 %v310
    %v424 = vunpack.c.l.b16 %v311
    %v425 = vunpack.c.h.b16 %v311
    %v426 = vunpack.c.l.b16 %v312
    %v427 = vunpack.c.h.b16 %v312
    %v428 = vunpack.c.l.b16 %v313
    %v429 = vunpack.c.h.b16 %v313
    %v430 = vunpack.c.l.b16 %v314
    %v431 = vunpack.c.h.b16 %v314
    %v432 = vunpack.c.l.b16 %v315
    %v433 = vunpack.c.h.b16 %v315
    %v434 = vunpack.c.l.b16 %v316
    %v435 = vunpack.c.h.b16 %v316
    %v436 = vunpack.c.l.b16 %v317
    %v437 = vunpack.c.h.b16 %v317
    %v438 = vunpack.c.l.b16 %v318
    %v439 = vunpack.c.h.b16 %v318
    %v440 = vunpack.c.l.b16 %v319
    %v441 = vunpack.c.h.b16 %v319
    %v442 = vunpack.c.l.b16 %v320
    %v443 = vunpack.c.h.b16 %v320
    %v444 = vunpack.c.l.b16 %v321
    %v445 = vunpack.c.h.b16 %v321
    %v446 = vunpack.c.l.b16 %v322
    %v447 = vunpack.c.h.b16 %v322
    %v448 = vunpack.c.l.b16 %v323
    %v449 = vunpack.c.h.b16 %v323
    %v450 = vunpack.c.l.b16 %v324
    %v451 = vunpack.c.h.b16 %v324
    %v452 = vunpack.c.l.b16 %v325
    %v453 = vunpack.c.h.b16 %v325
    %v454 = vunpack.c.l.b16 %v326
    %v455 = vunpack.c.h.b16 %v326
    %v456 = vunpack.c.l.b16 %v327
    %v457 = vunpack.c.h.b16 %v327
    %v458 = vpack.c.b16 %v404, %v398
    %v459 = vpack.c.b16 %v405, %v399
    %v460 = vpack.c.b16 %v406, %v400
    %v461 = vpack.c.b16 %v407, %v401
    %v462 = vpack.c.b16 %v408, %v402
    %v463 = vpack.c.b16 %v409, %v403
    %v464 = vpack.c.b16 %v416, %v410
    %v465 = vpack.c.b16 %v417, %v411
    %v466 = vpack.c.b16 %v418, %v412
    %v467 = vpack.c.b16 %v419, %v413
    %v468 = vpack.c.b16 %v420, %v414
    %v469 = vpack.c.b16 %v421, %v415
    %v470 = vpack.c.b16 %v428, %v422
    %v471 = vpack.c.b16 %v429, %v423
    %v472 = vpack.c.b16 %v430, %v424
    %v473 = vpack.c.b16 %v431, %v425
    %v474 = vpack.c.b16 %v432, %v426
    %v475 = vpack.c.b16 %v433, %v427
    %v476 = vpack.c.b16 %v440, %v434
    %v477 = vpack.c.b16 %v441, %v435
    %v478 = vpack.c.b16 %v442, %v436
    %v479 = vpack.c.b16 %v443, %v437
    %v480 = vpack.c.b16 %v444, %v438
    %v481 = vpack.c.b16 %v445, %v439
    %v482 = vpack.c.b16 %v452, %v446
    %v483 = vpack.c.b16 %v453, %v447
    %v484 = vpack.c.b16 %v454, %v448
    %v485 = vpack.c.b16 %v455, %v449
    %v486 = vpack.c.b16 %v456, %v450
    %v487 = vpack.c.b16 %v457, %v451
    %vm518 = vcmask 654336
    %v520 = vsel %vm518, %v360, 0
    %v523 = vsel %vm518, %v361, 0
    %v526 = vsel %vm518, %v362, 0
    %v529 = vsel %vm518, %v363, 0
    %v532 = vsel %vm518, %v364, 0
    %v535 = vsel %vm518, %v365, 0
    %v538 = vsel %vm518, %v366, 0
    %v541 = vsel %vm518, %v367, 0
    %543 = vmatprep.subr.bf16.mxu0 %v459
    %544 = vmatpush1.bf16.msra.mxu0 %v458
    %545 = vmatprep.subr.bf16.mxu0 %v465
    %546 = vmatpush1.bf16.msra.mxu0 %v464
    %547 = vmatprep.subr.bf16.mxu0 %v471
    %548 = vmatpush1.bf16.msra.mxu0 %v470
    %549 = vmatprep.subr.bf16.mxu0 %v477
    %550 = vmatpush1.bf16.msra.mxu0 %v476
    %551 = vmatprep.subr.bf16.mxu0 %v483
    %552 = vmatpush1.bf16.msra.mxu0 %v482
    %553 = vmatprep.subr.bf16.mxu0 0
    %554 = vmatpush1.bf16.msra.mxu0 0
    %555 = vmatprep.subr.bf16.mxu0 0
    %556 = vmatpush1.bf16.msra.mxu0 0
    %557 = vmatprep.subr.bf16.mxu0 0
    %558 = vmatpush1.bf16.msra.mxu0 0
    %559 = vmatprep.subr.bf16.mxu0 0
    %560 = vmatpush1.bf16.msra.mxu0 0
    %561 = vmatprep.subr.bf16.mxu0 0
    %562 = vmatpush1.bf16.msra.mxu0 0
    %563 = vmatprep.subr.bf16.mxu0 0
    %564 = vmatpush1.bf16.msra.mxu0 0
    %565 = vmatprep.subr.bf16.mxu0 0
    %566 = vmatpush1.bf16.msra.mxu0 0
    %567 = vmatprep.subr.bf16.mxu0 0
    %568 = vmatpush1.bf16.msra.mxu0 0
    %569 = vmatprep.subr.bf16.mxu0 0
    %570 = vmatpush1.bf16.msra.mxu0 0
    %571 = vmatprep.subr.bf16.mxu0 0
    %572 = vmatpush1.bf16.msra.mxu0 0
    %573 = vmatprep.subr.bf16.mxu0 0
    %574 = vmatpush1.bf16.msra.mxu0 0
    %575 = vmatprep.mubr.bf16.mxu0 0
    %576 = vmatmul.mubr.bf16.gmra.mrb[0].mxu0 %v520
    %v577 = vpop.f32.mrb[0].mxu0
    %v578 = vadd.f32 0.0, %v577
    %v579 = vpop.f32.mrb[0].mxu0
    %v580 = vadd.f32 0.0, %v579
    %v581 = vpop.f32.mrb[0].mxu0
    %v582 = vadd.f32 0.0, %v581
    %v583 = vpop.f32.mrb[0].mxu0
    %v584 = vadd.f32 0.0, %v583
    %585 = vmatprep.mubr.bf16.mxu0 0
    %586 = vmatmul.mubr.bf16.gmra.mrb[0].mxu0 %v523
    %v587 = vpop.f32.mrb[0].mxu0
    %v588 = vadd.f32 0.0, %v587
    %v589 = vpop.f32.mrb[0].mxu0
    %v590 = vadd.f32 0.0, %v589
    %v591 = vpop.f32.mrb[0].mxu0
    %v592 = vadd.f32 0.0, %v591
    %v593 = vpop.f32.mrb[0].mxu0
    %v594 = vadd.f32 0.0, %v593
    %595 = vmatprep.mubr.bf16.mxu0 0
    %596 = vmatmul.mubr.bf16.gmra.mrb[0].mxu0 %v526
    %v597 = vpop.f32.mrb[0].mxu0
    %v598 = vadd.f32 0.0, %v597
    %v599 = vpop.f32.mrb[0].mxu0
    %v600 = vadd.f32 0.0, %v599
    %v601 = vpop.f32.mrb[0].mxu0
    %v602 = vadd.f32 0.0, %v601
    %v603 = vpop.f32.mrb[0].mxu0
    %v604 = vadd.f32 0.0, %v603
    %605 = vmatprep.mubr.bf16.mxu0 0
    %606 = vmatmul.mubr.bf16.gmra.mrb[0].mxu0 %v529
    %v607 = vpop.f32.mrb[0].mxu0
    %v608 = vadd.f32 0.0, %v607
    %v609 = vpop.f32.mrb[0].mxu0
    %v610 = vadd.f32 0.0, %v609
    %v611 = vpop.f32.mrb[0].mxu0
    %v612 = vadd.f32 0.0, %v611
    %v613 = vpop.f32.mrb[0].mxu0
    %v614 = vadd.f32 0.0, %v613
    %615 = vmatprep.mubr.bf16.mxu0 0
    %616 = vmatmul.mubr.bf16.gmra.mrb[0].mxu0 %v532
    %v617 = vpop.f32.mrb[0].mxu0
    %v618 = vadd.f32 0.0, %v617
    %v619 = vpop.f32.mrb[0].mxu0
    %v620 = vadd.f32 0.0, %v619
    %v621 = vpop.f32.mrb[0].mxu0
    %v622 = vadd.f32 0.0, %v621
    %v623 = vpop.f32.mrb[0].mxu0
    %v624 = vadd.f32 0.0, %v623
    %625 = vmatprep.mubr.bf16.mxu0 0
    %626 = vmatmul.mubr.bf16.gmra.mrb[0].mxu0 %v535
    %v627 = vpop.f32.mrb[0].mxu0
    %v628 = vadd.f32 0.0, %v627
    %v629 = vpop.f32.mrb[0].mxu0
    %v630 = vadd.f32 0.0, %v629
    %v631 = vpop.f32.mrb[0].mxu0
    %v632 = vadd.f32 0.0, %v631
    %v633 = vpop.f32.mrb[0].mxu0
    %v634 = vadd.f32 0.0, %v633
    %635 = vmatprep.mubr.bf16.mxu0 0
    %636 = vmatmul.mubr.bf16.gmra.mrb[0].mxu0 %v538
    %v637 = vpop.f32.mrb[0].mxu0
    %v638 = vadd.f32 0.0, %v637
    %v639 = vpop.f32.mrb[0].mxu0
    %v640 = vadd.f32 0.0, %v639
    %v641 = vpop.f32.mrb[0].mxu0
    %v642 = vadd.f32 0.0, %v641
    %v643 = vpop.f32.mrb[0].mxu0
    %v644 = vadd.f32 0.0, %v643
    %645 = vmatprep.mubr.bf16.mxu0 0
    %646 = vmatmul.mubr.bf16.gmra.mrb[0].mxu0 %v541
    %v647 = vpop.f32.mrb[0].mxu0
    %v648 = vadd.f32 0.0, %v647
    %v649 = vpop.f32.mrb[0].mxu0
    %v650 = vadd.f32 0.0, %v649
    %v651 = vpop.f32.mrb[0].mxu0
    %v652 = vadd.f32 0.0, %v651
    %v653 = vpop.f32.mrb[0].mxu0
    %v654 = vadd.f32 0.0, %v653
    %655 = vdwg.mxu0
    %656 = vmatprep.subr.bf16.mxu0 %v461
    %657 = vmatpush1.bf16.msra.mxu0 %v460
    %658 = vmatprep.subr.bf16.mxu0 %v467
    %659 = vmatpush1.bf16.msra.mxu0 %v466
    %660 = vmatprep.subr.bf16.mxu0 %v473
    %661 = vmatpush1.bf16.msra.mxu0 %v472
    %662 = vmatprep.subr.bf16.mxu0 %v479
    %663 = vmatpush1.bf16.msra.mxu0 %v478
    %664 = vmatprep.subr.bf16.mxu0 %v485
    %665 = vmatpush1.bf16.msra.mxu0 %v484
    %666 = vmatprep.subr.bf16.mxu0 0
    %667 = vmatpush1.bf16.msra.mxu0 0
    %668 = vmatprep.subr.bf16.mxu0 0
    %669 = vmatpush1.bf16.msra.mxu0 0
    %670 = vmatprep.subr.bf16.mxu0 0
    %671 = vmatpush1.bf16.msra.mxu0 0
    %672 = vmatprep.subr.bf16.mxu0 0
    %673 = vmatpush1.bf16.msra.mxu0 0
    %674 = vmatprep.subr.bf16.mxu0 0
    %675 = vmatpush1.bf16.msra.mxu0 0
    %676 = vmatprep.subr.bf16.mxu0 0
    %677 = vmatpush1.bf16.msra.mxu0 0
    %678 = vmatprep.subr.bf16.mxu0 0
    %679 = vmatpush1.bf16.msra.mxu0 0
    %680 = vmatprep.subr.bf16.mxu0 0
    %681 = vmatpush1.bf16.msra.mxu0 0
    %682 = vmatprep.subr.bf16.mxu0 0
    %683 = vmatpush1.bf16.msra.mxu0 0
    %684 = vmatprep.subr.bf16.mxu0 0
    %685 = vmatpush1.bf16.msra.mxu0 0
    %686 = vmatprep.subr.bf16.mxu0 0
    %687 = vmatpush1.bf16.msra.mxu0 0
    %688 = vmatprep.mubr.bf16.mxu0 0
    %689 = vmatmul.mubr.bf16.gmra.mrb[0].mxu0 %v520
    %v690 = vpop.f32.mrb[0].mxu0
    %v691 = vadd.f32 0.0, %v690
    %v692 = vpop.f32.mrb[0].mxu0
    %v693 = vadd.f32 0.0, %v692
    %v694 = vpop.f32.mrb[0].mxu0
    %v695 = vadd.f32 0.0, %v694
    %v696 = vpop.f32.mrb[0].mxu0
    %v697 = vadd.f32 0.0, %v696
    %698 = vmatprep.mubr.bf16.mxu0 0
    %699 = vmatmul.mubr.bf16.gmra.mrb[0].mxu0 %v523
    %v700 = vpop.f32.mrb[0].mxu0
    %v701 = vadd.f32 0.0, %v700
    %v702 = vpop.f32.mrb[0].mxu0
    %v703 = vadd.f32 0.0, %v702
    %v704 = vpop.f32.mrb[0].mxu0
    %v705 = vadd.f32 0.0, %v704
    %v706 = vpop.f32.mrb[0].mxu0
    %v707 = vadd.f32 0.0, %v706
    %708 = vmatprep.mubr.bf16.mxu0 0
    %709 = vmatmul.mubr.bf16.gmra.mrb[0].mxu0 %v526
    %v710 = vpop.f32.mrb[0].mxu0
    %v711 = vadd.f32 0.0, %v710
    %v712 = vpop.f32.mrb[0].mxu0
    %v713 = vadd.f32 0.0, %v712
    %v714 = vpop.f32.mrb[0].mxu0
    %v715 = vadd.f32 0.0, %v714
    %v716 = vpop.f32.mrb[0].mxu0
    %v717 = vadd.f32 0.0, %v716
    %718 = vmatprep.mubr.bf16.mxu0 0
    %719 = vmatmul.mubr.bf16.gmra.mrb[0].mxu0 %v529
    %v720 = vpop.f32.mrb[0].mxu0
    %v721 = vadd.f32 0.0, %v720
    %v722 = vpop.f32.mrb[0].mxu0
    %v723 = vadd.f32 0.0, %v722
    %v724 = vpop.f32.mrb[0].mxu0
    %v725 = vadd.f32 0.0, %v724
    %v726 = vpop.f32.mrb[0].mxu0
    %v727 = vadd.f32 0.0, %v726
    %728 = vmatprep.mubr.bf16.mxu0 0
    %729 = vmatmul.mubr.bf16.gmra.mrb[0].mxu0 %v532
    %v730 = vpop.f32.mrb[0].mxu0
    %v731 = vadd.f32 0.0, %v730
    %v732 = vpop.f32.mrb[0].mxu0
    %v733 = vadd.f32 0.0, %v732
    %v734 = vpop.f32.mrb[0].mxu0
    %v735 = vadd.f32 0.0, %v734
    %v736 = vpop.f32.mrb[0].mxu0
    %v737 = vadd.f32 0.0, %v736
    %738 = vmatprep.mubr.bf16.mxu0 0
    %739 = vmatmul.mubr.bf16.gmra.mrb[0].mxu0 %v535
    %v740 = vpop.f32.mrb[0].mxu0
    %v741 = vadd.f32 0.0, %v740
    %v742 = vpop.f32.mrb[0].mxu0
    %v743 = vadd.f32 0.0, %v742
    %v744 = vpop.f32.mrb[0].mxu0
    %v745 = vadd.f32 0.0, %v744
    %v746 = vpop.f32.mrb[0].mxu0
    %v747 = vadd.f32 0.0, %v746
    %748 = vmatprep.mubr.bf16.mxu0 0
    %749 = vmatmul.mubr.bf16.gmra.mrb[0].mxu0 %v538
    %v750 = vpop.f32.mrb[0].mxu0
    %v751 = vadd.f32 0.0, %v750
    %v752 = vpop.f32.mrb[0].mxu0
    %v753 = vadd.f32 0.0, %v752
    %v754 = vpop.f32.mrb[0].mxu0
    %v755 = vadd.f32 0.0, %v754
    %v756 = vpop.f32.mrb[0].mxu0
    %v757 = vadd.f32 0.0, %v756
    %758 = vmatprep.mubr.bf16.mxu0 0
    %759 = vmatmul.mubr.bf16.gmra.mrb[0].mxu0 %v541
    %v760 = vpop.f32.mrb[0].mxu0
    %v761 = vadd.f32 0.0, %v760
    %v762 = vpop.f32.mrb[0].mxu0
    %v763 = vadd.f32 0.0, %v762
    %v764 = vpop.f32.mrb[0].mxu0
    %v765 = vadd.f32 0.0, %v764
    %v766 = vpop.f32.mrb[0].mxu0
    %v767 = vadd.f32 0.0, %v766
    %768 = vdwg.mxu0
    %769 = vmatprep.subr.bf16.mxu0 %v463
    %770 = vmatpush1.bf16.msra.mxu0 %v462
    %771 = vmatprep.subr.bf16.mxu0 %v469
    %772 = vmatpush1.bf16.msra.mxu0 %v468
    %773 = vmatprep.subr.bf16.mxu0 %v475
    %774 = vmatpush1.bf16.msra.mxu0 %v474
    %775 = vmatprep.subr.bf16.mxu0 %v481
    %776 = vmatpush1.bf16.msra.mxu0 %v480
    %777 = vmatprep.subr.bf16.mxu0 %v487
    %778 = vmatpush1.bf16.msra.mxu0 %v486
    %779 = vmatprep.subr.bf16.mxu0 0
    %780 = vmatpush1.bf16.msra.mxu0 0
    %781 = vmatprep.subr.bf16.mxu0 0
    %782 = vmatpush1.bf16.msra.mxu0 0
    %783 = vmatprep.subr.bf16.mxu0 0
    %784 = vmatpush1.bf16.msra.mxu0 0
    %785 = vmatprep.subr.bf16.mxu0 0
    %786 = vmatpush1.bf16.msra.mxu0 0
    %787 = vmatprep.subr.bf16.mxu0 0
    %788 = vmatpush1.bf16.msra.mxu0 0
    %789 = vmatprep.subr.bf16.mxu0 0
    %790 = vmatpush1.bf16.msra.mxu0 0
    %791 = vmatprep.subr.bf16.mxu0 0
    %792 = vmatpush1.bf16.msra.mxu0 0
    %793 = vmatprep.subr.bf16.mxu0 0
    %794 = vmatpush1.bf16.msra.mxu0 0
    %795 = vmatprep.subr.bf16.mxu0 0
    %796 = vmatpush1.bf16.msra.mxu0 0
    %797 = vmatprep.subr.bf16.mxu0 0
    %798 = vmatpush1.bf16.msra.mxu0 0
    %799 = vmatprep.subr.bf16.mxu0 0
    %800 = vmatpush1.bf16.msra.mxu0 0
    %801 = vmatprep.mubr.bf16.mxu0 0
    %802 = vmatmul.mubr.bf16.gmra.mrb[0].mxu0 %v520
    %v803 = vpop.f32.mrb[0].mxu0
    %v804 = vadd.f32 0.0, %v803
    %v805 = vpop.f32.mrb[0].mxu0
    %v806 = vadd.f32 0.0, %v805
    %v807 = vpop.f32.mrb[0].mxu0
    %v808 = vadd.f32 0.0, %v807
    %v809 = vpop.f32.mrb[0].mxu0
    %v810 = vadd.f32 0.0, %v809
    %811 = vmatprep.mubr.bf16.mxu0 0
    %812 = vmatmul.mubr.bf16.gmra.mrb[0].mxu0 %v523
    %v813 = vpop.f32.mrb[0].mxu0
    %v814 = vadd.f32 0.0, %v813
    %v815 = vpop.f32.mrb[0].mxu0
    %v816 = vadd.f32 0.0, %v815
    %v817 = vpop.f32.mrb[0].mxu0
    %v818 = vadd.f32 0.0, %v817
    %v819 = vpop.f32.mrb[0].mxu0
    %v820 = vadd.f32 0.0, %v819
    %821 = vmatprep.mubr.bf16.mxu0 0
    %822 = vmatmul.mubr.bf16.gmra.mrb[0].mxu0 %v526
    %v823 = vpop.f32.mrb[0].mxu0
    %v824 = vadd.f32 0.0, %v823
    %v825 = vpop.f32.mrb[0].mxu0
    %v826 = vadd.f32 0.0, %v825
    %v827 = vpop.f32.mrb[0].mxu0
    %v828 = vadd.f32 0.0, %v827
    %v829 = vpop.f32.mrb[0].mxu0
    %v830 = vadd.f32 0.0, %v829
    %831 = vmatprep.mubr.bf16.mxu0 0
    %832 = vmatmul.mubr.bf16.gmra.mrb[0].mxu0 %v529
    %v833 = vpop.f32.mrb[0].mxu0
    %v834 = vadd.f32 0.0, %v833
    %v835 = vpop.f32.mrb[0].mxu0
    %v836 = vadd.f32 0.0, %v835
    %v837 = vpop.f32.mrb[0].mxu0
    %v838 = vadd.f32 0.0, %v837
    %v839 = vpop.f32.mrb[0].mxu0
    %v840 = vadd.f32 0.0, %v839
    %841 = vmatprep.mubr.bf16.mxu0 0
    %842 = vmatmul.mubr.bf16.gmra.mrb[0].mxu0 %v532
    %v843 = vpop.f32.mrb[0].mxu0
    %v844 = vadd.f32 0.0, %v843
    %v845 = vpop.f32.mrb[0].mxu0
    %v846 = vadd.f32 0.0, %v845
    %v847 = vpop.f32.mrb[0].mxu0
    %v848 = vadd.f32 0.0, %v847
    %v849 = vpop.f32.mrb[0].mxu0
    %v850 = vadd.f32 0.0, %v849
    %851 = vmatprep.mubr.bf16.mxu0 0
    %852 = vmatmul.mubr.bf16.gmra.mrb[0].mxu0 %v535
    %v853 = vpop.f32.mrb[0].mxu0
    %v854 = vadd.f32 0.0, %v853
    %v855 = vpop.f32.mrb[0].mxu0
    %v856 = vadd.f32 0.0, %v855
    %v857 = vpop.f32.mrb[0].mxu0
    %v858 = vadd.f32 0.0, %v857
    %v859 = vpop.f32.mrb[0].mxu0
    %v860 = vadd.f32 0.0, %v859
    %861 = vmatprep.mubr.bf16.mxu0 0
    %862 = vmatmul.mubr.bf16.gmra.mrb[0].mxu0 %v538
    %v863 = vpop.f32.mrb[0].mxu0
    %v864 = vadd.f32 0.0, %v863
    %v865 = vpop.f32.mrb[0].mxu0
    %v866 = vadd.f32 0.0, %v865
    %v867 = vpop.f32.mrb[0].mxu0
    %v868 = vadd.f32 0.0, %v867
    %v869 = vpop.f32.mrb[0].mxu0
    %v870 = vadd.f32 0.0, %v869
    %871 = vmatprep.mubr.bf16.mxu0 0
    %872 = vmatmul.mubr.bf16.gmra.mrb[0].mxu0 %v541
    %v873 = vpop.f32.mrb[0].mxu0
    %v874 = vadd.f32 0.0, %v873
    %v875 = vpop.f32.mrb[0].mxu0
    %v876 = vadd.f32 0.0, %v875
    %v877 = vpop.f32.mrb[0].mxu0
    %v878 = vadd.f32 0.0, %v877
    %v879 = vpop.f32.mrb[0].mxu0
    %v880 = vadd.f32 0.0, %v879
    %881 = vdwg.mxu0
    %v914 = vunpack.c.l.b16 %v130
    %v915 = vunpack.c.h.b16 %v130
    %v916 = vunpack.c.l.b16 %v131
    %v917 = vunpack.c.l.b16 %v132
    %v918 = vunpack.c.h.b16 %v132
    %v919 = vunpack.c.l.b16 %v133
    %v920 = vunpack.c.l.b16 %v134
    %v921 = vunpack.c.h.b16 %v134
    %v922 = vunpack.c.l.b16 %v135
    %v923 = vunpack.c.l.b16 %v136
    %v924 = vunpack.c.h.b16 %v136
    %v925 = vunpack.c.l.b16 %v137
    %v926 = vunpack.c.l.b16 %v138
    %v927 = vunpack.c.h.b16 %v138
    %v928 = vunpack.c.l.b16 %v139
    %v929 = vunpack.c.l.b16 %v140
    %v930 = vunpack.c.h.b16 %v140
    %v931 = vunpack.c.l.b16 %v141
    %v932 = vunpack.c.l.b16 %v142
    %v933 = vunpack.c.h.b16 %v142
    %v934 = vunpack.c.l.b16 %v143
    %v935 = vunpack.c.l.b16 %v144
    %v936 = vunpack.c.h.b16 %v144
    %v937 = vunpack.c.l.b16 %v145
    %v938 = vunpack.c.l.b16 %v146
    %v939 = vunpack.c.h.b16 %v146
    %v940 = vunpack.c.l.b16 %v147
    %v941 = vunpack.c.l.b16 %v148
    %v942 = vunpack.c.h.b16 %v148
    %v943 = vunpack.c.l.b16 %v149
    %v944 = vunpack.c.l.b16 %v150
    %v945 = vunpack.c.h.b16 %v150
    %v946 = vunpack.c.l.b16 %v151
    %v947 = vunpack.c.l.b16 %v152
    %v948 = vunpack.c.h.b16 %v152
    %v949 = vunpack.c.l.b16 %v153
    %v950 = vunpack.c.l.b16 %v154
    %v951 = vunpack.c.h.b16 %v154
    %v952 = vunpack.c.l.b16 %v155
    %v953 = vunpack.c.l.b16 %v156
    %v954 = vunpack.c.h.b16 %v156
    %v955 = vunpack.c.l.b16 %v157
    %v956 = vunpack.c.l.b16 %v158
    %v957 = vunpack.c.h.b16 %v158
    %v958 = vunpack.c.l.b16 %v159
    %v959 = vunpack.c.l.b16 %v160
    %v960 = vunpack.c.h.b16 %v160
    %v961 = vunpack.c.l.b16 %v161
    %v962 = vpack.c.b16 %v917, %v914
    %v963 = vpack.c.b16 %v918, %v915
    %v964 = vpack.c.b16 %v919, %v916
    %v965 = vpack.c.b16 %v923, %v920
    %v966 = vpack.c.b16 %v924, %v921
    %v967 = vpack.c.b16 %v925, %v922
    %v968 = vpack.c.b16 %v929, %v926
    %v969 = vpack.c.b16 %v930, %v927
    %v970 = vpack.c.b16 %v931, %v928
    %v971 = vpack.c.b16 %v935, %v932
    %v972 = vpack.c.b16 %v936, %v933
    %v973 = vpack.c.b16 %v937, %v934
    %v974 = vpack.c.b16 %v941, %v938
    %v975 = vpack.c.b16 %v942, %v939
    %v976 = vpack.c.b16 %v943, %v940
    %v977 = vpack.c.b16 %v947, %v944
    %v978 = vpack.c.b16 %v948, %v945
    %v979 = vpack.c.b16 %v949, %v946
    %v980 = vpack.c.b16 %v953, %v950
    %v981 = vpack.c.b16 %v954, %v951
    %v982 = vpack.c.b16 %v955, %v952
    %v983 = vpack.c.b16 %v959, %v956
    %v984 = vpack.c.b16 %v960, %v957
    %v985 = vpack.c.b16 %v961, %v958
    %v1122 = vunpack.c.l.b16 %v178
    %v1123 = vunpack.c.h.b16 %v178
    %v1124 = vunpack.c.l.b16 %v179
    %v1125 = vunpack.c.h.b16 %v179
    %v1126 = vunpack.c.l.b16 %v180
    %v1127 = vunpack.c.h.b16 %v180
    %v1128 = vunpack.c.l.b16 %v181
    %v1129 = vunpack.c.h.b16 %v181
    %v1130 = vunpack.c.l.b16 %v182
    %v1131 = vunpack.c.h.b16 %v182
    %v1132 = vunpack.c.l.b16 %v183
    %v1133 = vunpack.c.h.b16 %v183
    %v1134 = vunpack.c.l.b16 %v184
    %v1135 = vunpack.c.h.b16 %v184
    %v1136 = vunpack.c.l.b16 %v185
    %v1137 = vunpack.c.h.b16 %v185
    %v1138 = vunpack.c.l.b16 %v186
    %v1139 = vunpack.c.h.b16 %v186
    %v1140 = vunpack.c.l.b16 %v187
    %v1141 = vunpack.c.h.b16 %v187
    %v1142 = vunpack.c.l.b16 %v188
    %v1143 = vunpack.c.h.b16 %v188
    %v1144 = vunpack.c.l.b16 %v189
    %v1145 = vunpack.c.h.b16 %v189
    %v1146 = vunpack.c.l.b16 %v190
    %v1147 = vunpack.c.h.b16 %v190
    %v1148 = vunpack.c.l.b16 %v191
    %v1149 = vunpack.c.h.b16 %v191
    %v1150 = vunpack.c.l.b16 %v192
    %v1151 = vunpack.c.h.b16 %v192
    %v1152 = vunpack.c.l.b16 %v193
    %v1153 = vunpack.c.h.b16 %v193
    %v1154 = vunpack.c.l.b16 %v194
    %v1155 = vunpack.c.h.b16 %v194
    %v1156 = vunpack.c.l.b16 %v195
    %v1157 = vunpack.c.h.b16 %v195
    %v1158 = vunpack.c.l.b16 %v196
    %v1159 = vunpack.c.h.b16 %v196
    %v1160 = vunpack.c.l.b16 %v197
    %v1161 = vunpack.c.h.b16 %v197
    %v1162 = vunpack.c.l.b16 %v198
    %v1163 = vunpack.c.h.b16 %v198
    %v1164 = vunpack.c.l.b16 %v199
    %v1165 = vunpack.c.h.b16 %v199
    %v1166 = vunpack.c.l.b16 %v200
    %v1167 = vunpack.c.h.b16 %v200
    %v1168 = vunpack.c.l.b16 %v201
    %v1169 = vunpack.c.h.b16 %v201
    %v1170 = vunpack.c.l.b16 %v202
    %v1171 = vunpack.c.h.b16 %v202
    %v1172 = vunpack.c.l.b16 %v203
    %v1173 = vunpack.c.h.b16 %v203
    %v1174 = vunpack.c.l.b16 %v204
    %v1175 = vunpack.c.h.b16 %v204
    %v1176 = vunpack.c.l.b16 %v205
    %v1177 = vunpack.c.h.b16 %v205
    %v1178 = vunpack.c.l.b16 %v206
    %v1179 = vunpack.c.h.b16 %v206
    %v1180 = vunpack.c.l.b16 %v207
    %v1181 = vunpack.c.h.b16 %v207
    %v1182 = vunpack.c.l.b16 %v208
    %v1183 = vunpack.c.h.b16 %v208
    %v1184 = vunpack.c.l.b16 %v209
    %v1185 = vunpack.c.h.b16 %v209
    %v1186 = vunpack.c.l.b16 %v210
    %v1187 = vunpack.c.h.b16 %v210
    %v1188 = vunpack.c.l.b16 %v211
    %v1189 = vunpack.c.h.b16 %v211
    %v1190 = vunpack.c.l.b16 %v212
    %v1191 = vunpack.c.h.b16 %v212
    %v1192 = vunpack.c.l.b16 %v213
    %v1193 = vunpack.c.h.b16 %v213
    %v1194 = vunpack.c.l.b16 %v214
    %v1195 = vunpack.c.h.b16 %v214
    %v1196 = vunpack.c.l.b16 %v215
    %v1197 = vunpack.c.h.b16 %v215
    %v1198 = vunpack.c.l.b16 %v216
    %v1199 = vunpack.c.h.b16 %v216
    %v1200 = vunpack.c.l.b16 %v217
    %v1201 = vunpack.c.h.b16 %v217
    %v1202 = vunpack.c.l.b16 %v218
    %v1203 = vunpack.c.h.b16 %v218
    %v1204 = vunpack.c.l.b16 %v219
    %v1205 = vunpack.c.h.b16 %v219
    %v1206 = vunpack.c.l.b16 %v220
    %v1207 = vunpack.c.h.b16 %v220
    %v1208 = vunpack.c.l.b16 %v221
    %v1209 = vunpack.c.h.b16 %v221
    %v1210 = vunpack.c.l.b16 %v222
    %v1211 = vunpack.c.h.b16 %v222
    %v1212 = vunpack.c.l.b16 %v223
    %v1213 = vunpack.c.h.b16 %v223
    %v1214 = vunpack.c.l.b16 %v224
    %v1215 = vunpack.c.h.b16 %v224
    %v1216 = vunpack.c.l.b16 %v225
    %v1217 = vunpack.c.h.b16 %v225
    %v1218 = vunpack.c.l.b16 %v226
    %v1219 = vunpack.c.h.b16 %v226
    %v1220 = vunpack.c.l.b16 %v227
    %v1221 = vunpack.c.h.b16 %v227
    %v1222 = vunpack.c.l.b16 %v228
    %v1223 = vunpack.c.h.b16 %v228
    %v1224 = vunpack.c.l.b16 %v229
    %v1225 = vunpack.c.h.b16 %v229
    %v1226 = vunpack.c.l.b16 %v230
    %v1227 = vunpack.c.h.b16 %v230
    %v1228 = vunpack.c.l.b16 %v231
    %v1229 = vunpack.c.h.b16 %v231
    %v1230 = vunpack.c.l.b16 %v232
    %v1231 = vunpack.c.h.b16 %v232
    %v1232 = vunpack.c.l.b16 %v233
    %v1233 = vunpack.c.h.b16 %v233
    %v1234 = vunpack.c.l.b16 %v234
    %v1235 = vunpack.c.h.b16 %v234
    %v1236 = vunpack.c.l.b16 %v235
    %v1237 = vunpack.c.h.b16 %v235
    %v1238 = vunpack.c.l.b16 %v236
    %v1239 = vunpack.c.h.b16 %v236
    %v1240 = vunpack.c.l.b16 %v237
    %v1241 = vunpack.c.h.b16 %v237
    %v1242 = vunpack.c.l.b16 %v238
    %v1243 = vunpack.c.h.b16 %v238
    %v1244 = vunpack.c.l.b16 %v239
    %v1245 = vunpack.c.h.b16 %v239
    %v1246 = vunpack.c.l.b16 %v240
    %v1247 = vunpack.c.h.b16 %v240
    %v1248 = vunpack.c.l.b16 %v241
    %v1249 = vunpack.c.h.b16 %v241
    %v1250 = vunpack.c.l.b16 %v242
    %v1251 = vunpack.c.h.b16 %v242
    %v1252 = vunpack.c.l.b16 %v243
    %v1253 = vunpack.c.h.b16 %v243
    %v1254 = vunpack.c.l.b16 %v244
    %v1255 = vunpack.c.h.b16 %v244
    %v1256 = vunpack.c.l.b16 %v245
    %v1257 = vunpack.c.h.b16 %v245
    %v1258 = vunpack.c.l.b16 %v246
    %v1259 = vunpack.c.h.b16 %v246
    %v1260 = vunpack.c.l.b16 %v247
    %v1261 = vunpack.c.h.b16 %v247
    %v1262 = vunpack.c.l.b16 %v248
    %v1263 = vunpack.c.h.b16 %v248
    %v1264 = vunpack.c.l.b16 %v249
    %v1265 = vunpack.c.h.b16 %v249
    %v1266 = vunpack.c.l.b16 %v250
    %v1267 = vunpack.c.h.b16 %v250
    %v1268 = vunpack.c.l.b16 %v251
    %v1269 = vunpack.c.h.b16 %v251
    %v1270 = vunpack.c.l.b16 %v252
    %v1271 = vunpack.c.h.b16 %v252
    %v1272 = vunpack.c.l.b16 %v253
    %v1273 = vunpack.c.h.b16 %v253
    %v1274 = vunpack.c.l.b16 %v254
    %v1275 = vunpack.c.h.b16 %v254
    %v1276 = vunpack.c.l.b16 %v255
    %v1277 = vunpack.c.h.b16 %v255
    %v1278 = vunpack.c.l.b16 %v256
    %v1279 = vunpack.c.h.b16 %v256
    %v1280 = vunpack.c.l.b16 %v257
    %v1281 = vunpack.c.h.b16 %v257
    %v1282 = vunpack.c.l.b16 %v258
    %v1283 = vunpack.c.h.b16 %v258
    %v1284 = vunpack.c.l.b16 %v259
    %v1285 = vunpack.c.h.b16 %v259
    %v1286 = vunpack.c.l.b16 %v260
    %v1287 = vunpack.c.h.b16 %v260
    %v1288 = vunpack.c.l.b16 %v261
    %v1289 = vunpack.c.h.b16 %v261
    %v1290 = vunpack.c.l.b16 %v262
    %v1291 = vunpack.c.h.b16 %v262
    %v1292 = vunpack.c.l.b16 %v263
    %v1293 = vunpack.c.h.b16 %v263
    %v1294 = vunpack.c.l.b16 %v264
    %v1295 = vunpack.c.h.b16 %v264
    %v1296 = vunpack.c.l.b16 %v265
    %v1297 = vunpack.c.h.b16 %v265
    %v1298 = vunpack.c.l.b16 %v266
    %v1299 = vunpack.c.h.b16 %v266
    %v1300 = vunpack.c.l.b16 %v267
    %v1301 = vunpack.c.h.b16 %v267
    %v1302 = vunpack.c.l.b16 %v268
    %v1303 = vunpack.c.h.b16 %v268
    %v1304 = vunpack.c.l.b16 %v269
    %v1305 = vunpack.c.h.b16 %v269
    %v1306 = vunpack.c.l.b16 %v270
    %v1307 = vunpack.c.h.b16 %v270
    %v1308 = vunpack.c.l.b16 %v271
    %v1309 = vunpack.c.h.b16 %v271
    %v1310 = vunpack.c.l.b16 %v272
    %v1311 = vunpack.c.h.b16 %v272
    %v1312 = vunpack.c.l.b16 %v273
    %v1313 = vunpack.c.h.b16 %v273
    %v1314 = vunpack.c.l.b16 %v274
    %v1315 = vunpack.c.h.b16 %v274
    %v1316 = vunpack.c.l.b16 %v275
    %v1317 = vunpack.c.h.b16 %v275
    %v1318 = vunpack.c.l.b16 %v276
    %v1319 = vunpack.c.h.b16 %v276
    %v1320 = vunpack.c.l.b16 %v277
    %v1321 = vunpack.c.h.b16 %v277
    %v1322 = vunpack.c.l.b16 %v278
    %v1323 = vunpack.c.h.b16 %v278
    %v1324 = vunpack.c.l.b16 %v279
    %v1325 = vunpack.c.h.b16 %v279
    %v1326 = vunpack.c.l.b16 %v280
    %v1327 = vunpack.c.h.b16 %v280
    %v1328 = vunpack.c.l.b16 %v281
    %v1329 = vunpack.c.h.b16 %v281
    %v1330 = vunpack.c.l.b16 %v282
    %v1331 = vunpack.c.h.b16 %v282
    %v1332 = vunpack.c.l.b16 %v283
    %v1333 = vunpack.c.h.b16 %v283
    %v1334 = vunpack.c.l.b16 %v284
    %v1335 = vunpack.c.h.b16 %v284
    %v1336 = vunpack.c.l.b16 %v285
    %v1337 = vunpack.c.h.b16 %v285
    %v1338 = vunpack.c.l.b16 %v286
    %v1339 = vunpack.c.h.b16 %v286
    %v1340 = vunpack.c.l.b16 %v287
    %v1341 = vunpack.c.h.b16 %v287
    %v1342 = vunpack.c.l.b16 %v288
    %v1343 = vunpack.c.h.b16 %v288
    %v1344 = vunpack.c.l.b16 %v289
    %v1345 = vunpack.c.h.b16 %v289
    %v1346 = vunpack.c.l.b16 %v290
    %v1347 = vunpack.c.h.b16 %v290
    %v1348 = vunpack.c.l.b16 %v291
    %v1349 = vunpack.c.h.b16 %v291
    %v1350 = vunpack.c.l.b16 %v292
    %v1351 = vunpack.c.h.b16 %v292
    %v1352 = vunpack.c.l.b16 %v293
    %v1353 = vunpack.c.h.b16 %v293
    %v1354 = vunpack.c.l.b16 %v294
    %v1355 = vunpack.c.h.b16 %v294
    %v1356 = vunpack.c.l.b16 %v295
    %v1357 = vunpack.c.h.b16 %v295
    %v1358 = vunpack.c.l.b16 %v296
    %v1359 = vunpack.c.h.b16 %v296
    %v1360 = vunpack.c.l.b16 %v297
    %v1361 = vunpack.c.h.b16 %v297
    %v1362 = vpack.c.b16 %v1128, %v1122
    %v1363 = vpack.c.b16 %v1129, %v1123
    %v1364 = vpack.c.b16 %v1130, %v1124
    %v1365 = vpack.c.b16 %v1131, %v1125
    %v1366 = vpack.c.b16 %v1132, %v1126
    %v1367 = vpack.c.b16 %v1133, %v1127
    %v1368 = vpack.c.b16 %v1140, %v1134
    %v1369 = vpack.c.b16 %v1141, %v1135
    %v1370 = vpack.c.b16 %v1142, %v1136
    %v1371 = vpack.c.b16 %v1143, %v1137
    %v1372 = vpack.c.b16 %v1144, %v1138
    %v1373 = vpack.c.b16 %v1145, %v1139
    %v1374 = vpack.c.b16 %v1152, %v1146
    %v1375 = vpack.c.b16 %v1153, %v1147
    %v1376 = vpack.c.b16 %v1154, %v1148
    %v1377 = vpack.c.b16 %v1155, %v1149
    %v1378 = vpack.c.b16 %v1156, %v1150
    %v1379 = vpack.c.b16 %v1157, %v1151
    %v1380 = vpack.c.b16 %v1164, %v1158
    %v1381 = vpack.c.b16 %v1165, %v1159
    %v1382 = vpack.c.b16 %v1166, %v1160
    %v1383 = vpack.c.b16 %v1167, %v1161
    %v1384 = vpack.c.b16 %v1168, %v1162
    %v1385 = vpack.c.b16 %v1169, %v1163
    %v1386 = vpack.c.b16 %v1176, %v1170
    %v1387 = vpack.c.b16 %v1177, %v1171
    %v1388 = vpack.c.b16 %v1178, %v1172
    %v1389 = vpack.c.b16 %v1179, %v1173
    %v1390 = vpack.c.b16 %v1180, %v1174
    %v1391 = vpack.c.b16 %v1181, %v1175
    %v1392 = vpack.c.b16 %v1188, %v1182
    %v1393 = vpack.c.b16 %v1189, %v1183
    %v1394 = vpack.c.b16 %v1190, %v1184
    %v1395 = vpack.c.b16 %v1191, %v1185
    %v1396 = vpack.c.b16 %v1192, %v1186
    %v1397 = vpack.c.b16 %v1193, %v1187
    %v1398 = vpack.c.b16 %v1200, %v1194
    %v1399 = vpack.c.b16 %v1201, %v1195
    %v1400 = vpack.c.b16 %v1202, %v1196
    %v1401 = vpack.c.b16 %v1203, %v1197
    %v1402 = vpack.c.b16 %v1204, %v1198
    %v1403 = vpack.c.b16 %v1205, %v1199
    %v1404 = vpack.c.b16 %v1212, %v1206
    %v1405 = vpack.c.b16 %v1213, %v1207
    %v1406 = vpack.c.b16 %v1214, %v1208
    %v1407 = vpack.c.b16 %v1215, %v1209
    %v1408 = vpack.c.b16 %v1216, %v1210
    %v1409 = vpack.c.b16 %v1217, %v1211
    %v1410 = vpack.c.b16 %v1224, %v1218
    %v1411 = vpack.c.b16 %v1225, %v1219
    %v1412 = vpack.c.b16 %v1226, %v1220
    %v1413 = vpack.c.b16 %v1227, %v1221
    %v1414 = vpack.c.b16 %v1228, %v1222
    %v1415 = vpack.c.b16 %v1229, %v1223
    %v1416 = vpack.c.b16 %v1236, %v1230
    %v1417 = vpack.c.b16 %v1237, %v1231
    %v1418 = vpack.c.b16 %v1238, %v1232
    %v1419 = vpack.c.b16 %v1239, %v1233
    %v1420 = vpack.c.b16 %v1240, %v1234
    %v1421 = vpack.c.b16 %v1241, %v1235
    %v1422 = vpack.c.b16 %v1248, %v1242
    %v1423 = vpack.c.b16 %v1249, %v1243
    %v1424 = vpack.c.b16 %v1250, %v1244
    %v1425 = vpack.c.b16 %v1251, %v1245
    %v1426 = vpack.c.b16 %v1252, %v1246
    %v1427 = vpack.c.b16 %v1253, %v1247
    %v1428 = vpack.c.b16 %v1260, %v1254
    %v1429 = vpack.c.b16 %v1261, %v1255
    %v1430 = vpack.c.b16 %v1262, %v1256
    %v1431 = vpack.c.b16 %v1263, %v1257
    %v1432 = vpack.c.b16 %v1264, %v1258
    %v1433 = vpack.c.b16 %v1265, %v1259
    %v1434 = vpack.c.b16 %v1272, %v1266
    %v1435 = vpack.c.b16 %v1273, %v1267
    %v1436 = vpack.c.b16 %v1274, %v1268
    %v1437 = vpack.c.b16 %v1275, %v1269
    %v1438 = vpack.c.b16 %v1276, %v1270
    %v1439 = vpack.c.b16 %v1277, %v1271
    %v1440 = vpack.c.b16 %v1284, %v1278
    %v1441 = vpack.c.b16 %v1285, %v1279
    %v1442 = vpack.c.b16 %v1286, %v1280
    %v1443 = vpack.c.b16 %v1287, %v1281
    %v1444 = vpack.c.b16 %v1288, %v1282
    %v1445 = vpack.c.b16 %v1289, %v1283
    %v1446 = vpack.c.b16 %v1296, %v1290
    %v1447 = vpack.c.b16 %v1297, %v1291
    %v1448 = vpack.c.b16 %v1298, %v1292
    %v1449 = vpack.c.b16 %v1299, %v1293
    %v1450 = vpack.c.b16 %v1300, %v1294
    %v1451 = vpack.c.b16 %v1301, %v1295
    %v1452 = vpack.c.b16 %v1308, %v1302
    %v1453 = vpack.c.b16 %v1309, %v1303
    %v1454 = vpack.c.b16 %v1310, %v1304
    %v1455 = vpack.c.b16 %v1311, %v1305
    %v1456 = vpack.c.b16 %v1312, %v1306
    %v1457 = vpack.c.b16 %v1313, %v1307
    %v1458 = vpack.c.b16 %v1320, %v1314
    %v1459 = vpack.c.b16 %v1321, %v1315
    %v1460 = vpack.c.b16 %v1322, %v1316
    %v1461 = vpack.c.b16 %v1323, %v1317
    %v1462 = vpack.c.b16 %v1324, %v1318
    %v1463 = vpack.c.b16 %v1325, %v1319
    %v1464 = vpack.c.b16 %v1332, %v1326
    %v1465 = vpack.c.b16 %v1333, %v1327
    %v1466 = vpack.c.b16 %v1334, %v1328
    %v1467 = vpack.c.b16 %v1335, %v1329
    %v1468 = vpack.c.b16 %v1336, %v1330
    %v1469 = vpack.c.b16 %v1337, %v1331
    %v1470 = vpack.c.b16 %v1344, %v1338
    %v1471 = vpack.c.b16 %v1345, %v1339
    %v1472 = vpack.c.b16 %v1346, %v1340
    %v1473 = vpack.c.b16 %v1347, %v1341
    %v1474 = vpack.c.b16 %v1348, %v1342
    %v1475 = vpack.c.b16 %v1349, %v1343
    %v1476 = vpack.c.b16 %v1356, %v1350
    %v1477 = vpack.c.b16 %v1357, %v1351
    %v1478 = vpack.c.b16 %v1358, %v1352
    %v1479 = vpack.c.b16 %v1359, %v1353
    %v1480 = vpack.c.b16 %v1360, %v1354
    %v1481 = vpack.c.b16 %v1361, %v1355
    %vm1602 = vcmask 523264
    %v1604 = vsel %vm1602, %v964, 0
    %v1607 = vsel %vm1602, %v967, 0
    %v1610 = vsel %vm1602, %v970, 0
    %v1613 = vsel %vm1602, %v973, 0
    %v1616 = vsel %vm1602, %v976, 0
    %v1619 = vsel %vm1602, %v979, 0
    %v1622 = vsel %vm1602, %v982, 0
    %v1625 = vsel %vm1602, %v985, 0
    %1627 = vmatprep.subr.bf16.mxu0 %v1363
    %1628 = vmatpush1.bf16.msra.mxu0 %v1362
    %1629 = vmatprep.subr.bf16.mxu0 %v1369
    %1630 = vmatpush1.bf16.msra.mxu0 %v1368
    %1631 = vmatprep.subr.bf16.mxu0 %v1375
    %1632 = vmatpush1.bf16.msra.mxu0 %v1374
    %1633 = vmatprep.subr.bf16.mxu0 %v1381
    %1634 = vmatpush1.bf16.msra.mxu0 %v1380
    %1635 = vmatprep.subr.bf16.mxu0 %v1387
    %1636 = vmatpush1.bf16.msra.mxu0 %v1386
    %1637 = vmatprep.subr.bf16.mxu0 %v1393
    %1638 = vmatpush1.bf16.msra.mxu0 %v1392
    %1639 = vmatprep.subr.bf16.mxu0 %v1399
    %1640 = vmatpush1.bf16.msra.mxu0 %v1398
    %1641 = vmatprep.subr.bf16.mxu0 %v1405
    %1642 = vmatpush1.bf16.msra.mxu0 %v1404
    %1643 = vmatprep.subr.bf16.mxu0 %v1411
    %1644 = vmatpush1.bf16.msra.mxu0 %v1410
    %1645 = vmatprep.subr.bf16.mxu0 %v1417
    %1646 = vmatpush1.bf16.msra.mxu0 %v1416
    %1647 = vmatprep.subr.bf16.mxu0 %v1423
    %1648 = vmatpush1.bf16.msra.mxu0 %v1422
    %1649 = vmatprep.subr.bf16.mxu0 %v1429
    %1650 = vmatpush1.bf16.msra.mxu0 %v1428
    %1651 = vmatprep.subr.bf16.mxu0 %v1435
    %1652 = vmatpush1.bf16.msra.mxu0 %v1434
    %1653 = vmatprep.subr.bf16.mxu0 %v1441
    %1654 = vmatpush1.bf16.msra.mxu0 %v1440
    %1655 = vmatprep.subr.bf16.mxu0 %v1447
    %1656 = vmatpush1.bf16.msra.mxu0 %v1446
    %1657 = vmatprep.subr.bf16.mxu0 %v1453
    %1658 = vmatpush1.bf16.msra.mxu0 %v1452
    %1659 = vmatprep.mubr.bf16.mxu0 %v963
    %1660 = vmatmul.mubr.bf16.gmra.mrb[0].mxu0 %v962
    %v1661 = vpop.f32.mrb[0].mxu0
    %v1662 = vadd.f32 %v578, %v1661
    %v1663 = vpop.f32.mrb[0].mxu0
    %v1664 = vadd.f32 %v580, %v1663
    %v1665 = vpop.f32.mrb[0].mxu0
    %v1666 = vadd.f32 %v582, %v1665
    %v1667 = vpop.f32.mrb[0].mxu0
    %v1668 = vadd.f32 %v584, %v1667
    %1669 = vmatprep.mubr.bf16.mxu0 %v966
    %1670 = vmatmul.mubr.bf16.gmra.mrb[0].mxu0 %v965
    %v1671 = vpop.f32.mrb[0].mxu0
    %v1672 = vadd.f32 %v588, %v1671
    %v1673 = vpop.f32.mrb[0].mxu0
    %v1674 = vadd.f32 %v590, %v1673
    %v1675 = vpop.f32.mrb[0].mxu0
    %v1676 = vadd.f32 %v592, %v1675
    %v1677 = vpop.f32.mrb[0].mxu0
    %v1678 = vadd.f32 %v594, %v1677
    %1679 = vmatprep.mubr.bf16.mxu0 %v969
    %1680 = vmatmul.mubr.bf16.gmra.mrb[0].mxu0 %v968
    %v1681 = vpop.f32.mrb[0].mxu0
    %v1682 = vadd.f32 %v598, %v1681
    %v1683 = vpop.f32.mrb[0].mxu0
    %v1684 = vadd.f32 %v600, %v1683
    %v1685 = vpop.f32.mrb[0].mxu0
    %v1686 = vadd.f32 %v602, %v1685
    %v1687 = vpop.f32.mrb[0].mxu0
    %v1688 = vadd.f32 %v604, %v1687
    %1689 = vmatprep.mubr.bf16.mxu0 %v972
    %1690 = vmatmul.mubr.bf16.gmra.mrb[0].mxu0 %v971
    %v1691 = vpop.f32.mrb[0].mxu0
    %v1692 = vadd.f32 %v608, %v1691
    %v1693 = vpop.f32.mrb[0].mxu0
    %v1694 = vadd.f32 %v610, %v1693
    %v1695 = vpop.f32.mrb[0].mxu0
    %v1696 = vadd.f32 %v612, %v1695
    %v1697 = vpop.f32.mrb[0].mxu0
    %v1698 = vadd.f32 %v614, %v1697
    %1699 = vmatprep.mubr.bf16.mxu0 %v975
    %1700 = vmatmul.mubr.bf16.gmra.mrb[0].mxu0 %v974
    %v1701 = vpop.f32.mrb[0].mxu0
    %v1702 = vadd.f32 %v618, %v1701
    %v1703 = vpop.f32.mrb[0].mxu0
    %v1704 = vadd.f32 %v620, %v1703
    %v1705 = vpop.f32.mrb[0].mxu0
    %v1706 = vadd.f32 %v622, %v1705
    %v1707 = vpop.f32.mrb[0].mxu0
    %v1708 = vadd.f32 %v624, %v1707
    %1709 = vmatprep.mubr.bf16.mxu0 %v978
    %1710 = vmatmul.mubr.bf16.gmra.mrb[0].mxu0 %v977
    %v1711 = vpop.f32.mrb[0].mxu0
    %v1712 = vadd.f32 %v628, %v1711
    %v1713 = vpop.f32.mrb[0].mxu0
    %v1714 = vadd.f32 %v630, %v1713
    %v1715 = vpop.f32.mrb[0].mxu0
    %v1716 = vadd.f32 %v632, %v1715
    %v1717 = vpop.f32.mrb[0].mxu0
    %v1718 = vadd.f32 %v634, %v1717
    %1719 = vmatprep.mubr.bf16.mxu0 %v981
    %1720 = vmatmul.mubr.bf16.gmra.mrb[0].mxu0 %v980
    %v1721 = vpop.f32.mrb[0].mxu0
    %v1722 = vadd.f32 %v638, %v1721
    %v1723 = vpop.f32.mrb[0].mxu0
    %v1724 = vadd.f32 %v640, %v1723
    %v1725 = vpop.f32.mrb[0].mxu0
    %v1726 = vadd.f32 %v642, %v1725
    %v1727 = vpop.f32.mrb[0].mxu0
    %v1728 = vadd.f32 %v644, %v1727
    %1729 = vmatprep.mubr.bf16.mxu0 %v984
    %1730 = vmatmul.mubr.bf16.gmra.mrb[0].mxu0 %v983
    %v1731 = vpop.f32.mrb[0].mxu0
    %v1732 = vadd.f32 %v648, %v1731
    %v1733 = vpop.f32.mrb[0].mxu0
    %v1734 = vadd.f32 %v650, %v1733
    %v1735 = vpop.f32.mrb[0].mxu0
    %v1736 = vadd.f32 %v652, %v1735
    %v1737 = vpop.f32.mrb[0].mxu0
    %v1738 = vadd.f32 %v654, %v1737
    %1739 = vdwg.mxu0
    %1740 = vmatprep.subr.bf16.mxu0 %v1459
    %1741 = vmatpush1.bf16.msra.mxu0 %v1458
    %1742 = vmatprep.subr.bf16.mxu0 %v1465
    %1743 = vmatpush1.bf16.msra.mxu0 %v1464
    %1744 = vmatprep.subr.bf16.mxu0 %v1471
    %1745 = vmatpush1.bf16.msra.mxu0 %v1470
    %1746 = vmatprep.subr.bf16.mxu0 %v1477
    %1747 = vmatpush1.bf16.msra.mxu0 %v1476
    %1748 = vmatprep.subr.bf16.mxu0 0
    %1749 = vmatpush1.bf16.msra.mxu0 0
    %1750 = vmatprep.subr.bf16.mxu0 0
    %1751 = vmatpush1.bf16.msra.mxu0 0
    %1752 = vmatprep.subr.bf16.mxu0 0
    %1753 = vmatpush1.bf16.msra.mxu0 0
    %1754 = vmatprep.subr.bf16.mxu0 0
    %1755 = vmatpush1.bf16.msra.mxu0 0
    %1756 = vmatprep.subr.bf16.mxu0 0
    %1757 = vmatpush1.bf16.msra.mxu0 0
    %1758 = vmatprep.subr.bf16.mxu0 0
    %1759 = vmatpush1.bf16.msra.mxu0 0
    %1760 = vmatprep.subr.bf16.mxu0 0
    %1761 = vmatpush1.bf16.msra.mxu0 0
    %1762 = vmatprep.subr.bf16.mxu0 0
    %1763 = vmatpush1.bf16.msra.mxu0 0
    %1764 = vmatprep.subr.bf16.mxu0 0
    %1765 = vmatpush1.bf16.msra.mxu0 0
    %1766 = vmatprep.subr.bf16.mxu0 0
    %1767 = vmatpush1.bf16.msra.mxu0 0
    %1768 = vmatprep.subr.bf16.mxu0 0
    %1769 = vmatpush1.bf16.msra.mxu0 0
    %1770 = vmatprep.subr.bf16.mxu0 0
    %1771 = vmatpush1.bf16.msra.mxu0 0
    %1772 = vmatprep.mubr.bf16.mxu0 0
    %1773 = vmatmul.mubr.bf16.gmra.mrb[0].mxu0 %v1604
    %v1774 = vpop.f32.mrb[0].mxu0
    %v1775 = vadd.f32 %v1662, %v1774
    %v1776 = vpop.f32.mrb[0].mxu0
    %v1777 = vadd.f32 %v1664, %v1776
    %v1778 = vpop.f32.mrb[0].mxu0
    %v1779 = vadd.f32 %v1666, %v1778
    %v1780 = vpop.f32.mrb[0].mxu0
    %v1781 = vadd.f32 %v1668, %v1780
    %1782 = vmatprep.mubr.bf16.mxu0 0
    %1783 = vmatmul.mubr.bf16.gmra.mrb[0].mxu0 %v1607
    %v1784 = vpop.f32.mrb[0].mxu0
    %v1785 = vadd.f32 %v1672, %v1784
    %v1786 = vpop.f32.mrb[0].mxu0
    %v1787 = vadd.f32 %v1674, %v1786
    %v1788 = vpop.f32.mrb[0].mxu0
    %v1789 = vadd.f32 %v1676, %v1788
    %v1790 = vpop.f32.mrb[0].mxu0
    %v1791 = vadd.f32 %v1678, %v1790
    %1792 = vmatprep.mubr.bf16.mxu0 0
    %1793 = vmatmul.mubr.bf16.gmra.mrb[0].mxu0 %v1610
    %v1794 = vpop.f32.mrb[0].mxu0
    %v1795 = vadd.f32 %v1682, %v1794
    %v1796 = vpop.f32.mrb[0].mxu0
    %v1797 = vadd.f32 %v1684, %v1796
    %v1798 = vpop.f32.mrb[0].mxu0
    %v1799 = vadd.f32 %v1686, %v1798
    %v1800 = vpop.f32.mrb[0].mxu0
    %v1801 = vadd.f32 %v1688, %v1800
    %1802 = vmatprep.mubr.bf16.mxu0 0
    %1803 = vmatmul.mubr.bf16.gmra.mrb[0].mxu0 %v1613
    %v1804 = vpop.f32.mrb[0].mxu0
    %v1805 = vadd.f32 %v1692, %v1804
    %v1806 = vpop.f32.mrb[0].mxu0
    %v1807 = vadd.f32 %v1694, %v1806
    %v1808 = vpop.f32.mrb[0].mxu0
    %v1809 = vadd.f32 %v1696, %v1808
    %v1810 = vpop.f32.mrb[0].mxu0
    %v1811 = vadd.f32 %v1698, %v1810
    %1812 = vmatprep.mubr.bf16.mxu0 0
    %1813 = vmatmul.mubr.bf16.gmra.mrb[0].mxu0 %v1616
    %v1814 = vpop.f32.mrb[0].mxu0
    %v1815 = vadd.f32 %v1702, %v1814
    %v1816 = vpop.f32.mrb[0].mxu0
    %v1817 = vadd.f32 %v1704, %v1816
    %v1818 = vpop.f32.mrb[0].mxu0
    %v1819 = vadd.f32 %v1706, %v1818
    %v1820 = vpop.f32.mrb[0].mxu0
    %v1821 = vadd.f32 %v1708, %v1820
    %1822 = vmatprep.mubr.bf16.mxu0 0
    %1823 = vmatmul.mubr.bf16.gmra.mrb[0].mxu0 %v1619
    %v1824 = vpop.f32.mrb[0].mxu0
    %v1825 = vadd.f32 %v1712, %v1824
    %v1826 = vpop.f32.mrb[0].mxu0
    %v1827 = vadd.f32 %v1714, %v1826
    %v1828 = vpop.f32.mrb[0].mxu0
    %v1829 = vadd.f32 %v1716, %v1828
    %v1830 = vpop.f32.mrb[0].mxu0
    %v1831 = vadd.f32 %v1718, %v1830
    %1832 = vmatprep.mubr.bf16.mxu0 0
    %1833 = vmatmul.mubr.bf16.gmra.mrb[0].mxu0 %v1622
    %v1834 = vpop.f32.mrb[0].mxu0
    %v1835 = vadd.f32 %v1722, %v1834
    %v1836 = vpop.f32.mrb[0].mxu0
    %v1837 = vadd.f32 %v1724, %v1836
    %v1838 = vpop.f32.mrb[0].mxu0
    %v1839 = vadd.f32 %v1726, %v1838
    %v1840 = vpop.f32.mrb[0].mxu0
    %v1841 = vadd.f32 %v1728, %v1840
    %1842 = vmatprep.mubr.bf16.mxu0 0
    %1843 = vmatmul.mubr.bf16.gmra.mrb[0].mxu0 %v1625
    %v1844 = vpop.f32.mrb[0].mxu0
    %v1845 = vadd.f32 %v1732, %v1844
    %v1846 = vpop.f32.mrb[0].mxu0
    %v1847 = vadd.f32 %v1734, %v1846
    %v1848 = vpop.f32.mrb[0].mxu0
    %v1849 = vadd.f32 %v1736, %v1848
    %v1850 = vpop.f32.mrb[0].mxu0
    %v1851 = vadd.f32 %v1738, %v1850
    %1852 = vdwg.mxu0
    %1853 = vmatprep.subr.bf16.mxu0 %v1365
    %1854 = vmatpush1.bf16.msra.mxu0 %v1364
    %1855 = vmatprep.subr.bf16.mxu0 %v1371
    %1856 = vmatpush1.bf16.msra.mxu0 %v1370
    %1857 = vmatprep.subr.bf16.mxu0 %v1377
    %1858 = vmatpush1.bf16.msra.mxu0 %v1376
    %1859 = vmatprep.subr.bf16.mxu0 %v1383
    %1860 = vmatpush1.bf16.msra.mxu0 %v1382
    %1861 = vmatprep.subr.bf16.mxu0 %v1389
    %1862 = vmatpush1.bf16.msra.mxu0 %v1388
    %1863 = vmatprep.subr.bf16.mxu0 %v1395
    %1864 = vmatpush1.bf16.msra.mxu0 %v1394
    %1865 = vmatprep.subr.bf16.mxu0 %v1401
    %1866 = vmatpush1.bf16.msra.mxu0 %v1400
    %1867 = vmatprep.subr.bf16.mxu0 %v1407
    %1868 = vmatpush1.bf16.msra.mxu0 %v1406
    %1869 = vmatprep.subr.bf16.mxu0 %v1413
    %1870 = vmatpush1.bf16.msra.mxu0 %v1412
    %1871 = vmatprep.subr.bf16.mxu0 %v1419
    %1872 = vmatpush1.bf16.msra.mxu0 %v1418
    %1873 = vmatprep.subr.bf16.mxu0 %v1425
    %1874 = vmatpush1.bf16.msra.mxu0 %v1424
    %1875 = vmatprep.subr.bf16.mxu0 %v1431
    %1876 = vmatpush1.bf16.msra.mxu0 %v1430
    %1877 = vmatprep.subr.bf16.mxu0 %v1437
    %1878 = vmatpush1.bf16.msra.mxu0 %v1436
    %1879 = vmatprep.subr.bf16.mxu0 %v1443
    %1880 = vmatpush1.bf16.msra.mxu0 %v1442
    %1881 = vmatprep.subr.bf16.mxu0 %v1449
    %1882 = vmatpush1.bf16.msra.mxu0 %v1448
    %1883 = vmatprep.subr.bf16.mxu0 %v1455
    %1884 = vmatpush1.bf16.msra.mxu0 %v1454
    %1885 = vmatprep.mubr.bf16.mxu0 %v963
    %1886 = vmatmul.mubr.bf16.gmra.mrb[0].mxu0 %v962
    %v1887 = vpop.f32.mrb[0].mxu0
    %v1888 = vadd.f32 %v691, %v1887
    %v1889 = vpop.f32.mrb[0].mxu0
    %v1890 = vadd.f32 %v693, %v1889
    %v1891 = vpop.f32.mrb[0].mxu0
    %v1892 = vadd.f32 %v695, %v1891
    %v1893 = vpop.f32.mrb[0].mxu0
    %v1894 = vadd.f32 %v697, %v1893
    %1895 = vmatprep.mubr.bf16.mxu0 %v966
    %1896 = vmatmul.mubr.bf16.gmra.mrb[0].mxu0 %v965
    %v1897 = vpop.f32.mrb[0].mxu0
    %v1898 = vadd.f32 %v701, %v1897
    %v1899 = vpop.f32.mrb[0].mxu0
    %v1900 = vadd.f32 %v703, %v1899
    %v1901 = vpop.f32.mrb[0].mxu0
    %v1902 = vadd.f32 %v705, %v1901
    %v1903 = vpop.f32.mrb[0].mxu0
    %v1904 = vadd.f32 %v707, %v1903
    %1905 = vmatprep.mubr.bf16.mxu0 %v969
    %1906 = vmatmul.mubr.bf16.gmra.mrb[0].mxu0 %v968
    %v1907 = vpop.f32.mrb[0].mxu0
    %v1908 = vadd.f32 %v711, %v1907
    %v1909 = vpop.f32.mrb[0].mxu0
    %v1910 = vadd.f32 %v713, %v1909
    %v1911 = vpop.f32.mrb[0].mxu0
    %v1912 = vadd.f32 %v715, %v1911
    %v1913 = vpop.f32.mrb[0].mxu0
    %v1914 = vadd.f32 %v717, %v1913
    %1915 = vmatprep.mubr.bf16.mxu0 %v972
    %1916 = vmatmul.mubr.bf16.gmra.mrb[0].mxu0 %v971
    %v1917 = vpop.f32.mrb[0].mxu0
    %v1918 = vadd.f32 %v721, %v1917
    %v1919 = vpop.f32.mrb[0].mxu0
    %v1920 = vadd.f32 %v723, %v1919
    %v1921 = vpop.f32.mrb[0].mxu0
    %v1922 = vadd.f32 %v725, %v1921
    %v1923 = vpop.f32.mrb[0].mxu0
    %v1924 = vadd.f32 %v727, %v1923
    %1925 = vmatprep.mubr.bf16.mxu0 %v975
    %1926 = vmatmul.mubr.bf16.gmra.mrb[0].mxu0 %v974
    %v1927 = vpop.f32.mrb[0].mxu0
    %v1928 = vadd.f32 %v731, %v1927
    %v1929 = vpop.f32.mrb[0].mxu0
    %v1930 = vadd.f32 %v733, %v1929
    %v1931 = vpop.f32.mrb[0].mxu0
    %v1932 = vadd.f32 %v735, %v1931
    %v1933 = vpop.f32.mrb[0].mxu0
    %v1934 = vadd.f32 %v737, %v1933
    %1935 = vmatprep.mubr.bf16.mxu0 %v978
    %1936 = vmatmul.mubr.bf16.gmra.mrb[0].mxu0 %v977
    %v1937 = vpop.f32.mrb[0].mxu0
    %v1938 = vadd.f32 %v741, %v1937
    %v1939 = vpop.f32.mrb[0].mxu0
    %v1940 = vadd.f32 %v743, %v1939
    %v1941 = vpop.f32.mrb[0].mxu0
    %v1942 = vadd.f32 %v745, %v1941
    %v1943 = vpop.f32.mrb[0].mxu0
    %v1944 = vadd.f32 %v747, %v1943
    %1945 = vmatprep.mubr.bf16.mxu0 %v981
    %1946 = vmatmul.mubr.bf16.gmra.mrb[0].mxu0 %v980
    %v1947 = vpop.f32.mrb[0].mxu0
    %v1948 = vadd.f32 %v751, %v1947
    %v1949 = vpop.f32.mrb[0].mxu0
    %v1950 = vadd.f32 %v753, %v1949
    %v1951 = vpop.f32.mrb[0].mxu0
    %v1952 = vadd.f32 %v755, %v1951
    %v1953 = vpop.f32.mrb[0].mxu0
    %v1954 = vadd.f32 %v757, %v1953
    %1955 = vmatprep.mubr.bf16.mxu0 %v984
    %1956 = vmatmul.mubr.bf16.gmra.mrb[0].mxu0 %v983
    %v1957 = vpop.f32.mrb[0].mxu0
    %v1958 = vadd.f32 %v761, %v1957
    %v1959 = vpop.f32.mrb[0].mxu0
    %v1960 = vadd.f32 %v763, %v1959
    %v1961 = vpop.f32.mrb[0].mxu0
    %v1962 = vadd.f32 %v765, %v1961
    %v1963 = vpop.f32.mrb[0].mxu0
    %v1964 = vadd.f32 %v767, %v1963
    %1965 = vdwg.mxu0
    %1966 = vmatprep.subr.bf16.mxu0 %v1461
    %1967 = vmatpush1.bf16.msra.mxu0 %v1460
    %1968 = vmatprep.subr.bf16.mxu0 %v1467
    %1969 = vmatpush1.bf16.msra.mxu0 %v1466
    %1970 = vmatprep.subr.bf16.mxu0 %v1473
    %1971 = vmatpush1.bf16.msra.mxu0 %v1472
    %1972 = vmatprep.subr.bf16.mxu0 %v1479
    %1973 = vmatpush1.bf16.msra.mxu0 %v1478
    %1974 = vmatprep.subr.bf16.mxu0 0
    %1975 = vmatpush1.bf16.msra.mxu0 0
    %1976 = vmatprep.subr.bf16.mxu0 0
    %1977 = vmatpush1.bf16.msra.mxu0 0
    %1978 = vmatprep.subr.bf16.mxu0 0
    %1979 = vmatpush1.bf16.msra.mxu0 0
    %1980 = vmatprep.subr.bf16.mxu0 0
    %1981 = vmatpush1.bf16.msra.mxu0 0
    %1982 = vmatprep.subr.bf16.mxu0 0
    %1983 = vmatpush1.bf16.msra.mxu0 0
    %1984 = vmatprep.subr.bf16.mxu0 0
    %1985 = vmatpush1.bf16.msra.mxu0 0
    %1986 = vmatprep.subr.bf16.mxu0 0
    %1987 = vmatpush1.bf16.msra.mxu0 0
    %1988 = vmatprep.subr.bf16.mxu0 0
    %1989 = vmatpush1.bf16.msra.mxu0 0
    %1990 = vmatprep.subr.bf16.mxu0 0
    %1991 = vmatpush1.bf16.msra.mxu0 0
    %1992 = vmatprep.subr.bf16.mxu0 0
    %1993 = vmatpush1.bf16.msra.mxu0 0
    %1994 = vmatprep.subr.bf16.mxu0 0
    %1995 = vmatpush1.bf16.msra.mxu0 0
    %1996 = vmatprep.subr.bf16.mxu0 0
    %1997 = vmatpush1.bf16.msra.mxu0 0
    %1998 = vmatprep.mubr.bf16.mxu0 0
    %1999 = vmatmul.mubr.bf16.gmra.mrb[0].mxu0 %v1604
    %v2000 = vpop.f32.mrb[0].mxu0
    %v2001 = vadd.f32 %v1888, %v2000
    %v2002 = vpop.f32.mrb[0].mxu0
    %v2003 = vadd.f32 %v1890, %v2002
    %v2004 = vpop.f32.mrb[0].mxu0
    %v2005 = vadd.f32 %v1892, %v2004
    %v2006 = vpop.f32.mrb[0].mxu0
    %v2007 = vadd.f32 %v1894, %v2006
    %2008 = vmatprep.mubr.bf16.mxu0 0
    %2009 = vmatmul.mubr.bf16.gmra.mrb[0].mxu0 %v1607
    %v2010 = vpop.f32.mrb[0].mxu0
    %v2011 = vadd.f32 %v1898, %v2010
    %v2012 = vpop.f32.mrb[0].mxu0
    %v2013 = vadd.f32 %v1900, %v2012
    %v2014 = vpop.f32.mrb[0].mxu0
    %v2015 = vadd.f32 %v1902, %v2014
    %v2016 = vpop.f32.mrb[0].mxu0
    %v2017 = vadd.f32 %v1904, %v2016
    %2018 = vmatprep.mubr.bf16.mxu0 0
    %2019 = vmatmul.mubr.bf16.gmra.mrb[0].mxu0 %v1610
    %v2020 = vpop.f32.mrb[0].mxu0
    %v2021 = vadd.f32 %v1908, %v2020
    %v2022 = vpop.f32.mrb[0].mxu0
    %v2023 = vadd.f32 %v1910, %v2022
    %v2024 = vpop.f32.mrb[0].mxu0
    %v2025 = vadd.f32 %v1912, %v2024
    %v2026 = vpop.f32.mrb[0].mxu0
    %v2027 = vadd.f32 %v1914, %v2026
    %2028 = vmatprep.mubr.bf16.mxu0 0
    %2029 = vmatmul.mubr.bf16.gmra.mrb[0].mxu0 %v1613
    %v2030 = vpop.f32.mrb[0].mxu0
    %v2031 = vadd.f32 %v1918, %v2030
    %v2032 = vpop.f32.mrb[0].mxu0
    %v2033 = vadd.f32 %v1920, %v2032
    %v2034 = vpop.f32.mrb[0].mxu0
    %v2035 = vadd.f32 %v1922, %v2034
    %v2036 = vpop.f32.mrb[0].mxu0
    %v2037 = vadd.f32 %v1924, %v2036
    %2038 = vmatprep.mubr.bf16.mxu0 0
    %2039 = vmatmul.mubr.bf16.gmra.mrb[0].mxu0 %v1616
    %v2040 = vpop.f32.mrb[0].mxu0
    %v2041 = vadd.f32 %v1928, %v2040
    %v2042 = vpop.f32.mrb[0].mxu0
    %v2043 = vadd.f32 %v1930, %v2042
    %v2044 = vpop.f32.mrb[0].mxu0
    %v2045 = vadd.f32 %v1932, %v2044
    %v2046 = vpop.f32.mrb[0].mxu0
    %v2047 = vadd.f32 %v1934, %v2046
    %2048 = vmatprep.mubr.bf16.mxu0 0
    %2049 = vmatmul.mubr.bf16.gmra.mrb[0].mxu0 %v1619
    %v2050 = vpop.f32.mrb[0].mxu0
    %v2051 = vadd.f32 %v1938, %v2050
    %v2052 = vpop.f32.mrb[0].mxu0
    %v2053 = vadd.f32 %v1940, %v2052
    %v2054 = vpop.f32.mrb[0].mxu0
    %v2055 = vadd.f32 %v1942, %v2054
    %v2056 = vpop.f32.mrb[0].mxu0
    %v2057 = vadd.f32 %v1944, %v2056
    %2058 = vmatprep.mubr.bf16.mxu0 0
    %2059 = vmatmul.mubr.bf16.gmra.mrb[0].mxu0 %v1622
    %v2060 = vpop.f32.mrb[0].mxu0
    %v2061 = vadd.f32 %v1948, %v2060
    %v2062 = vpop.f32.mrb[0].mxu0
    %v2063 = vadd.f32 %v1950, %v2062
    %v2064 = vpop.f32.mrb[0].mxu0
    %v2065 = vadd.f32 %v1952, %v2064
    %v2066 = vpop.f32.mrb[0].mxu0
    %v2067 = vadd.f32 %v1954, %v2066
    %2068 = vmatprep.mubr.bf16.mxu0 0
    %2069 = vmatmul.mubr.bf16.gmra.mrb[0].mxu0 %v1625
    %v2070 = vpop.f32.mrb[0].mxu0
    %v2071 = vadd.f32 %v1958, %v2070
    %v2072 = vpop.f32.mrb[0].mxu0
    %v2073 = vadd.f32 %v1960, %v2072
    %v2074 = vpop.f32.mrb[0].mxu0
    %v2075 = vadd.f32 %v1962, %v2074
    %v2076 = vpop.f32.mrb[0].mxu0
    %v2077 = vadd.f32 %v1964, %v2076
    %2078 = vdwg.mxu0
    %2079 = vmatprep.subr.bf16.mxu0 %v1367
    %2080 = vmatpush1.bf16.msra.mxu0 %v1366
    %2081 = vmatprep.subr.bf16.mxu0 %v1373
    %2082 = vmatpush1.bf16.msra.mxu0 %v1372
    %2083 = vmatprep.subr.bf16.mxu0 %v1379
    %2084 = vmatpush1.bf16.msra.mxu0 %v1378
    %2085 = vmatprep.subr.bf16.mxu0 %v1385
    %2086 = vmatpush1.bf16.msra.mxu0 %v1384
    %2087 = vmatprep.subr.bf16.mxu0 %v1391
    %2088 = vmatpush1.bf16.msra.mxu0 %v1390
    %2089 = vmatprep.subr.bf16.mxu0 %v1397
    %2090 = vmatpush1.bf16.msra.mxu0 %v1396
    %2091 = vmatprep.subr.bf16.mxu0 %v1403
    %2092 = vmatpush1.bf16.msra.mxu0 %v1402
    %2093 = vmatprep.subr.bf16.mxu0 %v1409
    %2094 = vmatpush1.bf16.msra.mxu0 %v1408
    %2095 = vmatprep.subr.bf16.mxu0 %v1415
    %2096 = vmatpush1.bf16.msra.mxu0 %v1414
    %2097 = vmatprep.subr.bf16.mxu0 %v1421
    %2098 = vmatpush1.bf16.msra.mxu0 %v1420
    %2099 = vmatprep.subr.bf16.mxu0 %v1427
    %2100 = vmatpush1.bf16.msra.mxu0 %v1426
    %2101 = vmatprep.subr.bf16.mxu0 %v1433
    %2102 = vmatpush1.bf16.msra.mxu0 %v1432
    %2103 = vmatprep.subr.bf16.mxu0 %v1439
    %2104 = vmatpush1.bf16.msra.mxu0 %v1438
    %2105 = vmatprep.subr.bf16.mxu0 %v1445
    %2106 = vmatpush1.bf16.msra.mxu0 %v1444
    %2107 = vmatprep.subr.bf16.mxu0 %v1451
    %2108 = vmatpush1.bf16.msra.mxu0 %v1450
    %2109 = vmatprep.subr.bf16.mxu0 %v1457
    %2110 = vmatpush1.bf16.msra.mxu0 %v1456
    %2111 = vmatprep.mubr.bf16.mxu0 %v963
    %2112 = vmatmul.mubr.bf16.gmra.mrb[0].mxu0 %v962
    %v2113 = vpop.f32.mrb[0].mxu0
    %v2114 = vadd.f32 %v804, %v2113
    %v2115 = vpop.f32.mrb[0].mxu0
    %v2116 = vadd.f32 %v806, %v2115
    %v2117 = vpop.f32.mrb[0].mxu0
    %v2118 = vadd.f32 %v808, %v2117
    %v2119 = vpop.f32.mrb[0].mxu0
    %v2120 = vadd.f32 %v810, %v2119
    %2121 = vmatprep.mubr.bf16.mxu0 %v966
    %2122 = vmatmul.mubr.bf16.gmra.mrb[0].mxu0 %v965
    %v2123 = vpop.f32.mrb[0].mxu0
    %v2124 = vadd.f32 %v814, %v2123
    %v2125 = vpop.f32.mrb[0].mxu0
    %v2126 = vadd.f32 %v816, %v2125
    %v2127 = vpop.f32.mrb[0].mxu0
    %v2128 = vadd.f32 %v818, %v2127
    %v2129 = vpop.f32.mrb[0].mxu0
    %v2130 = vadd.f32 %v820, %v2129
    %2131 = vmatprep.mubr.bf16.mxu0 %v969
    %2132 = vmatmul.mubr.bf16.gmra.mrb[0].mxu0 %v968
    %v2133 = vpop.f32.mrb[0].mxu0
    %v2134 = vadd.f32 %v824, %v2133
    %v2135 = vpop.f32.mrb[0].mxu0
    %v2136 = vadd.f32 %v826, %v2135
    %v2137 = vpop.f32.mrb[0].mxu0
    %v2138 = vadd.f32 %v828, %v2137
    %v2139 = vpop.f32.mrb[0].mxu0
    %v2140 = vadd.f32 %v830, %v2139
    %2141 = vmatprep.mubr.bf16.mxu0 %v972
    %2142 = vmatmul.mubr.bf16.gmra.mrb[0].mxu0 %v971
    %v2143 = vpop.f32.mrb[0].mxu0
    %v2144 = vadd.f32 %v834, %v2143
    %v2145 = vpop.f32.mrb[0].mxu0
    %v2146 = vadd.f32 %v836, %v2145
    %v2147 = vpop.f32.mrb[0].mxu0
    %v2148 = vadd.f32 %v838, %v2147
    %v2149 = vpop.f32.mrb[0].mxu0
    %v2150 = vadd.f32 %v840, %v2149
    %2151 = vmatprep.mubr.bf16.mxu0 %v975
    %2152 = vmatmul.mubr.bf16.gmra.mrb[0].mxu0 %v974
    %v2153 = vpop.f32.mrb[0].mxu0
    %v2154 = vadd.f32 %v844, %v2153
    %v2155 = vpop.f32.mrb[0].mxu0
    %v2156 = vadd.f32 %v846, %v2155
    %v2157 = vpop.f32.mrb[0].mxu0
    %v2158 = vadd.f32 %v848, %v2157
    %v2159 = vpop.f32.mrb[0].mxu0
    %v2160 = vadd.f32 %v850, %v2159
    %2161 = vmatprep.mubr.bf16.mxu0 %v978
    %2162 = vmatmul.mubr.bf16.gmra.mrb[0].mxu0 %v977
    %v2163 = vpop.f32.mrb[0].mxu0
    %v2164 = vadd.f32 %v854, %v2163
    %v2165 = vpop.f32.mrb[0].mxu0
    %v2166 = vadd.f32 %v856, %v2165
    %v2167 = vpop.f32.mrb[0].mxu0
    %v2168 = vadd.f32 %v858, %v2167
    %v2169 = vpop.f32.mrb[0].mxu0
    %v2170 = vadd.f32 %v860, %v2169
    %2171 = vmatprep.mubr.bf16.mxu0 %v981
    %2172 = vmatmul.mubr.bf16.gmra.mrb[0].mxu0 %v980
    %v2173 = vpop.f32.mrb[0].mxu0
    %v2174 = vadd.f32 %v864, %v2173
    %v2175 = vpop.f32.mrb[0].mxu0
    %v2176 = vadd.f32 %v866, %v2175
    %v2177 = vpop.f32.mrb[0].mxu0
    %v2178 = vadd.f32 %v868, %v2177
    %v2179 = vpop.f32.mrb[0].mxu0
    %v2180 = vadd.f32 %v870, %v2179
    %2181 = vmatprep.mubr.bf16.mxu0 %v984
    %2182 = vmatmul.mubr.bf16.gmra.mrb[0].mxu0 %v983
    %v2183 = vpop.f32.mrb[0].mxu0
    %v2184 = vadd.f32 %v874, %v2183
    %v2185 = vpop.f32.mrb[0].mxu0
    %v2186 = vadd.f32 %v876, %v2185
    %v2187 = vpop.f32.mrb[0].mxu0
    %v2188 = vadd.f32 %v878, %v2187
    %v2189 = vpop.f32.mrb[0].mxu0
    %v2190 = vadd.f32 %v880, %v2189
    %2191 = vdwg.mxu0
    %2192 = vmatprep.subr.bf16.mxu0 %v1463
    %2193 = vmatpush1.bf16.msra.mxu0 %v1462
    %2194 = vmatprep.subr.bf16.mxu0 %v1469
    %2195 = vmatpush1.bf16.msra.mxu0 %v1468
    %2196 = vmatprep.subr.bf16.mxu0 %v1475
    %2197 = vmatpush1.bf16.msra.mxu0 %v1474
    %2198 = vmatprep.subr.bf16.mxu0 %v1481
    %2199 = vmatpush1.bf16.msra.mxu0 %v1480
    %2200 = vmatprep.subr.bf16.mxu0 0
    %2201 = vmatpush1.bf16.msra.mxu0 0
    %2202 = vmatprep.subr.bf16.mxu0 0
    %2203 = vmatpush1.bf16.msra.mxu0 0
    %2204 = vmatprep.subr.bf16.mxu0 0
    %2205 = vmatpush1.bf16.msra.mxu0 0
    %2206 = vmatprep.subr.bf16.mxu0 0
    %2207 = vmatpush1.bf16.msra.mxu0 0
    %2208 = vmatprep.subr.bf16.mxu0 0
    %2209 = vmatpush1.bf16.msra.mxu0 0
    %2210 = vmatprep.subr.bf16.mxu0 0
    %2211 = vmatpush1.bf16.msra.mxu0 0
    %2212 = vmatprep.subr.bf16.mxu0 0
    %2213 = vmatpush1.bf16.msra.mxu0 0
    %2214 = vmatprep.subr.bf16.mxu0 0
    %2215 = vmatpush1.bf16.msra.mxu0 0
    %2216 = vmatprep.subr.bf16.mxu0 0
    %2217 = vmatpush1.bf16.msra.mxu0 0
    %2218 = vmatprep.subr.bf16.mxu0 0
    %2219 = vmatpush1.bf16.msra.mxu0 0
    %2220 = vmatprep.subr.bf16.mxu0 0
    %2221 = vmatpush1.bf16.msra.mxu0 0
    %2222 = vmatprep.subr.bf16.mxu0 0
    %2223 = vmatpush1.bf16.msra.mxu0 0
    %2224 = vmatprep.mubr.bf16.mxu0 0
    %2225 = vmatmul.mubr.bf16.gmra.mrb[0].mxu0 %v1604
    %v2226 = vpop.f32.mrb[0].mxu0
    %v2227 = vadd.f32 %v2114, %v2226
    %v2228 = vpop.f32.mrb[0].mxu0
    %v2229 = vadd.f32 %v2116, %v2228
    %v2230 = vpop.f32.mrb[0].mxu0
    %v2231 = vadd.f32 %v2118, %v2230
    %v2232 = vpop.f32.mrb[0].mxu0
    %v2233 = vadd.f32 %v2120, %v2232
    %2234 = vmatprep.mubr.bf16.mxu0 0
    %2235 = vmatmul.mubr.bf16.gmra.mrb[0].mxu0 %v1607
    %v2236 = vpop.f32.mrb[0].mxu0
    %v2237 = vadd.f32 %v2124, %v2236
    %v2238 = vpop.f32.mrb[0].mxu0
    %v2239 = vadd.f32 %v2126, %v2238
    %v2240 = vpop.f32.mrb[0].mxu0
    %v2241 = vadd.f32 %v2128, %v2240
    %v2242 = vpop.f32.mrb[0].mxu0
    %v2243 = vadd.f32 %v2130, %v2242
    %2244 = vmatprep.mubr.bf16.mxu0 0
    %2245 = vmatmul.mubr.bf16.gmra.mrb[0].mxu0 %v1610
    %v2246 = vpop.f32.mrb[0].mxu0
    %v2247 = vadd.f32 %v2134, %v2246
    %v2248 = vpop.f32.mrb[0].mxu0
    %v2249 = vadd.f32 %v2136, %v2248
    %v2250 = vpop.f32.mrb[0].mxu0
    %v2251 = vadd.f32 %v2138, %v2250
    %v2252 = vpop.f32.mrb[0].mxu0
    %v2253 = vadd.f32 %v2140, %v2252
    %2254 = vmatprep.mubr.bf16.mxu0 0
    %2255 = vmatmul.mubr.bf16.gmra.mrb[0].mxu0 %v1613
    %v2256 = vpop.f32.mrb[0].mxu0
    %v2257 = vadd.f32 %v2144, %v2256
    %v2258 = vpop.f32.mrb[0].mxu0
    %v2259 = vadd.f32 %v2146, %v2258
    %v2260 = vpop.f32.mrb[0].mxu0
    %v2261 = vadd.f32 %v2148, %v2260
    %v2262 = vpop.f32.mrb[0].mxu0
    %v2263 = vadd.f32 %v2150, %v2262
    %2264 = vmatprep.mubr.bf16.mxu0 0
    %2265 = vmatmul.mubr.bf16.gmra.mrb[0].mxu0 %v1616
    %v2266 = vpop.f32.mrb[0].mxu0
    %v2267 = vadd.f32 %v2154, %v2266
    %v2268 = vpop.f32.mrb[0].mxu0
    %v2269 = vadd.f32 %v2156, %v2268
    %v2270 = vpop.f32.mrb[0].mxu0
    %v2271 = vadd.f32 %v2158, %v2270
    %v2272 = vpop.f32.mrb[0].mxu0
    %v2273 = vadd.f32 %v2160, %v2272
    %2274 = vmatprep.mubr.bf16.mxu0 0
    %2275 = vmatmul.mubr.bf16.gmra.mrb[0].mxu0 %v1619
    %v2276 = vpop.f32.mrb[0].mxu0
    %v2277 = vadd.f32 %v2164, %v2276
    %v2278 = vpop.f32.mrb[0].mxu0
    %v2279 = vadd.f32 %v2166, %v2278
    %v2280 = vpop.f32.mrb[0].mxu0
    %v2281 = vadd.f32 %v2168, %v2280
    %v2282 = vpop.f32.mrb[0].mxu0
    %v2283 = vadd.f32 %v2170, %v2282
    %2284 = vmatprep.mubr.bf16.mxu0 0
    %2285 = vmatmul.mubr.bf16.gmra.mrb[0].mxu0 %v1622
    %v2286 = vpop.f32.mrb[0].mxu0
    %v2287 = vadd.f32 %v2174, %v2286
    %v2288 = vpop.f32.mrb[0].mxu0
    %v2289 = vadd.f32 %v2176, %v2288
    %v2290 = vpop.f32.mrb[0].mxu0
    %v2291 = vadd.f32 %v2178, %v2290
    %v2292 = vpop.f32.mrb[0].mxu0
    %v2293 = vadd.f32 %v2180, %v2292
    %2294 = vmatprep.mubr.bf16.mxu0 0
    %2295 = vmatmul.mubr.bf16.gmra.mrb[0].mxu0 %v1625
    %v2296 = vpop.f32.mrb[0].mxu0
    %v2297 = vadd.f32 %v2184, %v2296
    %v2298 = vpop.f32.mrb[0].mxu0
    %v2299 = vadd.f32 %v2186, %v2298
    %v2300 = vpop.f32.mrb[0].mxu0
    %v2301 = vadd.f32 %v2188, %v2300
    %v2302 = vpop.f32.mrb[0].mxu0
    %v2303 = vadd.f32 %v2190, %v2302
    %2304 = vdwg.mxu0
    %v2305 = vld [vmem:[%s5] sm:$0x3f]
    %v2307 = vlaneseq
    %v2308 = vshrl.u32 %v2307, 7
    %v2309 = vsub.s32 0, %v2308
    %v2310 = vrot.slane %v2305, %v2309
    %v2311 = vlaneseq
    %v2312 = vshrl.u32 %v2311, 7
    %v2313 = vsub.s32 1, %v2312
    %v2314 = vrot.slane %v2305, %v2313
    %v2315 = vlaneseq
    %v2316 = vshrl.u32 %v2315, 7
    %v2317 = vsub.s32 2, %v2316
    %v2318 = vrot.slane %v2305, %v2317
    %v2319 = vlaneseq
    %v2320 = vshrl.u32 %v2319, 7
    %v2321 = vsub.s32 3, %v2320
    %v2322 = vrot.slane %v2305, %v2321
    %v2323 = vlaneseq
    %v2324 = vshrl.u32 %v2323, 7
    %v2325 = vsub.s32 4, %v2324
    %v2326 = vrot.slane %v2305, %v2325
    %v2327 = vlaneseq
    %v2328 = vshrl.u32 %v2327, 7
    %v2329 = vsub.s32 5, %v2328
    %v2330 = vrot.slane %v2305, %v2329
    %v2337 = vadd.f32 %v1775, %v2310
    %v2338 = vadd.f32 %v1777, %v2314
    %v2339 = vadd.f32 %v2001, %v2318
    %v2340 = vadd.f32 %v2003, %v2322
    %v2341 = vadd.f32 %v2227, %v2326
    %v2342 = vadd.f32 %v2229, %v2330
    %v2343 = vadd.f32 %v1779, %v2310
    %v2344 = vadd.f32 %v1781, %v2314
    %v2345 = vadd.f32 %v2005, %v2318
    %v2346 = vadd.f32 %v2007, %v2322
    %v2347 = vadd.f32 %v2231, %v2326
    %v2348 = vadd.f32 %v2233, %v2330
    %v2349 = vadd.f32 %v1785, %v2310
    %v2350 = vadd.f32 %v1787, %v2314
    %v2351 = vadd.f32 %v2011, %v2318
    %v2352 = vadd.f32 %v2013, %v2322
    %v2353 = vadd.f32 %v2237, %v2326
    %v2354 = vadd.f32 %v2239, %v2330
    %v2355 = vadd.f32 %v1789, %v2310
    %v2356 = vadd.f32 %v1791, %v2314
    %v2357 = vadd.f32 %v2015, %v2318
    %v2358 = vadd.f32 %v2017, %v2322
    %v2359 = vadd.f32 %v2241, %v2326
    %v2360 = vadd.f32 %v2243, %v2330
    %v2361 = vadd.f32 %v1795, %v2310
    %v2362 = vadd.f32 %v1797, %v2314
    %v2363 = vadd.f32 %v2021, %v2318
    %v2364 = vadd.f32 %v2023, %v2322
    %v2365 = vadd.f32 %v2247, %v2326
    %v2366 = vadd.f32 %v2249, %v2330
    %v2367 = vadd.f32 %v1799, %v2310
    %v2368 = vadd.f32 %v1801, %v2314
    %v2369 = vadd.f32 %v2025, %v2318
    %v2370 = vadd.f32 %v2027, %v2322
    %v2371 = vadd.f32 %v2251, %v2326
    %v2372 = vadd.f32 %v2253, %v2330
    %v2373 = vadd.f32 %v1805, %v2310
    %v2374 = vadd.f32 %v1807, %v2314
    %v2375 = vadd.f32 %v2031, %v2318
    %v2376 = vadd.f32 %v2033, %v2322
    %v2377 = vadd.f32 %v2257, %v2326
    %v2378 = vadd.f32 %v2259, %v2330
    %v2379 = vadd.f32 %v1809, %v2310
    %v2380 = vadd.f32 %v1811, %v2314
    %v2381 = vadd.f32 %v2035, %v2318
    %v2382 = vadd.f32 %v2037, %v2322
    %v2383 = vadd.f32 %v2261, %v2326
    %v2384 = vadd.f32 %v2263, %v2330
    %v2385 = vadd.f32 %v1815, %v2310
    %v2386 = vadd.f32 %v1817, %v2314
    %v2387 = vadd.f32 %v2041, %v2318
    %v2388 = vadd.f32 %v2043, %v2322
    %v2389 = vadd.f32 %v2267, %v2326
    %v2390 = vadd.f32 %v2269, %v2330
    %v2391 = vadd.f32 %v1819, %v2310
    %v2392 = vadd.f32 %v1821, %v2314
    %v2393 = vadd.f32 %v2045, %v2318
    %v2394 = vadd.f32 %v2047, %v2322
    %v2395 = vadd.f32 %v2271, %v2326
    %v2396 = vadd.f32 %v2273, %v2330
    %v2397 = vadd.f32 %v1825, %v2310
    %v2398 = vadd.f32 %v1827, %v2314
    %v2399 = vadd.f32 %v2051, %v2318
    %v2400 = vadd.f32 %v2053, %v2322
    %v2401 = vadd.f32 %v2277, %v2326
    %v2402 = vadd.f32 %v2279, %v2330
    %v2403 = vadd.f32 %v1829, %v2310
    %v2404 = vadd.f32 %v1831, %v2314
    %v2405 = vadd.f32 %v2055, %v2318
    %v2406 = vadd.f32 %v2057, %v2322
    %v2407 = vadd.f32 %v2281, %v2326
    %v2408 = vadd.f32 %v2283, %v2330
    %v2409 = vadd.f32 %v1835, %v2310
    %v2410 = vadd.f32 %v1837, %v2314
    %v2411 = vadd.f32 %v2061, %v2318
    %v2412 = vadd.f32 %v2063, %v2322
    %v2413 = vadd.f32 %v2287, %v2326
    %v2414 = vadd.f32 %v2289, %v2330
    %v2415 = vadd.f32 %v1839, %v2310
    %v2416 = vadd.f32 %v1841, %v2314
    %v2417 = vadd.f32 %v2065, %v2318
    %v2418 = vadd.f32 %v2067, %v2322
    %v2419 = vadd.f32 %v2291, %v2326
    %v2420 = vadd.f32 %v2293, %v2330
    %v2421 = vadd.f32 %v1845, %v2310
    %v2422 = vadd.f32 %v1847, %v2314
    %v2423 = vadd.f32 %v2071, %v2318
    %v2424 = vadd.f32 %v2073, %v2322
    %v2425 = vadd.f32 %v2297, %v2326
    %v2426 = vadd.f32 %v2299, %v2330
    %v2427 = vadd.f32 %v1849, %v2310
    %v2428 = vadd.f32 %v1851, %v2314
    %v2429 = vadd.f32 %v2075, %v2318
    %v2430 = vadd.f32 %v2077, %v2322
    %v2431 = vadd.f32 %v2301, %v2326
    %v2432 = vadd.f32 %v2303, %v2330
    %v2433 = vtanh.pop %v2337
    %v2434 = vtanh.pop %v2338
    %v2435 = vtanh.pop %v2339
    %v2436 = vtanh.pop %v2340
    %v2437 = vtanh.pop %v2341
    %v2438 = vtanh.pop %v2342
    %v2439 = vtanh.pop %v2343
    %v2440 = vtanh.pop %v2344
    %v2441 = vtanh.pop %v2345
    %v2442 = vtanh.pop %v2346
    %v2443 = vtanh.pop %v2347
    %v2444 = vtanh.pop %v2348
    %v2445 = vtanh.pop %v2349
    %v2446 = vtanh.pop %v2350
    %v2447 = vtanh.pop %v2351
    %v2448 = vtanh.pop %v2352
    %v2449 = vtanh.pop %v2353
    %v2450 = vtanh.pop %v2354
    %v2451 = vtanh.pop %v2355
    %v2452 = vtanh.pop %v2356
    %v2453 = vtanh.pop %v2357
    %v2454 = vtanh.pop %v2358
    %v2455 = vtanh.pop %v2359
    %v2456 = vtanh.pop %v2360
    %v2457 = vtanh.pop %v2361
    %v2458 = vtanh.pop %v2362
    %v2459 = vtanh.pop %v2363
    %v2460 = vtanh.pop %v2364
    %v2461 = vtanh.pop %v2365
    %v2462 = vtanh.pop %v2366
    %v2463 = vtanh.pop %v2367
    %v2464 = vtanh.pop %v2368
    %v2465 = vtanh.pop %v2369
    %v2466 = vtanh.pop %v2370
    %v2467 = vtanh.pop %v2371
    %v2468 = vtanh.pop %v2372
    %v2469 = vtanh.pop %v2373
    %v2470 = vtanh.pop %v2374
    %v2471 = vtanh.pop %v2375
    %v2472 = vtanh.pop %v2376
    %v2473 = vtanh.pop %v2377
    %v2474 = vtanh.pop %v2378
    %v2475 = vtanh.pop %v2379
    %v2476 = vtanh.pop %v2380
    %v2477 = vtanh.pop %v2381
    %v2478 = vtanh.pop %v2382
    %v2479 = vtanh.pop %v2383
    %v2480 = vtanh.pop %v2384
    %v2481 = vtanh.pop %v2385
    %v2482 = vtanh.pop %v2386
    %v2483 = vtanh.pop %v2387
    %v2484 = vtanh.pop %v2388
    %v2485 = vtanh.pop %v2389
    %v2486 = vtanh.pop %v2390
    %v2487 = vtanh.pop %v2391
    %v2488 = vtanh.pop %v2392
    %v2489 = vtanh.pop %v2393
    %v2490 = vtanh.pop %v2394
    %v2491 = vtanh.pop %v2395
    %v2492 = vtanh.pop %v2396
    %v2493 = vtanh.pop %v2397
    %v2494 = vtanh.pop %v2398
    %v2495 = vtanh.pop %v2399
    %v2496 = vtanh.pop %v2400
    %v2497 = vtanh.pop %v2401
    %v2498 = vtanh.pop %v2402
    %v2499 = vtanh.pop %v2403
    %v2500 = vtanh.pop %v2404
    %v2501 = vtanh.pop %v2405
    %v2502 = vtanh.pop %v2406
    %v2503 = vtanh.pop %v2407
    %v2504 = vtanh.pop %v2408
    %v2505 = vtanh.pop %v2409
    %v2506 = vtanh.pop %v2410
    %v2507 = vtanh.pop %v2411
    %v2508 = vtanh.pop %v2412
    %v2509 = vtanh.pop %v2413
    %v2510 = vtanh.pop %v2414
    %v2511 = vtanh.pop %v2415
    %v2512 = vtanh.pop %v2416
    %v2513 = vtanh.pop %v2417
    %v2514 = vtanh.pop %v2418
    %v2515 = vtanh.pop %v2419
    %v2516 = vtanh.pop %v2420
    %v2517 = vtanh.pop %v2421
    %v2518 = vtanh.pop %v2422
    %v2519 = vtanh.pop %v2423
    %v2520 = vtanh.pop %v2424
    %v2521 = vtanh.pop %v2425
    %v2522 = vtanh.pop %v2426
    %v2523 = vtanh.pop %v2427
    %v2524 = vtanh.pop %v2428
    %v2525 = vtanh.pop %v2429
    %v2526 = vtanh.pop %v2430
    %v2527 = vtanh.pop %v2431
    %v2528 = vtanh.pop %v2432
    %v2529 = vlaneseq
    %v2530 = vshrl.u32 %v2529, 7
    %v2531 = vadd.s32 %v2530, 8
    %s2532 = smul.u32 0, 16
    %v2533 = vstv %s2532
    %v2534 = vadd.s32 %v2530, %v2533
    %v2535 = vadd.s32 %v2531, %v2533
    %v2536 = vcvt.s32.f32 %v2534
    %v2537 = vcvt.s32.f32 %v2535
    %v2538 = vld [vmem:[%s2] sm:$0xff]
    %v2540 = vcombine.high %v2538, %v2538
    %v2542 = vunpack.c.l.s4 1966171168
    %v2543 = vunpack.c.0.s8 %v2542
    %v2544 = vlaneseq
    %v2545 = vshrl.u32 %v2544, 7
    %v2546 = vsub.s32 %v2543, %v2545
    %v2547 = vrot.slane %v2538, %v2546
    %v2549 = vunpack.c.l.s4 1966171168
    %v2550 = vunpack.c.0.s8 %v2549
    %v2551 = vlaneseq
    %v2552 = vshrl.u32 %v2551, 7
    %v2553 = vsub.s32 %v2550, %v2552
    %v2554 = vrot.slane %v2540, %v2553
    %v2555 = vcombine.high %v2547, %v2547
    %v2556 = vcombine.high %v2554, %v2554
    %v2558 = vunpack.c.l.s4 1966171168
    %v2559 = vunpack.c.0.s8 %v2558
    %v2560 = vlaneseq
    %v2561 = vshrl.u32 %v2560, 7
    %v2562 = vsub.s32 %v2559, %v2561
    %v2563 = vrot.slane %v2547, %v2562
    %v2565 = vunpack.c.l.s4 1966171168
    %v2566 = vunpack.c.0.s8 %v2565
    %v2567 = vlaneseq
    %v2568 = vshrl.u32 %v2567, 7
    %v2569 = vsub.s32 %v2566, %v2568
    %v2570 = vrot.slane %v2554, %v2569
    %v2572 = vunpack.c.l.s4 1966171168
    %v2573 = vunpack.c.0.s8 %v2572
    %v2574 = vlaneseq
    %v2575 = vshrl.u32 %v2574, 7
    %v2576 = vsub.s32 %v2573, %v2575
    %v2577 = vrot.slane %v2555, %v2576
    %v2579 = vunpack.c.l.s4 1966171168
    %v2580 = vunpack.c.0.s8 %v2579
    %v2581 = vlaneseq
    %v2582 = vshrl.u32 %v2581, 7
    %v2583 = vsub.s32 %v2580, %v2582
    %v2584 = vrot.slane %v2556, %v2583
    %v2585 = vcombine.high %v2563, %v2563
    %v2586 = vcombine.high %v2570, %v2570
    %v2587 = vcombine.high %v2577, %v2577
    %v2588 = vcombine.high %v2584, %v2584
    %v2589 = vlaneseq
    %v2590 = vshrl.u32 %v2589, 7
    %v2591 = vsub.s32 0, %v2590
    %v2592 = vrot.slane %v2563, %v2591
    %v2593 = vlaneseq
    %v2594 = vshrl.u32 %v2593, 7
    %v2595 = vsub.s32 0, %v2594
    %v2596 = vrot.slane %v2577, %v2595
    %v2597 = vlaneseq
    %v2598 = vshrl.u32 %v2597, 7
    %v2599 = vsub.s32 0, %v2598
    %v2600 = vrot.slane %v2585, %v2599
    %v2601 = vlaneseq
    %v2602 = vshrl.u32 %v2601, 7
    %v2603 = vsub.s32 0, %v2602
    %v2604 = vrot.slane %v2587, %v2603
    %v2605 = vlaneseq
    %v2606 = vshrl.u32 %v2605, 7
    %v2607 = vsub.s32 0, %v2606
    %v2608 = vrot.slane %v2570, %v2607
    %v2609 = vlaneseq
    %v2610 = vshrl.u32 %v2609, 7
    %v2611 = vsub.s32 0, %v2610
    %v2612 = vrot.slane %v2584, %v2611
    %v2613 = vlaneseq
    %v2614 = vshrl.u32 %v2613, 7
    %v2615 = vsub.s32 0, %v2614
    %v2616 = vrot.slane %v2586, %v2615
    %v2617 = vlaneseq
    %v2618 = vshrl.u32 %v2617, 7
    %v2619 = vsub.s32 0, %v2618
    %v2620 = vrot.slane %v2588, %v2619
    %vm2629 = vcmp.lt.f32.partialorder %v2536, %v2592
    %vm2630 = vcmp.lt.f32.partialorder %v2537, %v2592
    %vm2631 = vcmp.lt.f32.partialorder %v2536, %v2596
    %vm2632 = vcmp.lt.f32.partialorder %v2537, %v2596
    %vm2633 = vcmp.lt.f32.partialorder %v2536, %v2600
    %vm2634 = vcmp.lt.f32.partialorder %v2537, %v2600
    %vm2635 = vcmp.lt.f32.partialorder %v2536, %v2604
    %vm2636 = vcmp.lt.f32.partialorder %v2537, %v2604
    %vm2637 = vcmp.lt.f32.partialorder %v2536, %v2608
    %vm2638 = vcmp.lt.f32.partialorder %v2537, %v2608
    %vm2639 = vcmp.lt.f32.partialorder %v2536, %v2612
    %vm2640 = vcmp.lt.f32.partialorder %v2537, %v2612
    %vm2641 = vcmp.lt.f32.partialorder %v2536, %v2616
    %vm2642 = vcmp.lt.f32.partialorder %v2537, %v2616
    %vm2643 = vcmp.lt.f32.partialorder %v2536, %v2620
    %vm2644 = vcmp.lt.f32.partialorder %v2537, %v2620
    %v2645 = vsel %vm2629, 1, 0
    %v2646 = vsel %vm2630, 1, 0
    %v2647 = vsel %vm2631, 1, 0
    %v2648 = vsel %vm2632, 1, 0
    %v2649 = vsel %vm2633, 1, 0
    %v2650 = vsel %vm2634, 1, 0
    %v2651 = vsel %vm2635, 1, 0
    %v2652 = vsel %vm2636, 1, 0
    %v2653 = vsel %vm2637, 1, 0
    %v2654 = vsel %vm2638, 1, 0
    %v2655 = vsel %vm2639, 1, 0
    %v2656 = vsel %vm2640, 1, 0
    %v2657 = vsel %vm2641, 1, 0
    %v2658 = vsel %vm2642, 1, 0
    %v2659 = vsel %vm2643, 1, 0
    %v2660 = vsel %vm2644, 1, 0
    %v2661 = vcvt.s32.f32 %v2645
    %v2662 = vcvt.s32.f32 %v2646
    %v2663 = vcvt.s32.f32 %v2647
    %v2664 = vcvt.s32.f32 %v2648
    %v2665 = vcvt.s32.f32 %v2649
    %v2666 = vcvt.s32.f32 %v2650
    %v2667 = vcvt.s32.f32 %v2651
    %v2668 = vcvt.s32.f32 %v2652
    %v2669 = vcvt.s32.f32 %v2653
    %v2670 = vcvt.s32.f32 %v2654
    %v2671 = vcvt.s32.f32 %v2655
    %v2672 = vcvt.s32.f32 %v2656
    %v2673 = vcvt.s32.f32 %v2657
    %v2674 = vcvt.s32.f32 %v2658
    %v2675 = vcvt.s32.f32 %v2659
    %v2676 = vcvt.s32.f32 %v2660
    %v2677 = vld [vmem:[#allocation2] sm:$0xff]
    %v2678 = vld [vmem:[#allocation2 + $0x8] sm:$0xff]
    %v2679 = vld [vmem:[#allocation2 + $0x10] sm:$0xff]
    %v2680 = vld [vmem:[#allocation2 + $0x18] sm:$0xff]
    %v2681 = vld [vmem:[#allocation2 + $0x20] sm:$0xff]
    %v2682 = vld [vmem:[#allocation2 + $0x28] sm:$0xff]
    %2684 = vset.pattern.permute.xlu0 0
    %2685 = vperm.xlu0 %2684, %v2661
    %v2686 = vpop.permute.xlu0 %2685
    %2689 = vset.pattern.permute.xlu0 0
    %2690 = vperm.xlu0 %2689, %v2662
    %v2691 = vpop.permute.xlu0 %2690
    %2694 = vset.pattern.permute.xlu0 0
    %2695 = vperm.xlu0 %2694, %v2663
    %v2696 = vpop.permute.xlu0 %2695
    %2699 = vset.pattern.permute.xlu0 0
    %2700 = vperm.xlu0 %2699, %v2664
    %v2701 = vpop.permute.xlu0 %2700
    %2704 = vset.pattern.permute.xlu0 0
    %2705 = vperm.xlu0 %2704, %v2665
    %v2706 = vpop.permute.xlu0 %2705
    %2709 = vset.pattern.permute.xlu0 0
    %2710 = vperm.xlu0 %2709, %v2666
    %v2711 = vpop.permute.xlu0 %2710
    %2714 = vset.pattern.permute.xlu0 0
    %2715 = vperm.xlu0 %2714, %v2667
    %v2716 = vpop.permute.xlu0 %2715
    %2719 = vset.pattern.permute.xlu0 0
    %2720 = vperm.xlu0 %2719, %v2668
    %v2721 = vpop.permute.xlu0 %2720
    %2724 = vset.pattern.permute.xlu0 0
    %2725 = vperm.xlu0 %2724, %v2669
    %v2726 = vpop.permute.xlu0 %2725
    %2729 = vset.pattern.permute.xlu0 0
    %2730 = vperm.xlu0 %2729, %v2670
    %v2731 = vpop.permute.xlu0 %2730
    %2734 = vset.pattern.permute.xlu0 0
    %2735 = vperm.xlu0 %2734, %v2671
    %v2736 = vpop.permute.xlu0 %2735
    %2739 = vset.pattern.permute.xlu0 0
    %2740 = vperm.xlu0 %2739, %v2672
    %v2741 = vpop.permute.xlu0 %2740
    %2744 = vset.pattern.permute.xlu0 0
    %2745 = vperm.xlu0 %2744, %v2673
    %v2746 = vpop.permute.xlu0 %2745
    %2749 = vset.pattern.permute.xlu0 0
    %2750 = vperm.xlu0 %2749, %v2674
    %v2751 = vpop.permute.xlu0 %2750
    %2754 = vset.pattern.permute.xlu0 0
    %2755 = vperm.xlu0 %2754, %v2675
    %v2756 = vpop.permute.xlu0 %2755
    %2759 = vset.pattern.permute.xlu0 0
    %2760 = vperm.xlu0 %2759, %v2676
    %v2761 = vpop.permute.xlu0 %2760
    %v2763 = vmul.f32 %v2433, %v2686
    %v2764 = vmul.f32 %v2434, %v2686
    %v2765 = vmul.f32 %v2435, %v2686
    %v2766 = vmul.f32 %v2436, %v2686
    %v2767 = vmul.f32 %v2437, %v2686
    %v2768 = vmul.f32 %v2438, %v2686
    %v2769 = vmul.f32 %v2439, %v2691
    %v2770 = vmul.f32 %v2440, %v2691
    %v2771 = vmul.f32 %v2441, %v2691
    %v2772 = vmul.f32 %v2442, %v2691
    %v2773 = vmul.f32 %v2443, %v2691
    %v2774 = vmul.f32 %v2444, %v2691
    %v2775 = vmul.f32 %v2445, %v2696
    %v2776 = vmul.f32 %v2446, %v2696
    %v2777 = vmul.f32 %v2447, %v2696
    %v2778 = vmul.f32 %v2448, %v2696
    %v2779 = vmul.f32 %v2449, %v2696
    %v2780 = vmul.f32 %v2450, %v2696
    %v2781 = vmul.f32 %v2451, %v2701
    %v2782 = vmul.f32 %v2452, %v2701
    %v2783 = vmul.f32 %v2453, %v2701
    %v2784 = vmul.f32 %v2454, %v2701
    %v2785 = vmul.f32 %v2455, %v2701
    %v2786 = vmul.f32 %v2456, %v2701
    %v2787 = vmul.f32 %v2457, %v2706
    %v2788 = vmul.f32 %v2458, %v2706
    %v2789 = vmul.f32 %v2459, %v2706
    %v2790 = vmul.f32 %v2460, %v2706
    %v2791 = vmul.f32 %v2461, %v2706
    %v2792 = vmul.f32 %v2462, %v2706
    %v2793 = vmul.f32 %v2463, %v2711
    %v2794 = vmul.f32 %v2464, %v2711
    %v2795 = vmul.f32 %v2465, %v2711
    %v2796 = vmul.f32 %v2466, %v2711
    %v2797 = vmul.f32 %v2467, %v2711
    %v2798 = vmul.f32 %v2468, %v2711
    %v2799 = vmul.f32 %v2469, %v2716
    %v2800 = vmul.f32 %v2470, %v2716
    %v2801 = vmul.f32 %v2471, %v2716
    %v2802 = vmul.f32 %v2472, %v2716
    %v2803 = vmul.f32 %v2473, %v2716
    %v2804 = vmul.f32 %v2474, %v2716
    %v2805 = vmul.f32 %v2475, %v2721
    %v2806 = vmul.f32 %v2476, %v2721
    %v2807 = vmul.f32 %v2477, %v2721
    %v2808 = vmul.f32 %v2478, %v2721
    %v2809 = vmul.f32 %v2479, %v2721
    %v2810 = vmul.f32 %v2480, %v2721
    %v2811 = vmul.f32 %v2481, %v2726
    %v2812 = vmul.f32 %v2482, %v2726
    %v2813 = vmul.f32 %v2483, %v2726
    %v2814 = vmul.f32 %v2484, %v2726
    %v2815 = vmul.f32 %v2485, %v2726
    %v2816 = vmul.f32 %v2486, %v2726
    %v2817 = vmul.f32 %v2487, %v2731
    %v2818 = vmul.f32 %v2488, %v2731
    %v2819 = vmul.f32 %v2489, %v2731
    %v2820 = vmul.f32 %v2490, %v2731
    %v2821 = vmul.f32 %v2491, %v2731
    %v2822 = vmul.f32 %v2492, %v2731
    %v2823 = vmul.f32 %v2493, %v2736
    %v2824 = vmul.f32 %v2494, %v2736
    %v2825 = vmul.f32 %v2495, %v2736
    %v2826 = vmul.f32 %v2496, %v2736
    %v2827 = vmul.f32 %v2497, %v2736
    %v2828 = vmul.f32 %v2498, %v2736
    %v2829 = vmul.f32 %v2499, %v2741
    %v2830 = vmul.f32 %v2500, %v2741
    %v2831 = vmul.f32 %v2501, %v2741
    %v2832 = vmul.f32 %v2502, %v2741
    %v2833 = vmul.f32 %v2503, %v2741
    %v2834 = vmul.f32 %v2504, %v2741
    %v2835 = vmul.f32 %v2505, %v2746
    %v2836 = vmul.f32 %v2506, %v2746
    %v2837 = vmul.f32 %v2507, %v2746
    %v2838 = vmul.f32 %v2508, %v2746
    %v2839 = vmul.f32 %v2509, %v2746
    %v2840 = vmul.f32 %v2510, %v2746
    %v2841 = vmul.f32 %v2511, %v2751
    %v2842 = vmul.f32 %v2512, %v2751
    %v2843 = vmul.f32 %v2513, %v2751
    %v2844 = vmul.f32 %v2514, %v2751
    %v2845 = vmul.f32 %v2515, %v2751
    %v2846 = vmul.f32 %v2516, %v2751
    %v2847 = vmul.f32 %v2517, %v2756
    %v2848 = vmul.f32 %v2518, %v2756
    %v2849 = vmul.f32 %v2519, %v2756
    %v2850 = vmul.f32 %v2520, %v2756
    %v2851 = vmul.f32 %v2521, %v2756
    %v2852 = vmul.f32 %v2522, %v2756
    %v2853 = vmul.f32 %v2523, %v2761
    %v2854 = vmul.f32 %v2524, %v2761
    %v2855 = vmul.f32 %v2525, %v2761
    %v2856 = vmul.f32 %v2526, %v2761
    %v2857 = vmul.f32 %v2527, %v2761
    %v2858 = vmul.f32 %v2528, %v2761
    %v2859 = vadd.f32 %v2763, %v2769
    %v2860 = vrot.slane %v2859, 4
    %v2861 = vadd.f32 %v2859, %v2860
    %v2862 = vrot.slane %v2861, 2
    %v2863 = vadd.f32 %v2861, %v2862
    %v2864 = vrot.slane %v2863, 1
    %v2865 = vadd.f32 %v2863, %v2864
    %v2866 = vadd.f32 %v2764, %v2770
    %v2867 = vrot.slane %v2866, 4
    %v2868 = vadd.f32 %v2866, %v2867
    %v2869 = vrot.slane %v2868, 2
    %v2870 = vadd.f32 %v2868, %v2869
    %v2871 = vrot.slane %v2870, 1
    %v2872 = vadd.f32 %v2870, %v2871
    %v2873 = vadd.f32 %v2765, %v2771
    %v2874 = vrot.slane %v2873, 4
    %v2875 = vadd.f32 %v2873, %v2874
    %v2876 = vrot.slane %v2875, 2
    %v2877 = vadd.f32 %v2875, %v2876
    %v2878 = vrot.slane %v2877, 1
    %v2879 = vadd.f32 %v2877, %v2878
    %v2880 = vadd.f32 %v2766, %v2772
    %v2881 = vrot.slane %v2880, 4
    %v2882 = vadd.f32 %v2880, %v2881
    %v2883 = vrot.slane %v2882, 2
    %v2884 = vadd.f32 %v2882, %v2883
    %v2885 = vrot.slane %v2884, 1
    %v2886 = vadd.f32 %v2884, %v2885
    %v2887 = vadd.f32 %v2767, %v2773
    %v2888 = vrot.slane %v2887, 4
    %v2889 = vadd.f32 %v2887, %v2888
    %v2890 = vrot.slane %v2889, 2
    %v2891 = vadd.f32 %v2889, %v2890
    %v2892 = vrot.slane %v2891, 1
    %v2893 = vadd.f32 %v2891, %v2892
    %v2894 = vadd.f32 %v2768, %v2774
    %v2895 = vrot.slane %v2894, 4
    %v2896 = vadd.f32 %v2894, %v2895
    %v2897 = vrot.slane %v2896, 2
    %v2898 = vadd.f32 %v2896, %v2897
    %v2899 = vrot.slane %v2898, 1
    %v2900 = vadd.f32 %v2898, %v2899
    %v2901 = vadd.f32 %v2775, %v2781
    %v2902 = vrot.slane %v2901, 4
    %v2903 = vadd.f32 %v2901, %v2902
    %v2904 = vrot.slane %v2903, 2
    %v2905 = vadd.f32 %v2903, %v2904
    %v2906 = vrot.slane %v2905, 1
    %v2907 = vadd.f32 %v2905, %v2906
    %v2908 = vadd.f32 %v2776, %v2782
    %v2909 = vrot.slane %v2908, 4
    %v2910 = vadd.f32 %v2908, %v2909
    %v2911 = vrot.slane %v2910, 2
    %v2912 = vadd.f32 %v2910, %v2911
    %v2913 = vrot.slane %v2912, 1
    %v2914 = vadd.f32 %v2912, %v2913
    %v2915 = vadd.f32 %v2777, %v2783
    %v2916 = vrot.slane %v2915, 4
    %v2917 = vadd.f32 %v2915, %v2916
    %v2918 = vrot.slane %v2917, 2
    %v2919 = vadd.f32 %v2917, %v2918
    %v2920 = vrot.slane %v2919, 1
    %v2921 = vadd.f32 %v2919, %v2920
    %v2922 = vadd.f32 %v2778, %v2784
    %v2923 = vrot.slane %v2922, 4
    %v2924 = vadd.f32 %v2922, %v2923
    %v2925 = vrot.slane %v2924, 2
    %v2926 = vadd.f32 %v2924, %v2925
    %v2927 = vrot.slane %v2926, 1
    %v2928 = vadd.f32 %v2926, %v2927
    %v2929 = vadd.f32 %v2779, %v2785
    %v2930 = vrot.slane %v2929, 4
    %v2931 = vadd.f32 %v2929, %v2930
    %v2932 = vrot.slane %v2931, 2
    %v2933 = vadd.f32 %v2931, %v2932
    %v2934 = vrot.slane %v2933, 1
    %v2935 = vadd.f32 %v2933, %v2934
    %v2936 = vadd.f32 %v2780, %v2786
    %v2937 = vrot.slane %v2936, 4
    %v2938 = vadd.f32 %v2936, %v2937
    %v2939 = vrot.slane %v2938, 2
    %v2940 = vadd.f32 %v2938, %v2939
    %v2941 = vrot.slane %v2940, 1
    %v2942 = vadd.f32 %v2940, %v2941
    %v2943 = vadd.f32 %v2787, %v2793
    %v2944 = vrot.slane %v2943, 4
    %v2945 = vadd.f32 %v2943, %v2944
    %v2946 = vrot.slane %v2945, 2
    %v2947 = vadd.f32 %v2945, %v2946
    %v2948 = vrot.slane %v2947, 1
    %v2949 = vadd.f32 %v2947, %v2948
    %v2950 = vadd.f32 %v2788, %v2794
    %v2951 = vrot.slane %v2950, 4
    %v2952 = vadd.f32 %v2950, %v2951
    %v2953 = vrot.slane %v2952, 2
    %v2954 = vadd.f32 %v2952, %v2953
    %v2955 = vrot.slane %v2954, 1
    %v2956 = vadd.f32 %v2954, %v2955
    %v2957 = vadd.f32 %v2789, %v2795
    %v2958 = vrot.slane %v2957, 4
    %v2959 = vadd.f32 %v2957, %v2958
    %v2960 = vrot.slane %v2959, 2
    %v2961 = vadd.f32 %v2959, %v2960
    %v2962 = vrot.slane %v2961, 1
    %v2963 = vadd.f32 %v2961, %v2962
    %v2964 = vadd.f32 %v2790, %v2796
    %v2965 = vrot.slane %v2964, 4
    %v2966 = vadd.f32 %v2964, %v2965
    %v2967 = vrot.slane %v2966, 2
    %v2968 = vadd.f32 %v2966, %v2967
    %v2969 = vrot.slane %v2968, 1
    %v2970 = vadd.f32 %v2968, %v2969
    %v2971 = vadd.f32 %v2791, %v2797
    %v2972 = vrot.slane %v2971, 4
    %v2973 = vadd.f32 %v2971, %v2972
    %v2974 = vrot.slane %v2973, 2
    %v2975 = vadd.f32 %v2973, %v2974
    %v2976 = vrot.slane %v2975, 1
    %v2977 = vadd.f32 %v2975, %v2976
    %v2978 = vadd.f32 %v2792, %v2798
    %v2979 = vrot.slane %v2978, 4
    %v2980 = vadd.f32 %v2978, %v2979
    %v2981 = vrot.slane %v2980, 2
    %v2982 = vadd.f32 %v2980, %v2981
    %v2983 = vrot.slane %v2982, 1
    %v2984 = vadd.f32 %v2982, %v2983
    %v2985 = vadd.f32 %v2799, %v2805
    %v2986 = vrot.slane %v2985, 4
    %v2987 = vadd.f32 %v2985, %v2986
    %v2988 = vrot.slane %v2987, 2
    %v2989 = vadd.f32 %v2987, %v2988
    %v2990 = vrot.slane %v2989, 1
    %v2991 = vadd.f32 %v2989, %v2990
    %v2992 = vadd.f32 %v2800, %v2806
    %v2993 = vrot.slane %v2992, 4
    %v2994 = vadd.f32 %v2992, %v2993
    %v2995 = vrot.slane %v2994, 2
    %v2996 = vadd.f32 %v2994, %v2995
    %v2997 = vrot.slane %v2996, 1
    %v2998 = vadd.f32 %v2996, %v2997
    %v2999 = vadd.f32 %v2801, %v2807
    %v3000 = vrot.slane %v2999, 4
    %v3001 = vadd.f32 %v2999, %v3000
    %v3002 = vrot.slane %v3001, 2
    %v3003 = vadd.f32 %v3001, %v3002
    %v3004 = vrot.slane %v3003, 1
    %v3005 = vadd.f32 %v3003, %v3004
    %v3006 = vadd.f32 %v2802, %v2808
    %v3007 = vrot.slane %v3006, 4
    %v3008 = vadd.f32 %v3006, %v3007
    %v3009 = vrot.slane %v3008, 2
    %v3010 = vadd.f32 %v3008, %v3009
    %v3011 = vrot.slane %v3010, 1
    %v3012 = vadd.f32 %v3010, %v3011
    %v3013 = vadd.f32 %v2803, %v2809
    %v3014 = vrot.slane %v3013, 4
    %v3015 = vadd.f32 %v3013, %v3014
    %v3016 = vrot.slane %v3015, 2
    %v3017 = vadd.f32 %v3015, %v3016
    %v3018 = vrot.slane %v3017, 1
    %v3019 = vadd.f32 %v3017, %v3018
    %v3020 = vadd.f32 %v2804, %v2810
    %v3021 = vrot.slane %v3020, 4
    %v3022 = vadd.f32 %v3020, %v3021
    %v3023 = vrot.slane %v3022, 2
    %v3024 = vadd.f32 %v3022, %v3023
    %v3025 = vrot.slane %v3024, 1
    %v3026 = vadd.f32 %v3024, %v3025
    %v3027 = vadd.f32 %v2811, %v2817
    %v3028 = vrot.slane %v3027, 4
    %v3029 = vadd.f32 %v3027, %v3028
    %v3030 = vrot.slane %v3029, 2
    %v3031 = vadd.f32 %v3029, %v3030
    %v3032 = vrot.slane %v3031, 1
    %v3033 = vadd.f32 %v3031, %v3032
    %v3034 = vadd.f32 %v2812, %v2818
    %v3035 = vrot.slane %v3034, 4
    %v3036 = vadd.f32 %v3034, %v3035
    %v3037 = vrot.slane %v3036, 2
    %v3038 = vadd.f32 %v3036, %v3037
    %v3039 = vrot.slane %v3038, 1
    %v3040 = vadd.f32 %v3038, %v3039
    %v3041 = vadd.f32 %v2813, %v2819
    %v3042 = vrot.slane %v3041, 4
    %v3043 = vadd.f32 %v3041, %v3042
    %v3044 = vrot.slane %v3043, 2
    %v3045 = vadd.f32 %v3043, %v3044
    %v3046 = vrot.slane %v3045, 1
    %v3047 = vadd.f32 %v3045, %v3046
    %v3048 = vadd.f32 %v2814, %v2820
    %v3049 = vrot.slane %v3048, 4
    %v3050 = vadd.f32 %v3048, %v3049
    %v3051 = vrot.slane %v3050, 2
    %v3052 = vadd.f32 %v3050, %v3051
    %v3053 = vrot.slane %v3052, 1
    %v3054 = vadd.f32 %v3052, %v3053
    %v3055 = vadd.f32 %v2815, %v2821
    %v3056 = vrot.slane %v3055, 4
    %v3057 = vadd.f32 %v3055, %v3056
    %v3058 = vrot.slane %v3057, 2
    %v3059 = vadd.f32 %v3057, %v3058
    %v3060 = vrot.slane %v3059, 1
    %v3061 = vadd.f32 %v3059, %v3060
    %v3062 = vadd.f32 %v2816, %v2822
    %v3063 = vrot.slane %v3062, 4
    %v3064 = vadd.f32 %v3062, %v3063
    %v3065 = vrot.slane %v3064, 2
    %v3066 = vadd.f32 %v3064, %v3065
    %v3067 = vrot.slane %v3066, 1
    %v3068 = vadd.f32 %v3066, %v3067
    %v3069 = vadd.f32 %v2823, %v2829
    %v3070 = vrot.slane %v3069, 4
    %v3071 = vadd.f32 %v3069, %v3070
    %v3072 = vrot.slane %v3071, 2
    %v3073 = vadd.f32 %v3071, %v3072
    %v3074 = vrot.slane %v3073, 1
    %v3075 = vadd.f32 %v3073, %v3074
    %v3076 = vadd.f32 %v2824, %v2830
    %v3077 = vrot.slane %v3076, 4
    %v3078 = vadd.f32 %v3076, %v3077
    %v3079 = vrot.slane %v3078, 2
    %v3080 = vadd.f32 %v3078, %v3079
    %v3081 = vrot.slane %v3080, 1
    %v3082 = vadd.f32 %v3080, %v3081
    %v3083 = vadd.f32 %v2825, %v2831
    %v3084 = vrot.slane %v3083, 4
    %v3085 = vadd.f32 %v3083, %v3084
    %v3086 = vrot.slane %v3085, 2
    %v3087 = vadd.f32 %v3085, %v3086
    %v3088 = vrot.slane %v3087, 1
    %v3089 = vadd.f32 %v3087, %v3088
    %v3090 = vadd.f32 %v2826, %v2832
    %v3091 = vrot.slane %v3090, 4
    %v3092 = vadd.f32 %v3090, %v3091
    %v3093 = vrot.slane %v3092, 2
    %v3094 = vadd.f32 %v3092, %v3093
    %v3095 = vrot.slane %v3094, 1
    %v3096 = vadd.f32 %v3094, %v3095
    %v3097 = vadd.f32 %v2827, %v2833
    %v3098 = vrot.slane %v3097, 4
    %v3099 = vadd.f32 %v3097, %v3098
    %v3100 = vrot.slane %v3099, 2
    %v3101 = vadd.f32 %v3099, %v3100
    %v3102 = vrot.slane %v3101, 1
    %v3103 = vadd.f32 %v3101, %v3102
    %v3104 = vadd.f32 %v2828, %v2834
    %v3105 = vrot.slane %v3104, 4
    %v3106 = vadd.f32 %v3104, %v3105
    %v3107 = vrot.slane %v3106, 2
    %v3108 = vadd.f32 %v3106, %v3107
    %v3109 = vrot.slane %v3108, 1
    %v3110 = vadd.f32 %v3108, %v3109
    %v3111 = vadd.f32 %v2835, %v2841
    %v3112 = vrot.slane %v3111, 4
    %v3113 = vadd.f32 %v3111, %v3112
    %v3114 = vrot.slane %v3113, 2
    %v3115 = vadd.f32 %v3113, %v3114
    %v3116 = vrot.slane %v3115, 1
    %v3117 = vadd.f32 %v3115, %v3116
    %v3118 = vadd.f32 %v2836, %v2842
    %v3119 = vrot.slane %v3118, 4
    %v3120 = vadd.f32 %v3118, %v3119
    %v3121 = vrot.slane %v3120, 2
    %v3122 = vadd.f32 %v3120, %v3121
    %v3123 = vrot.slane %v3122, 1
    %v3124 = vadd.f32 %v3122, %v3123
    %v3125 = vadd.f32 %v2837, %v2843
    %v3126 = vrot.slane %v3125, 4
    %v3127 = vadd.f32 %v3125, %v3126
    %v3128 = vrot.slane %v3127, 2
    %v3129 = vadd.f32 %v3127, %v3128
    %v3130 = vrot.slane %v3129, 1
    %v3131 = vadd.f32 %v3129, %v3130
    %v3132 = vadd.f32 %v2838, %v2844
    %v3133 = vrot.slane %v3132, 4
    %v3134 = vadd.f32 %v3132, %v3133
    %v3135 = vrot.slane %v3134, 2
    %v3136 = vadd.f32 %v3134, %v3135
    %v3137 = vrot.slane %v3136, 1
    %v3138 = vadd.f32 %v3136, %v3137
    %v3139 = vadd.f32 %v2839, %v2845
    %v3140 = vrot.slane %v3139, 4
    %v3141 = vadd.f32 %v3139, %v3140
    %v3142 = vrot.slane %v3141, 2
    %v3143 = vadd.f32 %v3141, %v3142
    %v3144 = vrot.slane %v3143, 1
    %v3145 = vadd.f32 %v3143, %v3144
    %v3146 = vadd.f32 %v2840, %v2846
    %v3147 = vrot.slane %v3146, 4
    %v3148 = vadd.f32 %v3146, %v3147
    %v3149 = vrot.slane %v3148, 2
    %v3150 = vadd.f32 %v3148, %v3149
    %v3151 = vrot.slane %v3150, 1
    %v3152 = vadd.f32 %v3150, %v3151
    %v3153 = vadd.f32 %v2847, %v2853
    %v3154 = vrot.slane %v3153, 4
    %v3155 = vadd.f32 %v3153, %v3154
    %v3156 = vrot.slane %v3155, 2
    %v3157 = vadd.f32 %v3155, %v3156
    %v3158 = vrot.slane %v3157, 1
    %v3159 = vadd.f32 %v3157, %v3158
    %v3160 = vadd.f32 %v2848, %v2854
    %v3161 = vrot.slane %v3160, 4
    %v3162 = vadd.f32 %v3160, %v3161
    %v3163 = vrot.slane %v3162, 2
    %v3164 = vadd.f32 %v3162, %v3163
    %v3165 = vrot.slane %v3164, 1
    %v3166 = vadd.f32 %v3164, %v3165
    %v3167 = vadd.f32 %v2849, %v2855
    %v3168 = vrot.slane %v3167, 4
    %v3169 = vadd.f32 %v3167, %v3168
    %v3170 = vrot.slane %v3169, 2
    %v3171 = vadd.f32 %v3169, %v3170
    %v3172 = vrot.slane %v3171, 1
    %v3173 = vadd.f32 %v3171, %v3172
    %v3174 = vadd.f32 %v2850, %v2856
    %v3175 = vrot.slane %v3174, 4
    %v3176 = vadd.f32 %v3174, %v3175
    %v3177 = vrot.slane %v3176, 2
    %v3178 = vadd.f32 %v3176, %v3177
    %v3179 = vrot.slane %v3178, 1
    %v3180 = vadd.f32 %v3178, %v3179
    %v3181 = vadd.f32 %v2851, %v2857
    %v3182 = vrot.slane %v3181, 4
    %v3183 = vadd.f32 %v3181, %v3182
    %v3184 = vrot.slane %v3183, 2
    %v3185 = vadd.f32 %v3183, %v3184
    %v3186 = vrot.slane %v3185, 1
    %v3187 = vadd.f32 %v3185, %v3186
    %v3188 = vadd.f32 %v2852, %v2858
    %v3189 = vrot.slane %v3188, 4
    %v3190 = vadd.f32 %v3188, %v3189
    %v3191 = vrot.slane %v3190, 2
    %v3192 = vadd.f32 %v3190, %v3191
    %v3193 = vrot.slane %v3192, 1
    %v3194 = vadd.f32 %v3192, %v3193
    %vm3243 = vcmask 1041409
    %v3244 = vsel %vm3243, %v2907, %v2865
    %vm3245 = vcmask 1042434
    %v3246 = vsel %vm3245, %v2949, %v3244
    %vm3247 = vcmask 1043459
    %v3248 = vsel %vm3247, %v2991, %v3246
    %vm3249 = vcmask 1044484
    %v3250 = vsel %vm3249, %v3033, %v3248
    %vm3251 = vcmask 1045509
    %v3252 = vsel %vm3251, %v3075, %v3250
    %vm3253 = vcmask 1046534
    %v3254 = vsel %vm3253, %v3117, %v3252
    %vm3255 = vcmask 1047559
    %v3256 = vsel %vm3255, %v3159, %v3254
    %v3257 = vsel %vm3243, %v2914, %v2872
    %v3258 = vsel %vm3245, %v2956, %v3257
    %v3259 = vsel %vm3247, %v2998, %v3258
    %v3260 = vsel %vm3249, %v3040, %v3259
    %v3261 = vsel %vm3251, %v3082, %v3260
    %v3262 = vsel %vm3253, %v3124, %v3261
    %v3263 = vsel %vm3255, %v3166, %v3262
    %v3264 = vsel %vm3243, %v2921, %v2879
    %v3265 = vsel %vm3245, %v2963, %v3264
    %v3266 = vsel %vm3247, %v3005, %v3265
    %v3267 = vsel %vm3249, %v3047, %v3266
    %v3268 = vsel %vm3251, %v3089, %v3267
    %v3269 = vsel %vm3253, %v3131, %v3268
    %v3270 = vsel %vm3255, %v3173, %v3269
    %v3271 = vsel %vm3243, %v2928, %v2886
    %v3272 = vsel %vm3245, %v2970, %v3271
    %v3273 = vsel %vm3247, %v3012, %v3272
    %v3274 = vsel %vm3249, %v3054, %v3273
    %v3275 = vsel %vm3251, %v3096, %v3274
    %v3276 = vsel %vm3253, %v3138, %v3275
    %v3277 = vsel %vm3255, %v3180, %v3276
    %v3278 = vsel %vm3243, %v2935, %v2893
    %v3279 = vsel %vm3245, %v2977, %v3278
    %v3280 = vsel %vm3247, %v3019, %v3279
    %v3281 = vsel %vm3249, %v3061, %v3280
    %v3282 = vsel %vm3251, %v3103, %v3281
    %v3283 = vsel %vm3253, %v3145, %v3282
    %v3284 = vsel %vm3255, %v3187, %v3283
    %v3285 = vsel %vm3243, %v2942, %v2900
    %v3286 = vsel %vm3245, %v2984, %v3285
    %v3287 = vsel %vm3247, %v3026, %v3286
    %v3288 = vsel %vm3249, %v3068, %v3287
    %v3289 = vsel %vm3251, %v3110, %v3288
    %v3290 = vsel %vm3253, %v3152, %v3289
    %v3291 = vsel %vm3255, %v3194, %v3290
    %v3298 = vadd.f32 %v2677, %v3256
    %v3299 = vadd.f32 %v2678, %v3263
    %v3300 = vadd.f32 %v2679, %v3270
    %v3301 = vadd.f32 %v2680, %v3277
    %v3302 = vadd.f32 %v2681, %v3284
    %v3303 = vadd.f32 %v2682, %v3291
    %3304 = vst [vmem:[#allocation2] sm:$0xff] %v3298
    %3305 = vst [vmem:[#allocation2 + $0x8] sm:$0xff] %v3299
    %3306 = vst [vmem:[#allocation2 + $0x10] sm:$0xff] %v3300
    %3307 = vst [vmem:[#allocation2 + $0x18] sm:$0xff] %v3301
    %3308 = vst [vmem:[#allocation2 + $0x20] sm:$0xff] %v3302
    %3309 = vst [vmem:[#allocation2 + $0x28] sm:$0xff] %v3303
    // Predicated region
    $region64: #{wav2vec2_emonet_forward.1} parent=1 // pred_check
      %p3310 = pneg %p120
    $region65: #{wav2vec2_emonet_forward.1} parent=1 // pred_check_branch
      %3312 = sbr.rel (%p3310) target = $region67
    $region66: #{wav2vec2_emonet_forward.1} parent=1 // pred_region
      %v3313 = vld [vmem:[#allocation2] sm:$0xff]
      %v3314 = vld [vmem:[#allocation2 + $0x8] sm:$0xff]
      %v3315 = vld [vmem:[#allocation2 + $0x10] sm:$0xff]
      %v3316 = vld [vmem:[#allocation2 + $0x18] sm:$0xff]
      %v3317 = vld [vmem:[#allocation2 + $0x20] sm:$0xff]
      %v3318 = vld [vmem:[#allocation2 + $0x28] sm:$0xff]
      %v3319 = vld [vmem:[%s2] sm:$0xff]
      %3321 = vset.pattern.permute.xlu0 0
      %3322 = vperm.xlu0 %3321, %v3319
      %v3323 = vpop.permute.xlu0 %3322
      %v3325 = vrcp.pop %v3323
      %v3326 = vmul.f32 %v3313, %v3325
      %v3327 = vmul.f32 %v3314, %v3325
      %v3328 = vmul.f32 %v3315, %v3325
      %v3329 = vmul.f32 %v3316, %v3325
      %v3330 = vmul.f32 %v3317, %v3325
      %v3331 = vmul.f32 %v3318, %v3325
      %v3332 = vmax.f32 %v3326, 0.0
      %v3333 = vmax.f32 %v3327, 0.0
      %v3334 = vmax.f32 %v3328, 0.0
      %v3335 = vmax.f32 %v3329, 0.0
      %v3336 = vmax.f32 %v3330, 0.0
      %v3337 = vmax.f32 %v3331, 0.0
      %v3338 = vld [vmem:[%s6] sm:$0xff]
      %v3339 = vld [vmem:[%s6 + $0x8] sm:$0xff]
      %v3340 = vld [vmem:[%s6 + $0x10] sm:$0xff]
      %v3341 = vld [vmem:[%s6 + $0x18] sm:$0xff]
      %v3342 = vld [vmem:[%s6 + $0x20] sm:$0xff]
      %v3343 = vld [vmem:[%s6 + $0x28] sm:$0xff]
      %v3344 = vld [vmem:[%s6 + $0x30] sm:$0xff]
      %v3345 = vld [vmem:[%s6 + $0x38] sm:$0xff]
      %v3346 = vld [vmem:[%s6 + $0x40] sm:$0xff]
      %v3347 = vld [vmem:[%s6 + $0x48] sm:$0xff]
      %v3348 = vld [vmem:[%s6 + $0x50] sm:$0xff]
      %v3349 = vld [vmem:[%s6 + $0x58] sm:$0xff]
      %v3350 = vld [vmem:[%s6 + $0x60] sm:$0xff]
      %v3351 = vld [vmem:[%s6 + $0x68] sm:$0xff]
      %v3352 = vld [vmem:[%s6 + $0x70] sm:$0xff]
      %v3353 = vld [vmem:[%s6 + $0x78] sm:$0xff]
      %v3354 = vld [vmem:[%s6 + $0x80] sm:$0xff]
      %v3355 = vld [vmem:[%s6 + $0x88] sm:$0xff]
      %v3356 = vld [vmem:[%s6 + $0x90] sm:$0xff]
      %v3357 = vld [vmem:[%s6 + $0x98] sm:$0xff]
      %v3358 = vld [vmem:[%s6 + $0xa0] sm:$0xff]
      %v3359 = vld [vmem:[%s6 + $0xa8] sm:$0xff]
      %v3360 = vld [vmem:[%s6 + $0xb0] sm:$0xff]
      %v3361 = vld [vmem:[%s6 + $0xb8] sm:$0xff]
      %v3362 = vld [vmem:[%s6 + $0xc0] sm:$0xff]
      %v3363 = vld [vmem:[%s6 + $0xc8] sm:$0xff]
      %v3364 = vld [vmem:[%s6 + $0xd0] sm:$0xff]
      %v3365 = vld [vmem:[%s6 + $0xd8] sm:$0xff]
      %v3366 = vld [vmem:[%s6 + $0xe0] sm:$0xff]
      %v3367 = vld [vmem:[%s6 + $0xe8] sm:$0xff]
      %v3368 = vld [vmem:[%s6 + $0xf0] sm:$0xff]
      %v3369 = vld [vmem:[%s6 + $0xf8] sm:$0xff]
      %v3370 = vld [vmem:[%s6 + $0x100] sm:$0xff]
      %v3371 = vld [vmem:[%s6 + $0x108] sm:$0xff]
      %v3372 = vld [vmem:[%s6 + $0x110] sm:$0xff]
      %v3373 = vld [vmem:[%s6 + $0x118] sm:$0xff]
      %v3374 = vld [vmem:[%s6 + $0x120] sm:$0xff]
      %v3375 = vld [vmem:[%s6 + $0x128] sm:$0xff]
      %v3376 = vld [vmem:[%s6 + $0x130] sm:$0xff]
      %v3377 = vld [vmem:[%s6 + $0x138] sm:$0xff]
      %v3378 = vld [vmem:[%s6 + $0x140] sm:$0xff]
      %v3379 = vld [vmem:[%s6 + $0x148] sm:$0xff]
      %v3380 = vld [vmem:[%s6 + $0x150] sm:$0xff]
      %v3381 = vld [vmem:[%s6 + $0x158] sm:$0xff]
      %v3382 = vld [vmem:[%s6 + $0x160] sm:$0xff]
      %v3383 = vld [vmem:[%s6 + $0x168] sm:$0xff]
      %v3384 = vld [vmem:[%s6 + $0x170] sm:$0xff]
      %v3385 = vld [vmem:[%s6 + $0x178] sm:$0xff]
      %v3386 = vld [vmem:[%s6 + $0x180] sm:$0xff]
      %v3387 = vld [vmem:[%s6 + $0x188] sm:$0xff]
      %v3388 = vld [vmem:[%s6 + $0x190] sm:$0xff]
      %v3389 = vld [vmem:[%s6 + $0x198] sm:$0xff]
      %v3390 = vld [vmem:[%s6 + $0x1a0] sm:$0xff]
      %v3391 = vld [vmem:[%s6 + $0x1a8] sm:$0xff]
      %v3392 = vld [vmem:[%s6 + $0x1b0] sm:$0xff]
      %v3393 = vld [vmem:[%s6 + $0x1b8] sm:$0xff]
      %v3394 = vld [vmem:[%s6 + $0x1c0] sm:$0xff]
      %v3395 = vld [vmem:[%s6 + $0x1c8] sm:$0xff]
      %v3396 = vld [vmem:[%s6 + $0x1d0] sm:$0xff]
      %v3397 = vld [vmem:[%s6 + $0x1d8] sm:$0xff]
      %v3398 = vld [vmem:[%s6 + $0x1e0] sm:$0xff]
      %v3399 = vld [vmem:[%s6 + $0x1e8] sm:$0xff]
      %v3400 = vld [vmem:[%s6 + $0x1f0] sm:$0xff]
      %v3401 = vld [vmem:[%s6 + $0x1f8] sm:$0xff]
      %v3402 = vld [vmem:[%s6 + $0x200] sm:$0xff]
      %v3403 = vld [vmem:[%s6 + $0x208] sm:$0xff]
      %v3404 = vld [vmem:[%s6 + $0x210] sm:$0xff]
      %v3405 = vld [vmem:[%s6 + $0x218] sm:$0xff]
      %v3406 = vld [vmem:[%s6 + $0x220] sm:$0xff]
      %v3407 = vld [vmem:[%s6 + $0x228] sm:$0xff]
      %v3408 = vld [vmem:[%s6 + $0x230] sm:$0xff]
      %v3409 = vld [vmem:[%s6 + $0x238] sm:$0xff]
      %v3410 = vld [vmem:[%s6 + $0x240] sm:$0xff]
      %v3411 = vld [vmem:[%s6 + $0x248] sm:$0xff]
      %v3412 = vld [vmem:[%s6 + $0x250] sm:$0xff]
      %v3413 = vld [vmem:[%s6 + $0x258] sm:$0xff]
      %v3414 = vld [vmem:[%s6 + $0x260] sm:$0xff]
      %v3415 = vld [vmem:[%s6 + $0x268] sm:$0xff]
      %v3416 = vld [vmem:[%s6 + $0x270] sm:$0xff]
      %v3417 = vld [vmem:[%s6 + $0x278] sm:$0xff]
      %v3418 = vld [vmem:[%s6 + $0x280] sm:$0xff]
      %v3419 = vld [vmem:[%s6 + $0x288] sm:$0xff]
      %v3420 = vld [vmem:[%s6 + $0x290] sm:$0xff]
      %v3421 = vld [vmem:[%s6 + $0x298] sm:$0xff]
      %v3422 = vld [vmem:[%s6 + $0x2a0] sm:$0xff]
      %v3423 = vld [vmem:[%s6 + $0x2a8] sm:$0xff]
      %v3424 = vld [vmem:[%s6 + $0x2b0] sm:$0xff]
      %v3425 = vld [vmem:[%s6 + $0x2b8] sm:$0xff]
      %v3426 = vld [vmem:[%s6 + $0x2c0] sm:$0xff]
      %v3427 = vld [vmem:[%s6 + $0x2c8] sm:$0xff]
      %v3428 = vld [vmem:[%s6 + $0x2d0] sm:$0xff]
      %v3429 = vld [vmem:[%s6 + $0x2d8] sm:$0xff]
      %v3430 = vld [vmem:[%s6 + $0x2e0] sm:$0xff]
      %v3431 = vld [vmem:[%s6 + $0x2e8] sm:$0xff]
      %v3432 = vld [vmem:[%s6 + $0x2f0] sm:$0xff]
      %v3433 = vld [vmem:[%s6 + $0x2f8] sm:$0xff]
      %v3434 = vld [vmem:[%s7] sm:$0x1]
      %v3436 = vlaneseq
      %v3437 = vshrl.u32 %v3436, 7
      %v3438 = vsub.s32 0, %v3437
      %v3439 = vrot.slane %v3434, %v3438
      %3441 = vmatprep.subr.mxu0 0.0
      %3442 = vmatpush1.msra.mxu0 %v3338
      %3443 = vmatprep.subr.mxu0 0.0
      %3444 = vmatpush1.msra.mxu0 %v3339
      %3445 = vmatprep.subr.mxu0 0.0
      %3446 = vmatpush1.msra.mxu0 %v3340
      %3447 = vmatprep.subr.mxu0 0.0
      %3448 = vmatpush1.msra.mxu0 %v3341
      %3449 = vmatprep.subr.mxu0 0.0
      %3450 = vmatpush1.msra.mxu0 %v3342
      %3451 = vmatprep.subr.mxu0 0.0
      %3452 = vmatpush1.msra.mxu0 %v3343
      %3453 = vmatprep.subr.mxu0 0.0
      %3454 = vmatpush1.msra.mxu0 %v3344
      %3455 = vmatprep.subr.mxu0 0.0
      %3456 = vmatpush1.msra.mxu0 %v3345
      %3457 = vmatprep.subr.mxu0 0.0
      %3458 = vmatpush1.msra.mxu0 %v3346
      %3459 = vmatprep.subr.mxu0 0.0
      %3460 = vmatpush1.msra.mxu0 %v3347
      %3461 = vmatprep.subr.mxu0 0.0
      %3462 = vmatpush1.msra.mxu0 %v3348
      %3463 = vmatprep.subr.mxu0 0.0
      %3464 = vmatpush1.msra.mxu0 %v3349
      %3465 = vmatprep.subr.mxu0 0.0
      %3466 = vmatpush1.msra.mxu0 %v3350
      %3467 = vmatprep.subr.mxu0 0.0
      %3468 = vmatpush1.msra.mxu0 %v3351
      %3469 = vmatprep.subr.mxu0 0.0
      %3470 = vmatpush1.msra.mxu0 %v3352
      %3471 = vmatprep.subr.mxu0 0.0
      %3472 = vmatpush1.msra.mxu0 %v3353
      %3473 = vmatprep.subr.mxu0 0.0
      %3474 = vmatpush1.msra.mxu0 %v3354
      %3475 = vmatprep.subr.mxu0 0.0
      %3476 = vmatpush1.msra.mxu0 %v3355
      %3477 = vmatprep.subr.mxu0 0.0
      %3478 = vmatpush1.msra.mxu0 %v3356
      %3479 = vmatprep.subr.mxu0 0.0
      %3480 = vmatpush1.msra.mxu0 %v3357
      %3481 = vmatprep.subr.mxu0 0.0
      %3482 = vmatpush1.msra.mxu0 %v3358
      %3483 = vmatprep.subr.mxu0 0.0
      %3484 = vmatpush1.msra.mxu0 %v3359
      %3485 = vmatprep.subr.mxu0 0.0
      %3486 = vmatpush1.msra.mxu0 %v3360
      %3487 = vmatprep.subr.mxu0 0.0
      %3488 = vmatpush1.msra.mxu0 %v3361
      %3489 = vmatprep.subr.mxu0 0.0
      %3490 = vmatpush1.msra.mxu0 %v3362
      %3491 = vmatprep.subr.mxu0 0.0
      %3492 = vmatpush1.msra.mxu0 %v3363
      %3493 = vmatprep.subr.mxu0 0.0
      %3494 = vmatpush1.msra.mxu0 %v3364
      %3495 = vmatprep.subr.mxu0 0.0
      %3496 = vmatpush1.msra.mxu0 %v3365
      %3497 = vmatprep.subr.mxu0 0.0
      %3498 = vmatpush1.msra.mxu0 %v3366
      %3499 = vmatprep.subr.mxu0 0.0
      %3500 = vmatpush1.msra.mxu0 %v3367
      %3501 = vmatprep.subr.mxu0 0.0
      %3502 = vmatpush1.msra.mxu0 %v3368
      %3503 = vmatprep.subr.mxu0 0.0
      %3504 = vmatpush1.msra.mxu0 %v3369
      %3505 = vmatprep.mubr.f32.mxu0 %v3333
      %3506 = vmatmul.mubr.f32.gmra.mrb[0].mxu0 %v3332
      %v3507 = vpop.f32.mrb[0].mxu0
      %v3508 = vadd.f32 %v3439, %v3507
      %v3509 = vpop.f32.mrb[0].mxu0
      %3510 = vdwg.mxu0
      %3511 = vmatprep.subr.mxu0 0.0
      %3512 = vmatpush1.msra.mxu0 %v3370
      %3513 = vmatprep.subr.mxu0 0.0
      %3514 = vmatpush1.msra.mxu0 %v3371
      %3515 = vmatprep.subr.mxu0 0.0
      %3516 = vmatpush1.msra.mxu0 %v3372
      %3517 = vmatprep.subr.mxu0 0.0
      %3518 = vmatpush1.msra.mxu0 %v3373
      %3519 = vmatprep.subr.mxu0 0.0
      %3520 = vmatpush1.msra.mxu0 %v3374
      %3521 = vmatprep.subr.mxu0 0.0
      %3522 = vmatpush1.msra.mxu0 %v3375
      %3523 = vmatprep.subr.mxu0 0.0
      %3524 = vmatpush1.msra.mxu0 %v3376
      %3525 = vmatprep.subr.mxu0 0.0
      %3526 = vmatpush1.msra.mxu0 %v3377
      %3527 = vmatprep.subr.mxu0 0.0
      %3528 = vmatpush1.msra.mxu0 %v3378
      %3529 = vmatprep.subr.mxu0 0.0
      %3530 = vmatpush1.msra.mxu0 %v3379
      %3531 = vmatprep.subr.mxu0 0.0
      %3532 = vmatpush1.msra.mxu0 %v3380
      %3533 = vmatprep.subr.mxu0 0.0
      %3534 = vmatpush1.msra.mxu0 %v3381
      %3535 = vmatprep.subr.mxu0 0.0
      %3536 = vmatpush1.msra.mxu0 %v3382
      %3537 = vmatprep.subr.mxu0 0.0
      %3538 = vmatpush1.msra.mxu0 %v3383
      %3539 = vmatprep.subr.mxu0 0.0
      %3540 = vmatpush1.msra.mxu0 %v3384
      %3541 = vmatprep.subr.mxu0 0.0
      %3542 = vmatpush1.msra.mxu0 %v3385
      %3543 = vmatprep.subr.mxu0 0.0
      %3544 = vmatpush1.msra.mxu0 %v3386
      %3545 = vmatprep.subr.mxu0 0.0
      %3546 = vmatpush1.msra.mxu0 %v3387
      %3547 = vmatprep.subr.mxu0 0.0
      %3548 = vmatpush1.msra.mxu0 %v3388
      %3549 = vmatprep.subr.mxu0 0.0
      %3550 = vmatpush1.msra.mxu0 %v3389
      %3551 = vmatprep.subr.mxu0 0.0
      %3552 = vmatpush1.msra.mxu0 %v3390
      %3553 = vmatprep.subr.mxu0 0.0
      %3554 = vmatpush1.msra.mxu0 %v3391
      %3555 = vmatprep.subr.mxu0 0.0
      %3556 = vmatpush1.msra.mxu0 %v3392
      %3557 = vmatprep.subr.mxu0 0.0
      %3558 = vmatpush1.msra.mxu0 %v3393
      %3559 = vmatprep.subr.mxu0 0.0
      %3560 = vmatpush1.msra.mxu0 %v3394
      %3561 = vmatprep.subr.mxu0 0.0
      %3562 = vmatpush1.msra.mxu0 %v3395
      %3563 = vmatprep.subr.mxu0 0.0
      %3564 = vmatpush1.msra.mxu0 %v3396
      %3565 = vmatprep.subr.mxu0 0.0
      %3566 = vmatpush1.msra.mxu0 %v3397
      %3567 = vmatprep.subr.mxu0 0.0
      %3568 = vmatpush1.msra.mxu0 %v3398
      %3569 = vmatprep.subr.mxu0 0.0
      %3570 = vmatpush1.msra.mxu0 %v3399
      %3571 = vmatprep.subr.mxu0 0.0
      %3572 = vmatpush1.msra.mxu0 %v3400
      %3573 = vmatprep.subr.mxu0 0.0
      %3574 = vmatpush1.msra.mxu0 %v3401
      %3575 = vmatprep.mubr.f32.mxu0 %v3335
      %3576 = vmatmul.mubr.f32.gmra.mrb[0].mxu0 %v3334
      %v3577 = vpop.f32.mrb[0].mxu0
      %v3578 = vadd.f32 %v3508, %v3577
      %v3579 = vpop.f32.mrb[0].mxu0
      %3580 = vdwg.mxu0
      %3581 = vmatprep.subr.mxu0 0.0
      %3582 = vmatpush1.msra.mxu0 %v3402
      %3583 = vmatprep.subr.mxu0 0.0
      %3584 = vmatpush1.msra.mxu0 %v3403
      %3585 = vmatprep.subr.mxu0 0.0
      %3586 = vmatpush1.msra.mxu0 %v3404
      %3587 = vmatprep.subr.mxu0 0.0
      %3588 = vmatpush1.msra.mxu0 %v3405
      %3589 = vmatprep.subr.mxu0 0.0
      %3590 = vmatpush1.msra.mxu0 %v3406
      %3591 = vmatprep.subr.mxu0 0.0
      %3592 = vmatpush1.msra.mxu0 %v3407
      %3593 = vmatprep.subr.mxu0 0.0
      %3594 = vmatpush1.msra.mxu0 %v3408
      %3595 = vmatprep.subr.mxu0 0.0
      %3596 = vmatpush1.msra.mxu0 %v3409
      %3597 = vmatprep.subr.mxu0 0.0
      %3598 = vmatpush1.msra.mxu0 %v3410
      %3599 = vmatprep.subr.mxu0 0.0
      %3600 = vmatpush1.msra.mxu0 %v3411
      %3601 = vmatprep.subr.mxu0 0.0
      %3602 = vmatpush1.msra.mxu0 %v3412
      %3603 = vmatprep.subr.mxu0 0.0
      %3604 = vmatpush1.msra.mxu0 %v3413
      %3605 = vmatprep.subr.mxu0 0.0
      %3606 = vmatpush1.msra.mxu0 %v3414
      %3607 = vmatprep.subr.mxu0 0.0
      %3608 = vmatpush1.msra.mxu0 %v3415
      %3609 = vmatprep.subr.mxu0 0.0
      %3610 = vmatpush1.msra.mxu0 %v3416
      %3611 = vmatprep.subr.mxu0 0.0
      %3612 = vmatpush1.msra.mxu0 %v3417
      %3613 = vmatprep.subr.mxu0 0.0
      %3614 = vmatpush1.msra.mxu0 %v3418
      %3615 = vmatprep.subr.mxu0 0.0
      %3616 = vmatpush1.msra.mxu0 %v3419
      %3617 = vmatprep.subr.mxu0 0.0
      %3618 = vmatpush1.msra.mxu0 %v3420
      %3619 = vmatprep.subr.mxu0 0.0
      %3620 = vmatpush1.msra.mxu0 %v3421
      %3621 = vmatprep.subr.mxu0 0.0
      %3622 = vmatpush1.msra.mxu0 %v3422
      %3623 = vmatprep.subr.mxu0 0.0
      %3624 = vmatpush1.msra.mxu0 %v3423
      %3625 = vmatprep.subr.mxu0 0.0
      %3626 = vmatpush1.msra.mxu0 %v3424
      %3627 = vmatprep.subr.mxu0 0.0
      %3628 = vmatpush1.msra.mxu0 %v3425
      %3629 = vmatprep.subr.mxu0 0.0
      %3630 = vmatpush1.msra.mxu0 %v3426
      %3631 = vmatprep.subr.mxu0 0.0
      %3632 = vmatpush1.msra.mxu0 %v3427
      %3633 = vmatprep.subr.mxu0 0.0
      %3634 = vmatpush1.msra.mxu0 %v3428
      %3635 = vmatprep.subr.mxu0 0.0
      %3636 = vmatpush1.msra.mxu0 %v3429
      %3637 = vmatprep.subr.mxu0 0.0
      %3638 = vmatpush1.msra.mxu0 %v3430
      %3639 = vmatprep.subr.mxu0 0.0
      %3640 = vmatpush1.msra.mxu0 %v3431
      %3641 = vmatprep.subr.mxu0 0.0
      %3642 = vmatpush1.msra.mxu0 %v3432
      %3643 = vmatprep.subr.mxu0 0.0
      %3644 = vmatpush1.msra.mxu0 %v3433
      %3645 = vmatprep.mubr.f32.mxu0 %v3337
      %3646 = vmatmul.mubr.f32.gmra.mrb[0].mxu0 %v3336
      %v3647 = vpop.f32.mrb[0].mxu0
      %v3648 = vadd.f32 %v3578, %v3647
      %v3649 = vpop.f32.mrb[0].mxu0
      %3650 = vdwg.mxu0
      %3651 = vst [vmem:[%s8] sm:$0xff] %v3648
    $region67: #{wav2vec2_emonet_forward.1} parent=1 // pred_fallthru
      _
    // Predicated region
    $region68: #{wav2vec2_emonet_forward.1} parent=1 // pred_check
      _
    $region69: #{wav2vec2_emonet_forward.1} parent=1 // pred_check_branch
      %3653 = sbr.rel (0) target = $region71
    $region70: #{wav2vec2_emonet_forward.1} parent=1 // pred_region
      _
    $region71: #{wav2vec2_emonet_forward.1} parent=1 // pred_fallthru
      _
    // Predicated region
    $region72: #{wav2vec2_emonet_forward.1} parent=1 // pred_check
      _
    $region73: #{wav2vec2_emonet_forward.1} parent=1 // pred_check_branch
      %3655 = sbr.rel (0) target = $region75
    $region74: #{wav2vec2_emonet_forward.1} parent=1 // pred_region
      _
    $region75: #{wav2vec2_emonet_forward.1} parent=1 // pred_fallthru
      _

</llo_original>
